<compile_context>
chip_gen: v7x
topology: tpu7x:2x2x1
jax: 0.10.0
libtpu: 0.0.40
codegen_flags: <defaults>
</compile_context>

<pallas_src>
import functools

import jax
import jax.numpy as jnp
from jax.experimental import pallas as pl
from jax.experimental.pallas import tpu as pltpu


def _round_up(v, m):
    return (v + m - 1) // m * m


def _ppc_kernel(x_ref, tgt_ref, inv_conf_ref, g_ref, b_ref, loss_ref, cnt_ref,
                *, n_rows, tiles_per_core, tile_rows, use_conf, ignore_label, eps):
    t = pl.program_id(1)

    # Zero the tiny resident accumulator blocks at the start of each core's sweep.
    @pl.when(t == 0)
    def _():
        loss_ref[...] = jnp.zeros_like(loss_ref)
        cnt_ref[...] = jnp.zeros_like(cnt_ref)

    tile_idx = pl.program_id(0) * tiles_per_core + t
    row0 = tile_idx * tile_rows
    row_ids = row0 + jax.lax.broadcasted_iota(jnp.int32, (tile_rows, 1), 0)
    in_bounds = row_ids < n_rows                       # (TN, 1) bool; ragged / OOB tiles

    x = x_ref[...].astype(jnp.float32)                 # (TN, D), cast in-registers

    if use_conf:  # static Python flag
        # reciprocal is precomputed in the wrapper -> multiply, not a divide pass
        x = x * inv_conf_ref[...]                      # broadcast (1, D) f32

    # LayerNorm over D (biased variance, eps, affine), matching nn.LayerNorm.
    mu = jnp.mean(x, axis=-1, keepdims=True)
    xc = x - mu
    var = jnp.mean(xc * xc, axis=-1, keepdims=True)
    y = xc * jax.lax.rsqrt(var + eps)
    y = y * g_ref[...] + b_ref[...]

    # Cross-entropy with ignore_index.  Garbage tail/OOB rows are blocked by the
    # where-SELECT below (never a multiply-by-mask), so NaN/Inf cannot leak.
    tgt = tgt_ref[...]                                 # (TN, 1) int32
    valid = jnp.logical_and(in_bounds, tgt != ignore_label)

    m = jnp.max(y, axis=-1, keepdims=True)
    lse = m + jnp.log(jnp.sum(jnp.exp(y - m), axis=-1, keepdims=True))
    cols = jax.lax.broadcasted_iota(jnp.int32, y.shape, 1)
    picked = jnp.sum(jnp.where(cols == tgt, y, 0.0), axis=-1, keepdims=True)

    per_row = jnp.where(valid, lse - picked, 0.0)      # (TN, 1)

    # Reduce the tile to two scalars and broadcast-accumulate them into the tiny
    # resident (1, 8, 128) output blocks (one vreg RMW each -- every element holds
    # the same running sum; the wrapper reads element [0, 0]).
    loss_ref[...] += jnp.sum(per_row)
    cnt_ref[...] += jnp.sum(valid.astype(jnp.float32))


def _vmem_budget_bytes():
    """Generation-aware working-set target (v7x only has 64 MiB VMEM per TC)."""
    try:
        cap = pltpu.get_tpu_info().vmem_capacity_bytes
    except Exception:
        cap = 128 * 1024 * 1024
    return (12 << 20) if cap <= (64 << 20) else (24 << 20)


def _choose_tile_rows(n_rows, n_cols, itemsize, budget_bytes):
    """Row-tile size from the real *padded* per-row VMEM footprint."""
    d_pad = _round_up(max(n_cols, 1), 128)
    per_row = (2 * d_pad * itemsize      # logits block, double buffered
               + 2 * 128 * 4             # (TN,1) int32 target block, lane-padded, x2 buffers
               + 3 * d_pad * 4           # live f32 full-width temporaries (x, y, exp, ...)
               + 6 * 128 * 4)            # live (TN,1) f32 temporaries (mu, var, lse, ...)
    rows = max(8, (budget_bytes // per_row) // 8 * 8)
    n_up = _round_up(n_rows, 8)
    return int(min(rows, n_up))


@functools.partial(jax.jit, static_argnames=("use_conf", "ignore_label", "eps"))
def _ppc_partials(logits, tgt2d, inv_conf2d, gamma2d, beta2d,
                  *, use_conf, ignore_label, eps):
    n, d = logits.shape
    budget = _vmem_budget_bytes()
    tn = _choose_tile_rows(n, d, logits.dtype.itemsize, budget)
    total_tiles = pl.cdiv(n, tn)

    # Always split across both v7x TensorCores when there is more than one tile
    # (harmless on 1-TC v5e/v6e).  A possible odd padded tile is clamped in the
    # index_map and fully masked in-kernel by the in_bounds check.
    num_par = 2 if total_tiles >= 2 else 1
    tiles_per_core = pl.cdiv(total_tiles, num_par)
    last_block = total_tiles - 1

    kernel = functools.partial(
        _ppc_kernel,
        n_rows=n, tiles_per_core=tiles_per_core, tile_rows=tn,
        use_conf=use_conf, ignore_label=ignore_label, eps=eps)

    def row_map(p, t):
        return (jnp.minimum(p * tiles_per_core + t, last_block), 0)

    const_map = lambda p, t: (0, 0)
    out_map = lambda p, t: (p, 0, 0)

    vmem_limit = int(min(budget + (24 << 20), 56 << 20))

    loss_parts, cnt_parts = pl.pallas_call(
        kernel,
        out_shape=(
            jax.ShapeDtypeStruct((num_par, 8, 128), jnp.float32),
            jax.ShapeDtypeStruct((num_par, 8, 128), jnp.float32),
        ),
        grid_spec=pltpu.PrefetchScalarGridSpec(
            num_scalar_prefetch=0,
            grid=(num_par, tiles_per_core),
            in_specs=[
                pl.BlockSpec((tn, d), row_map),      # logits (native dtype)
                pl.BlockSpec((tn, 1), row_map),      # targets (int32)
                pl.BlockSpec((1, d), const_map),     # 1 / proto_confidence (or ones)
                pl.BlockSpec((1, d), const_map),     # LayerNorm gamma
                pl.BlockSpec((1, d), const_map),     # LayerNorm beta
            ],
            out_specs=(
                pl.BlockSpec((1, 8, 128), out_map),  # per-core loss sum
                pl.BlockSpec((1, 8, 128), out_map),  # per-core valid-row count
            ),
        ),
        compiler_params=pltpu.CompilerParams(
            dimension_semantics=("parallel", "arbitrary"),
            vmem_limit_bytes=vmem_limit,
        ),
    )(logits, tgt2d, inv_conf2d, gamma2d, beta2d)
    return loss_parts, cnt_parts


def prob_ppc_loss(contrast_logits, contrast_target, gamma, beta,
                  proto_confidence=None, w1=None, w2=None,
                  *, ignore_label=-1, eps=1e-5):
    """
    contrast_logits: [N, C*M]   (any float dtype; bf16 passes through untouched)
    contrast_target: [N]        integer class indices, ignore_label marks ignored rows
    gamma, beta    : [C*M]      LayerNorm affine parameters (ones/zeros at init)
    proto_confidence: [C, M] or [C*M] optional; logits are divided by it column-wise
    w1, w2         : optional scalars for the final re-weighting
    """
    d = contrast_logits.shape[-1]
    logits = contrast_logits.reshape(-1, d)
    n = logits.shape[0]

    tgt2d = contrast_target.reshape(-1).astype(jnp.int32).reshape(n, 1)
    gamma2d = gamma.astype(jnp.float32).reshape(1, d)
    beta2d = beta.astype(jnp.float32).reshape(1, d)

    use_conf = proto_confidence is not None
    if use_conf:
        # 'c m -> (c m)'; pass the reciprocal so the kernel multiplies instead of
        # running a full (TN, D) divide pass per tile.
        inv_conf2d = (1.0 / proto_confidence.astype(jnp.float32)).reshape(1, d)
    else:
        inv_conf2d = jnp.ones((1, d), jnp.float32)

    loss_parts, cnt_parts = _ppc_partials(
        logits, tgt2d, inv_conf2d, gamma2d, beta2d,
        use_conf=use_conf, ignore_label=int(ignore_label), eps=float(eps))

    # Each (8,128) per-core block holds its scalar replicated -> read element [0,0].
    loss_sum = loss_parts[:, 0, 0].sum()
    cnt_sum = cnt_parts[:, 0, 0].sum()
    loss = loss_sum / cnt_sum   # NaN if no valid rows (same as torch CE 'mean')

    if (w1 is not None) and (w2 is not None):
        loss = 1.0 / (4.0 * w1 + 0.001) * loss + w2 * 0.5
    return loss


# ---------------------------------------------------------------------------
# plain-JAX reference (same math as the PyTorch forward) for the self-check
# ---------------------------------------------------------------------------
def _ref_loss(logits, target, gamma, beta, proto_confidence=None,
              w1=None, w2=None, ignore_label=-1, eps=1e-5):
    x = logits.astype(jnp.float32)
    if proto_confidence is not None:
        x = x / proto_confidence.reshape(-1)[None, :]
    mu = x.mean(-1, keepdims=True)
    var = ((x - mu) ** 2).mean(-1, keepdims=True)
    y = (x - mu) / jnp.sqrt(var + eps) * gamma[None, :] + beta[None, :]
    logp = jax.nn.log_softmax(y, axis=-1)
    valid = target != ignore_label
    safe_t = jnp.where(valid, target, 0).astype(jnp.int32)
    nll = -jnp.take_along_axis(logp, safe_t[:, None], axis=-1)[:, 0]
    loss = jnp.sum(jnp.where(valid, nll, 0.0)) / valid.sum()
    if (w1 is not None) and (w2 is not None):
        loss = 1.0 / (4.0 * w1 + 0.001) * loss + w2 * 0.5
    return loss


if __name__ == "__main__":
    key = jax.random.PRNGKey(0)
    k1, k2, k3, k4, k5 = jax.random.split(key, 5)

    # TODO(synk): configer / nn.LayerNorm parameter plumbing has no Pallas
    # equivalent; gamma/beta (and num_classes/num_prototype) are passed explicitly.
    b, h, w = 2, 16, 16
    num_classes, num_prototype = 4, 8
    d = num_classes * num_prototype            # 32
    n = b * h * w                              # 512

    contrast_logits = jax.random.normal(k1, (n, d), dtype=jnp.float32)
    contrast_target = jax.random.randint(k2, (n,), -1, d).astype(jnp.int32)  # includes ignore=-1
    gamma = 1.0 + 0.1 * jax.random.normal(k3, (d,), dtype=jnp.float32)
    beta = 0.1 * jax.random.normal(k4, (d,), dtype=jnp.float32)
    proto_conf = 0.5 + jax.nn.softplus(
        jax.random.normal(k5, (num_classes, num_prototype), dtype=jnp.float32))
    w1 = jnp.float32(0.7)
    w2 = jnp.float32(0.3)

    # Path 1: plain cross-entropy (no confidence, no w1/w2)
    loss1 = jax.block_until_ready(
        prob_ppc_loss(contrast_logits, contrast_target, gamma, beta))
    ref1 = _ref_loss(contrast_logits, contrast_target, gamma, beta)
    assert jnp.isfinite(loss1)
    assert jnp.allclose(loss1, ref1, rtol=1e-4, atol=1e-4), (loss1, ref1)

    # Path 2: with proto_confidence scaling and the w1/w2 re-weighting
    loss2 = jax.block_until_ready(
        prob_ppc_loss(contrast_logits, contrast_target, gamma, beta,
                      proto_confidence=proto_conf, w1=w1, w2=w2))
    ref2 = _ref_loss(contrast_logits, contrast_target, gamma, beta,
                     proto_confidence=proto_conf, w1=w1, w2=w2)
    assert jnp.isfinite(loss2)
    assert jnp.allclose(loss2, ref2, rtol=1e-4, atol=1e-4), (loss2, ref2)

    print("KERNEL_OK")
</pallas_src>

<mosaic_0001>
module attributes {stable_mosaic.version = 11 : i64} {
  func.func @_ppc_kernel(%arg0: i32, %arg1: i32, %arg2: memref<512x32xf32, #tpu.memory_space<vmem>>, %arg3: memref<512x1xi32, #tpu.memory_space<vmem>>, %arg4: memref<1x32xf32, #tpu.memory_space<vmem>>, %arg5: memref<1x32xf32, #tpu.memory_space<vmem>>, %arg6: memref<1x32xf32, #tpu.memory_space<vmem>>, %arg7: memref<1x8x128xf32, #tpu.memory_space<vmem>>, %arg8: memref<1x8x128xf32, #tpu.memory_space<vmem>>) attributes {dimension_semantics = [#tpu.dimension_semantics<parallel>, #tpu.dimension_semantics<arbitrary>], iteration_bounds = array<i64: 1, 1>, scalar_prefetch = 0 : i64, scratch_operands = 0 : i64, tpu.core_type = #tpu.core_type<tc>, window_params = [{transform_indices = @transform_0, window_bounds = array<i64: 512, 32>}, {transform_indices = @transform_1, window_bounds = array<i64: 512, 1>}, {pipeline_mode = #tpu.pipeline_mode<synchronous>, transform_indices = @transform_2, window_bounds = array<i64: 1, 32>}, {pipeline_mode = #tpu.pipeline_mode<synchronous>, transform_indices = @transform_3, window_bounds = array<i64: 1, 32>}, {pipeline_mode = #tpu.pipeline_mode<synchronous>, transform_indices = @transform_4, window_bounds = array<i64: 1, 32>}, {transform_indices = @transform_5, window_bounds = array<i64: 1, 8, 128>}, {transform_indices = @transform_6, window_bounds = array<i64: 1, 8, 128>}]} {
    %c0_i32 = arith.constant 0 : i32
    %0 = arith.cmpi eq, %arg1, %c0_i32 : i32
    %1 = arith.extui %0 : i1 to i32
    %c0_i32_0 = arith.constant 0 : i32
    %2 = arith.cmpi ne, %1, %c0_i32_0 : i32
    scf.if %2 {
      %cst_32 = arith.constant 0.000000e+00 : f32
      %75 = vector.broadcast %cst_32 : f32 to vector<1x8x128xf32>
      %c0_33 = arith.constant 0 : index
      %c0_34 = arith.constant 0 : index
      %c0_35 = arith.constant 0 : index
      %76 = vector.load %arg7[%c0_33, %c0_34, %c0_35] : memref<1x8x128xf32, #tpu.memory_space<vmem>>, vector<1x8x128xf32>
      tpu.vector_store %arg7[%c0_33, %c0_34, %c0_35], %75 {strides = array<i32>} : memref<1x8x128xf32, #tpu.memory_space<vmem>>, vector<1x8x128xf32>,
      %cst_36 = arith.constant 0.000000e+00 : f32
      %77 = vector.broadcast %cst_36 : f32 to vector<1x8x128xf32>
      %c0_37 = arith.constant 0 : index
      %c0_38 = arith.constant 0 : index
      %c0_39 = arith.constant 0 : index
      %78 = vector.load %arg8[%c0_37, %c0_38, %c0_39] : memref<1x8x128xf32, #tpu.memory_space<vmem>>, vector<1x8x128xf32>
      tpu.vector_store %arg8[%c0_37, %c0_38, %c0_39], %77 {strides = array<i32>} : memref<1x8x128xf32, #tpu.memory_space<vmem>>, vector<1x8x128xf32>,
    } else {
    }
    %c1_i32 = arith.constant 1 : i32
    %3 = arith.muli %arg0, %c1_i32 : i32
    %4 = arith.addi %3, %arg1 : i32
    %c512_i32 = arith.constant 512 : i32
    %5 = arith.muli %4, %c512_i32 : i32
    %6 = tpu.iota {dimensions = array<i32: 0>} : vector<512x1xi32>
    %7 = vector.broadcast %5 : i32 to vector<512x1xi32>
    %8 = arith.addi %7, %6 : vector<512x1xi32>
    %c512_i32_1 = arith.constant 512 : i32
    %9 = vector.broadcast %c512_i32_1 : i32 to vector<512x1xi32>
    %10 = arith.cmpi slt, %8, %9 : vector<512x1xi32>
    %c0 = arith.constant 0 : index
    %c0_2 = arith.constant 0 : index
    %11 = vector.load %arg2[%c0, %c0_2] : memref<512x32xf32, #tpu.memory_space<vmem>>, vector<512x32xf32>
    %cst = arith.constant dense<0.000000e+00> : vector<512xf32>
    %12 = vector.multi_reduction <add>, %11, %cst [1] : vector<512x32xf32> to vector<512xf32>
    %13 = vector.shape_cast %12 : vector<512xf32> to vector<512x1xf32>
    %cst_3 = arith.constant 3.200000e+01 : f32
    %14 = vector.broadcast %cst_3 : f32 to vector<512x1xf32>
    %15 = arith.divf %13, %14 : vector<512x1xf32>
    %16 = vector.broadcast %15 : vector<512x1xf32> to vector<512x32xf32>
    %17 = arith.subf %11, %16 : vector<512x32xf32>
    %18 = arith.mulf %17, %17 : vector<512x32xf32>
    %cst_4 = arith.constant dense<0.000000e+00> : vector<512xf32>
    %19 = vector.multi_reduction <add>, %18, %cst_4 [1] : vector<512x32xf32> to vector<512xf32>
    %20 = vector.shape_cast %19 : vector<512xf32> to vector<512x1xf32>
    %cst_5 = arith.constant 3.200000e+01 : f32
    %21 = vector.broadcast %cst_5 : f32 to vector<512x1xf32>
    %22 = arith.divf %20, %21 : vector<512x1xf32>
    %cst_6 = arith.constant 9.99999974E-6 : f32
    %23 = vector.broadcast %cst_6 : f32 to vector<512x1xf32>
    %24 = arith.addf %22, %23 : vector<512x1xf32>
    %25 = math.rsqrt %24 : vector<512x1xf32>
    %26 = vector.broadcast %25 : vector<512x1xf32> to vector<512x32xf32>
    %27 = arith.mulf %17, %26 : vector<512x32xf32>
    %c0_7 = arith.constant 0 : index
    %c0_8 = arith.constant 0 : index
    %28 = vector.load %arg5[%c0_7, %c0_8] : memref<1x32xf32, #tpu.memory_space<vmem>>, vector<1x32xf32>
    %29 = vector.broadcast %28 : vector<1x32xf32> to vector<512x32xf32>
    %30 = arith.mulf %27, %29 : vector<512x32xf32>
    %c0_9 = arith.constant 0 : index
    %c0_10 = arith.constant 0 : index
    %31 = vector.load %arg6[%c0_9, %c0_10] : memref<1x32xf32, #tpu.memory_space<vmem>>, vector<1x32xf32>
    %32 = vector.broadcast %31 : vector<1x32xf32> to vector<512x32xf32>
    %33 = arith.addf %30, %32 : vector<512x32xf32>
    %c0_11 = arith.constant 0 : index
    %c0_12 = arith.constant 0 : index
    %34 = vector.load %arg3[%c0_11, %c0_12] : memref<512x1xi32, #tpu.memory_space<vmem>>, vector<512x1xi32>
    %c-1_i32 = arith.constant -1 : i32
    %35 = vector.broadcast %c-1_i32 : i32 to vector<512x1xi32>
    %36 = arith.cmpi ne, %34, %35 : vector<512x1xi32>
    %37 = arith.andi %10, %36 : vector<512x1xi1>
    %cst_13 = arith.constant dense<0xFF800000> : vector<512xf32>
    %38 = vector.multi_reduction <maximumf>, %33, %cst_13 [1] : vector<512x32xf32> to vector<512xf32>
    %39 = vector.shape_cast %38 : vector<512xf32> to vector<512x1xf32>
    %40 = vector.broadcast %39 : vector<512x1xf32> to vector<512x32xf32>
    %41 = arith.subf %33, %40 : vector<512x32xf32>
    %42 = math.exp %41 : vector<512x32xf32>
    %cst_14 = arith.constant dense<0.000000e+00> : vector<512xf32>
    %43 = vector.multi_reduction <add>, %42, %cst_14 [1] : vector<512x32xf32> to vector<512xf32>
    %44 = vector.shape_cast %43 : vector<512xf32> to vector<512x1xf32>
    %45 = math.log %44 : vector<512x1xf32>
    %46 = arith.addf %39, %45 : vector<512x1xf32>
    %47 = tpu.iota {dimensions = array<i32: 1>} : vector<512x32xi32>
    %48 = vector.broadcast %34 : vector<512x1xi32> to vector<512x32xi32>
    %49 = arith.cmpi eq, %47, %48 : vector<512x32xi32>
    %cst_15 = arith.constant 0.000000e+00 : f32
    %50 = vector.broadcast %cst_15 : f32 to vector<512x32xf32>
    %51 = arith.select %49, %33, %50 : vector<512x32xi1>, vector<512x32xf32>
    %cst_16 = arith.constant dense<0.000000e+00> : vector<512xf32>
    %52 = vector.multi_reduction <add>, %51, %cst_16 [1] : vector<512x32xf32> to vector<512xf32>
    %53 = vector.shape_cast %52 : vector<512xf32> to vector<512x1xf32>
    %54 = arith.subf %46, %53 : vector<512x1xf32>
    %cst_17 = arith.constant 0.000000e+00 : f32
    %55 = vector.broadcast %cst_17 : f32 to vector<512x1xf32>
    %56 = arith.select %37, %54, %55 : vector<512x1xi1>, vector<512x1xf32>
    %c0_18 = arith.constant 0 : index
    %c0_19 = arith.constant 0 : index
    %c0_20 = arith.constant 0 : index
    %57 = vector.load %arg7[%c0_18, %c0_19, %c0_20] : memref<1x8x128xf32, #tpu.memory_space<vmem>>, vector<1x8x128xf32>
    %58 = vector.shape_cast %56 : vector<512x1xf32> to vector<1x512x1xf32>
    %cst_21 = arith.constant dense<0.000000e+00> : vector<1xf32>
    %59 = vector.multi_reduction <add>, %58, %cst_21 [1, 2] : vector<1x512x1xf32> to vector<1xf32>
    %60 = vector.shape_cast %59 : vector<1xf32> to vector<1x1x1xf32>
    %61 = vector.extract %60[0, 0, 0] : f32 from vector<1x1x1xf32>
    %62 = vector.broadcast %61 : f32 to vector<1x8x128xf32>
    %63 = arith.addf %57, %62 : vector<1x8x128xf32>
    %c0_22 = arith.constant 0 : index
    %c0_23 = arith.constant 0 : index
    %c0_24 = arith.constant 0 : index
    %64 = vector.load %arg7[%c0_22, %c0_23, %c0_24] : memref<1x8x128xf32, #tpu.memory_space<vmem>>, vector<1x8x128xf32>
    tpu.vector_store %arg7[%c0_22, %c0_23, %c0_24], %63 {strides = array<i32>} : memref<1x8x128xf32, #tpu.memory_space<vmem>>, vector<1x8x128xf32>,
    %c0_25 = arith.constant 0 : index
    %c0_26 = arith.constant 0 : index
    %c0_27 = arith.constant 0 : index
    %65 = vector.load %arg8[%c0_25, %c0_26, %c0_27] : memref<1x8x128xf32, #tpu.memory_space<vmem>>, vector<1x8x128xf32>
    %66 = arith.extui %37 : vector<512x1xi1> to vector<512x1xi32>
    %67 = arith.sitofp %66 : vector<512x1xi32> to vector<512x1xf32>
    %68 = vector.shape_cast %67 : vector<512x1xf32> to vector<1x512x1xf32>
    %cst_28 = arith.constant dense<0.000000e+00> : vector<1xf32>
    %69 = vector.multi_reduction <add>, %68, %cst_28 [1, 2] : vector<1x512x1xf32> to vector<1xf32>
    %70 = vector.shape_cast %69 : vector<1xf32> to vector<1x1x1xf32>
    %71 = vector.extract %70[0, 0, 0] : f32 from vector<1x1x1xf32>
    %72 = vector.broadcast %71 : f32 to vector<1x8x128xf32>
    %73 = arith.addf %65, %72 : vector<1x8x128xf32>
    %c0_29 = arith.constant 0 : index
    %c0_30 = arith.constant 0 : index
    %c0_31 = arith.constant 0 : index
    %74 = vector.load %arg8[%c0_29, %c0_30, %c0_31] : memref<1x8x128xf32, #tpu.memory_space<vmem>>, vector<1x8x128xf32>
    tpu.vector_store %arg8[%c0_29, %c0_30, %c0_31], %73 {strides = array<i32>} : memref<1x8x128xf32, #tpu.memory_space<vmem>>, vector<1x8x128xf32>,
    return
  }
  func.func @transform_0(%arg0: i32, %arg1: i32) -> (i32, i32) {
    %c1_i32 = arith.constant 1 : i32
    %0 = arith.muli %arg0, %c1_i32 : i32
    %1 = arith.addi %0, %arg1 : i32
    %c0_i32 = arith.constant 0 : i32
    %2 = arith.minsi %1, %c0_i32 : i32
    %c0_i32_0 = arith.constant 0 : i32
    %c0_i32_1 = arith.constant 0 : i32
    return %2, %c0_i32_0 : i32, i32
  }
  func.func @transform_1(%arg0: i32, %arg1: i32) -> (i32, i32) {
    %c1_i32 = arith.constant 1 : i32
    %0 = arith.muli %arg0, %c1_i32 : i32
    %1 = arith.addi %0, %arg1 : i32
    %c0_i32 = arith.constant 0 : i32
    %2 = arith.minsi %1, %c0_i32 : i32
    %c0_i32_0 = arith.constant 0 : i32
    %c0_i32_1 = arith.constant 0 : i32
    return %2, %c0_i32_0 : i32, i32
  }
  func.func @transform_2(%arg0: i32, %arg1: i32) -> (i32, i32) {
    %c0_i32 = arith.constant 0 : i32
    %c0_i32_0 = arith.constant 0 : i32
    %c0_i32_1 = arith.constant 0 : i32
    return %c0_i32, %c0_i32_0 : i32, i32
  }
  func.func @transform_3(%arg0: i32, %arg1: i32) -> (i32, i32) {
    %c0_i32 = arith.constant 0 : i32
    %c0_i32_0 = arith.constant 0 : i32
    %c0_i32_1 = arith.constant 0 : i32
    return %c0_i32, %c0_i32_0 : i32, i32
  }
  func.func @transform_4(%arg0: i32, %arg1: i32) -> (i32, i32) {
    %c0_i32 = arith.constant 0 : i32
    %c0_i32_0 = arith.constant 0 : i32
    %c0_i32_1 = arith.constant 0 : i32
    return %c0_i32, %c0_i32_0 : i32, i32
  }
  func.func @transform_5(%arg0: i32, %arg1: i32) -> (i32, i32, i32) {
    %c0_i32 = arith.constant 0 : i32
    %c0_i32_0 = arith.constant 0 : i32
    %c0_i32_1 = arith.constant 0 : i32
    return %arg0, %c0_i32, %c0_i32_0 : i32, i32, i32
  }
  func.func @transform_6(%arg0: i32, %arg1: i32) -> (i32, i32, i32) {
    %c0_i32 = arith.constant 0 : i32
    %c0_i32_0 = arith.constant 0 : i32
    %c0_i32_1 = arith.constant 0 : i32
    return %arg0, %c0_i32, %c0_i32_0 : i32, i32, i32
  }
}

</mosaic_0001>

<llo_original>
// kernel: _ppc_partials.1
$region0: #{_ppc_partials.1}
  #allocation0 [shape = 'u32[]', space=smem, size = 0x4, offset = 0x4, fixed_abs, tag = 'smem constant byte address 0x4 - core index']
  #allocation1 [shape = 'u32[144,128]{1,0:T(1,128)}', space=vmem, size = 0x12000, scoped, tag = 'internal scratch']
  %s0 = inlined_call_operand.vmem [shape: f32[512,32], index: 0, kind: input, shape index: {}]
  %s1 = inlined_call_operand.vmem [shape: s32[512,1], index: 1, kind: input, shape index: {}]
  %s2 = inlined_call_operand.vmem [shape: f32[1,32], index: 2, kind: input, shape index: {}]
  %s3 = inlined_call_operand.vmem [shape: f32[1,32], index: 3, kind: input, shape index: {}]
  %s4 = inlined_call_operand.vmem [shape: f32[1,32], index: 4, kind: input, shape index: {}]
  %s5 = inlined_call_operand.hbm [shape: f32[1,8,128], index: 5, kind: output, shape index: {0}]
  %s6 = inlined_call_operand.hbm [shape: f32[1,8,128], index: 6, kind: output, shape index: {1}]
  %7 = xla_tuple %s5, %s6
  %s8 = sld [smem:[#allocation0]]
  $region42: #{_ppc_partials.1} parent=0
    _
  %s10 = ssub.s32 1, %s8
  %s11 = scalar_select 0, %s10, %s8
  $region1: #{_ppc_partials.1} parent=0
    #allocation2 [shape = 'u8[4096]{0}', space=vmem, size = 0x1000, scoped, tag = 'output window, operand 0, single buffered']
    #allocation3 [shape = 's32[1]{0}', space=sflag, size = 0x4, scoped, tag = 'scoped memory for _ppc_partials.1']
    #allocation4 [shape = 'u8[4096]{0}', space=vmem, size = 0x1000, scoped, tag = 'output window, operand 1, single buffered']
    #allocation5 [shape = 's32[1]{0}', space=sflag, size = 0x4, scoped, tag = 'scoped memory for _ppc_partials.1']
    %12 = vsyncpa [#allocation3], 0
    %13 = vsyncpa [#allocation5], 0
    // Predicated region
    $region2: #{_ppc_partials.1} parent=1 // pred_check
      _
    $region3: #{_ppc_partials.1} parent=1 // pred_check_branch
      %15 = sbr.rel (0) target = $region5
    $region4: #{_ppc_partials.1} parent=1 // pred_region
      %s16 = sadd.s32 0, 0
      %p17 = scmp.lt.s32.totalorder %s16, 0
      %s18 = scalar_select %p17, %s16, 0
      %s19 = smul.u32 64, %s18
      %p20 = scmp.lt.s32.totalorder %s19, 63
      %s21 = scalar_select %p20, %s19, 63
      %s22 = smul.addr %s21, 8
      %s23 = scalar_lea.vmem %s0, %s22
      %s24 = sadd.s32 0, 0
      %p25 = scmp.lt.s32.totalorder %s24, 0
      %s26 = scalar_select %p25, %s24, 0
      %s27 = smul.u32 64, %s26
    $region5: #{_ppc_partials.1} parent=1 // pred_fallthru
      _
    // Predicated region
    $region6: #{_ppc_partials.1} parent=1 // pred_check
      _
    $region7: #{_ppc_partials.1} parent=1 // pred_check_branch
      %29 = sbr.rel (0) target = $region9
    $region8: #{_ppc_partials.1} parent=1 // pred_region
      %s30 = sadd.s32 0, 0
      %p31 = scmp.lt.s32.totalorder %s30, 0
      %s32 = scalar_select %p31, %s30, 0
      %s33 = smul.u32 64, %s32
      %p34 = scmp.lt.s32.totalorder %s33, 63
      %s35 = scalar_select %p34, %s33, 63
      %s36 = smul.addr %s35, 8
      %s37 = scalar_lea.vmem %s1, %s36
      %s38 = sadd.s32 0, 0
      %p39 = scmp.lt.s32.totalorder %s38, 0
      %s40 = scalar_select %p39, %s38, 0
      %s41 = smul.u32 64, %s40
    $region9: #{_ppc_partials.1} parent=1 // pred_fallthru
      _
    // Predicated region
    $region10: #{_ppc_partials.1} parent=1 // pred_check
      _
    $region11: #{_ppc_partials.1} parent=1 // pred_check_branch
      %43 = sbr.rel (0) target = $region13
    $region12: #{_ppc_partials.1} parent=1 // pred_region
      _
    $region13: #{_ppc_partials.1} parent=1 // pred_fallthru
      _
    // Predicated region
    $region14: #{_ppc_partials.1} parent=1 // pred_check
      _
    $region15: #{_ppc_partials.1} parent=1 // pred_check_branch
      %45 = sbr.rel (0) target = $region17
    $region16: #{_ppc_partials.1} parent=1 // pred_region
      _
    $region17: #{_ppc_partials.1} parent=1 // pred_fallthru
      _
    // Predicated region
    $region18: #{_ppc_partials.1} parent=1 // pred_check
      _
    $region19: #{_ppc_partials.1} parent=1 // pred_check_branch
      %47 = sbr.rel (0) target = $region21
    $region20: #{_ppc_partials.1} parent=1 // pred_region
      _
    $region21: #{_ppc_partials.1} parent=1 // pred_fallthru
      _
    %s48 = sadd.s32 0, 0
    %p49 = scmp.lt.s32.totalorder %s48, 0
    %s50 = scalar_select %p49, %s48, 0
    %s51 = smul.u32 64, %s50
    %p52 = scmp.lt.s32.totalorder %s51, 63
    %s53 = scalar_select %p52, %s51, 63
    %s54 = smul.addr %s53, 8
    %s55 = scalar_lea.vmem %s0, %s54
    %s56 = sadd.s32 0, 0
    %p57 = scmp.lt.s32.totalorder %s56, 0
    %s58 = scalar_select %p57, %s56, 0
    %s59 = smul.u32 64, %s58
    %p60 = scmp.lt.s32.totalorder %s59, 63
    %s61 = scalar_select %p60, %s59, 63
    %s62 = smul.addr %s61, 8
    %s63 = scalar_lea.vmem %s1, %s62
    %s64 = sadd.s32 0, 0
    %p65 = scmp.lt.s32.totalorder %s64, 0
    %s66 = scalar_select %p65, %s64, 0
    %s67 = smul.u32 64, %s66
    %p68 = scmp.lt.s32.totalorder %s67, 63
    %s69 = scalar_select %p68, %s67, 63
    %s70 = smul.addr %s69, 8
    %s71 = scalar_lea.vmem %s0, %s70
    %s72 = sadd.s32 0, 0
    %p73 = scmp.lt.s32.totalorder %s72, 0
    %s74 = scalar_select %p73, %s72, 0
    %s75 = smul.u32 64, %s74
    %s76 = sadd.s32 0, 0
    %p77 = scmp.lt.s32.totalorder %s76, 0
    %s78 = scalar_select %p77, %s76, 0
    %s79 = smul.u32 64, %s78
    %p80 = scmp.lt.s32.totalorder %s79, 63
    %s81 = scalar_select %p80, %s79, 63
    %s82 = smul.addr %s81, 8
    %s83 = scalar_lea.vmem %s1, %s82
    %s84 = sadd.s32 0, 0
    %p85 = scmp.lt.s32.totalorder %s84, 0
    %s86 = scalar_select %p85, %s84, 0
    %s87 = smul.u32 64, %s86
    %p88 = scmp.eq.s32.totalorder 0, 0
    // Predicated region
    $region22: #{_ppc_partials.1} parent=1 // pred_check
      %p89 = pneg %p88
    $region23: #{_ppc_partials.1} parent=1 // pred_check_branch
      %91 = sbr.rel (%p89) target = $region25
    $region24: #{_ppc_partials.1} parent=1 // pred_region
      %92 = vst [vmem:[#allocation2] sm:$0xff] 0.0
      %93 = vst [vmem:[#allocation4] sm:$0xff] 0.0
    $region25: #{_ppc_partials.1} parent=1 // pred_fallthru
      _
    %s94 = sadd.s32 0, 0
    %s95 = smul.u32 %s94, 512
    %v96 = vlaneseq
    %v97 = vshrl.u32 %v96, 7
    %v98 = vadd.s32 %v97, 8
    %v99 = vadd.s32 %v97, 16
    %v100 = vadd.s32 %v97, 24
    %v101 = vadd.s32 %v97, 32
    %v102 = vadd.s32 %v97, 40
    %v103 = vadd.s32 %v97, 48
    %v104 = vadd.s32 %v97, 56
    %v105 = vadd.s32 %v97, 64
    %v106 = vadd.s32 %v97, 72
    %v107 = vadd.s32 %v97, 80
    %v108 = vadd.s32 %v97, 88
    %v109 = vadd.s32 %v97, 96
    %v110 = vadd.s32 %v97, 104
    %v111 = vadd.s32 %v97, 112
    %v112 = vadd.s32 %v97, 120
    %v113 = vadd.s32 %v97, 128
    %v114 = vadd.s32 %v97, 136
    %v115 = vadd.s32 %v97, 144
    %v116 = vadd.s32 %v97, 152
    %v117 = vadd.s32 %v97, 160
    %v118 = vadd.s32 %v97, 168
    %v119 = vadd.s32 %v97, 176
    %v120 = vadd.s32 %v97, 184
    %v121 = vadd.s32 %v97, 192
    %v122 = vadd.s32 %v97, 200
    %v123 = vadd.s32 %v97, 208
    %v124 = vadd.s32 %v97, 216
    %v125 = vadd.s32 %v97, 224
    %v126 = vadd.s32 %v97, 232
    %v127 = vadd.s32 %v97, 240
    %v128 = vadd.s32 %v97, 248
    %v129 = vadd.s32 %v97, 256
    %v130 = vadd.s32 %v97, 264
    %v131 = vadd.s32 %v97, 272
    %v132 = vadd.s32 %v97, 280
    %v133 = vadd.s32 %v97, 288
    %v134 = vadd.s32 %v97, 296
    %v135 = vadd.s32 %v97, 304
    %v136 = vadd.s32 %v97, 312
    %v137 = vadd.s32 %v97, 320
    %v138 = vadd.s32 %v97, 328
    %v139 = vadd.s32 %v97, 336
    %v140 = vadd.s32 %v97, 344
    %v141 = vadd.s32 %v97, 352
    %v142 = vadd.s32 %v97, 360
    %v143 = vadd.s32 %v97, 368
    %v144 = vadd.s32 %v97, 376
    %v145 = vadd.s32 %v97, 384
    %v146 = vadd.s32 %v97, 392
    %v147 = vadd.s32 %v97, 400
    %v148 = vadd.s32 %v97, 408
    %v149 = vadd.s32 %v97, 416
    %v150 = vadd.s32 %v97, 424
    %v151 = vadd.s32 %v97, 432
    %v152 = vadd.s32 %v97, 440
    %v153 = vadd.s32 %v97, 448
    %v154 = vadd.s32 %v97, 456
    %v155 = vadd.s32 %v97, 464
    %v156 = vadd.s32 %v97, 472
    %v157 = vadd.s32 %v97, 480
    %v158 = vadd.s32 %v97, 488
    %v159 = vadd.s32 %v97, 496
    %v160 = vadd.s32 %v97, 504
    %v161 = vstv %s95
    %v162 = vadd.s32 %v161, %v97
    %v163 = vadd.s32 %v161, %v98
    %v164 = vadd.s32 %v161, %v99
    %v165 = vadd.s32 %v161, %v100
    %v166 = vadd.s32 %v161, %v101
    %v167 = vadd.s32 %v161, %v102
    %v168 = vadd.s32 %v161, %v103
    %v169 = vadd.s32 %v161, %v104
    %v170 = vadd.s32 %v161, %v105
    %v171 = vadd.s32 %v161, %v106
    %v172 = vadd.s32 %v161, %v107
    %v173 = vadd.s32 %v161, %v108
    %v174 = vadd.s32 %v161, %v109
    %v175 = vadd.s32 %v161, %v110
    %v176 = vadd.s32 %v161, %v111
    %v177 = vadd.s32 %v161, %v112
    %v178 = vadd.s32 %v161, %v113
    %v179 = vadd.s32 %v161, %v114
    %v180 = vadd.s32 %v161, %v115
    %v181 = vadd.s32 %v161, %v116
    %v182 = vadd.s32 %v161, %v117
    %v183 = vadd.s32 %v161, %v118
    %v184 = vadd.s32 %v161, %v119
    %v185 = vadd.s32 %v161, %v120
    %v186 = vadd.s32 %v161, %v121
    %v187 = vadd.s32 %v161, %v122
    %v188 = vadd.s32 %v161, %v123
    %v189 = vadd.s32 %v161, %v124
    %v190 = vadd.s32 %v161, %v125
    %v191 = vadd.s32 %v161, %v126
    %v192 = vadd.s32 %v161, %v127
    %v193 = vadd.s32 %v161, %v128
    %v194 = vadd.s32 %v161, %v129
    %v195 = vadd.s32 %v161, %v130
    %v196 = vadd.s32 %v161, %v131
    %v197 = vadd.s32 %v161, %v132
    %v198 = vadd.s32 %v161, %v133
    %v199 = vadd.s32 %v161, %v134
    %v200 = vadd.s32 %v161, %v135
    %v201 = vadd.s32 %v161, %v136
    %v202 = vadd.s32 %v161, %v137
    %v203 = vadd.s32 %v161, %v138
    %v204 = vadd.s32 %v161, %v139
    %v205 = vadd.s32 %v161, %v140
    %v206 = vadd.s32 %v161, %v141
    %v207 = vadd.s32 %v161, %v142
    %v208 = vadd.s32 %v161, %v143
    %v209 = vadd.s32 %v161, %v144
    %v210 = vadd.s32 %v161, %v145
    %v211 = vadd.s32 %v161, %v146
    %v212 = vadd.s32 %v161, %v147
    %v213 = vadd.s32 %v161, %v148
    %v214 = vadd.s32 %v161, %v149
    %v215 = vadd.s32 %v161, %v150
    %v216 = vadd.s32 %v161, %v151
    %v217 = vadd.s32 %v161, %v152
    %v218 = vadd.s32 %v161, %v153
    %v219 = vadd.s32 %v161, %v154
    %v220 = vadd.s32 %v161, %v155
    %v221 = vadd.s32 %v161, %v156
    %v222 = vadd.s32 %v161, %v157
    %v223 = vadd.s32 %v161, %v158
    %v224 = vadd.s32 %v161, %v159
    %v225 = vadd.s32 %v161, %v160
    %vm226 = vcmp.lt.s32.totalorder %v162, 512
    %vm227 = vcmp.lt.s32.totalorder %v163, 512
    %vm228 = vcmp.lt.s32.totalorder %v164, 512
    %vm229 = vcmp.lt.s32.totalorder %v165, 512
    %vm230 = vcmp.lt.s32.totalorder %v166, 512
    %vm231 = vcmp.lt.s32.totalorder %v167, 512
    %vm232 = vcmp.lt.s32.totalorder %v168, 512
    %vm233 = vcmp.lt.s32.totalorder %v169, 512
    %vm234 = vcmp.lt.s32.totalorder %v170, 512
    %vm235 = vcmp.lt.s32.totalorder %v171, 512
    %vm236 = vcmp.lt.s32.totalorder %v172, 512
    %vm237 = vcmp.lt.s32.totalorder %v173, 512
    %vm238 = vcmp.lt.s32.totalorder %v174, 512
    %vm239 = vcmp.lt.s32.totalorder %v175, 512
    %vm240 = vcmp.lt.s32.totalorder %v176, 512
    %vm241 = vcmp.lt.s32.totalorder %v177, 512
    %vm242 = vcmp.lt.s32.totalorder %v178, 512
    %vm243 = vcmp.lt.s32.totalorder %v179, 512
    %vm244 = vcmp.lt.s32.totalorder %v180, 512
    %vm245 = vcmp.lt.s32.totalorder %v181, 512
    %vm246 = vcmp.lt.s32.totalorder %v182, 512
    %vm247 = vcmp.lt.s32.totalorder %v183, 512
    %vm248 = vcmp.lt.s32.totalorder %v184, 512
    %vm249 = vcmp.lt.s32.totalorder %v185, 512
    %vm250 = vcmp.lt.s32.totalorder %v186, 512
    %vm251 = vcmp.lt.s32.totalorder %v187, 512
    %vm252 = vcmp.lt.s32.totalorder %v188, 512
    %vm253 = vcmp.lt.s32.totalorder %v189, 512
    %vm254 = vcmp.lt.s32.totalorder %v190, 512
    %vm255 = vcmp.lt.s32.totalorder %v191, 512
    %vm256 = vcmp.lt.s32.totalorder %v192, 512
    %vm257 = vcmp.lt.s32.totalorder %v193, 512
    %vm258 = vcmp.lt.s32.totalorder %v194, 512
    %vm259 = vcmp.lt.s32.totalorder %v195, 512
    %vm260 = vcmp.lt.s32.totalorder %v196, 512
    %vm261 = vcmp.lt.s32.totalorder %v197, 512
    %vm262 = vcmp.lt.s32.totalorder %v198, 512
    %vm263 = vcmp.lt.s32.totalorder %v199, 512
    %vm264 = vcmp.lt.s32.totalorder %v200, 512
    %vm265 = vcmp.lt.s32.totalorder %v201, 512
    %vm266 = vcmp.lt.s32.totalorder %v202, 512
    %vm267 = vcmp.lt.s32.totalorder %v203, 512
    %vm268 = vcmp.lt.s32.totalorder %v204, 512
    %vm269 = vcmp.lt.s32.totalorder %v205, 512
    %vm270 = vcmp.lt.s32.totalorder %v206, 512
    %vm271 = vcmp.lt.s32.totalorder %v207, 512
    %vm272 = vcmp.lt.s32.totalorder %v208, 512
    %vm273 = vcmp.lt.s32.totalorder %v209, 512
    %vm274 = vcmp.lt.s32.totalorder %v210, 512
    %vm275 = vcmp.lt.s32.totalorder %v211, 512
    %vm276 = vcmp.lt.s32.totalorder %v212, 512
    %vm277 = vcmp.lt.s32.totalorder %v213, 512
    %vm278 = vcmp.lt.s32.totalorder %v214, 512
    %vm279 = vcmp.lt.s32.totalorder %v215, 512
    %vm280 = vcmp.lt.s32.totalorder %v216, 512
    %vm281 = vcmp.lt.s32.totalorder %v217, 512
    %vm282 = vcmp.lt.s32.totalorder %v218, 512
    %vm283 = vcmp.lt.s32.totalorder %v219, 512
    %vm284 = vcmp.lt.s32.totalorder %v220, 512
    %vm285 = vcmp.lt.s32.totalorder %v221, 512
    %vm286 = vcmp.lt.s32.totalorder %v222, 512
    %vm287 = vcmp.lt.s32.totalorder %v223, 512
    %vm288 = vcmp.lt.s32.totalorder %v224, 512
    %vm289 = vcmp.lt.s32.totalorder %v225, 512
    %v290 = vld [vmem:[%s71] sm:$0xff]
    %v291 = vld [vmem:[%s71 + $0x8] sm:$0xff]
    %v292 = vld [vmem:[%s71 + $0x10] sm:$0xff]
    %v293 = vld [vmem:[%s71 + $0x18] sm:$0xff]
    %v294 = vld [vmem:[%s71 + $0x20] sm:$0xff]
    %v295 = vld [vmem:[%s71 + $0x28] sm:$0xff]
    %v296 = vld [vmem:[%s71 + $0x30] sm:$0xff]
    %v297 = vld [vmem:[%s71 + $0x38] sm:$0xff]
    %v298 = vld [vmem:[%s71 + $0x40] sm:$0xff]
    %v299 = vld [vmem:[%s71 + $0x48] sm:$0xff]
    %v300 = vld [vmem:[%s71 + $0x50] sm:$0xff]
    %v301 = vld [vmem:[%s71 + $0x58] sm:$0xff]
    %v302 = vld [vmem:[%s71 + $0x60] sm:$0xff]
    %v303 = vld [vmem:[%s71 + $0x68] sm:$0xff]
    %v304 = vld [vmem:[%s71 + $0x70] sm:$0xff]
    %v305 = vld [vmem:[%s71 + $0x78] sm:$0xff]
    %v306 = vld [vmem:[%s71 + $0x80] sm:$0xff]
    %v307 = vld [vmem:[%s71 + $0x88] sm:$0xff]
    %v308 = vld [vmem:[%s71 + $0x90] sm:$0xff]
    %v309 = vld [vmem:[%s71 + $0x98] sm:$0xff]
    %v310 = vld [vmem:[%s71 + $0xa0] sm:$0xff]
    %v311 = vld [vmem:[%s71 + $0xa8] sm:$0xff]
    %v312 = vld [vmem:[%s71 + $0xb0] sm:$0xff]
    %v313 = vld [vmem:[%s71 + $0xb8] sm:$0xff]
    %v314 = vld [vmem:[%s71 + $0xc0] sm:$0xff]
    %v315 = vld [vmem:[%s71 + $0xc8] sm:$0xff]
    %v316 = vld [vmem:[%s71 + $0xd0] sm:$0xff]
    %v317 = vld [vmem:[%s71 + $0xd8] sm:$0xff]
    %v318 = vld [vmem:[%s71 + $0xe0] sm:$0xff]
    %v319 = vld [vmem:[%s71 + $0xe8] sm:$0xff]
    %v320 = vld [vmem:[%s71 + $0xf0] sm:$0xff]
    %v321 = vld [vmem:[%s71 + $0xf8] sm:$0xff]
    %v322 = vld [vmem:[%s71 + $0x100] sm:$0xff]
    %v323 = vld [vmem:[%s71 + $0x108] sm:$0xff]
    %v324 = vld [vmem:[%s71 + $0x110] sm:$0xff]
    %v325 = vld [vmem:[%s71 + $0x118] sm:$0xff]
    %v326 = vld [vmem:[%s71 + $0x120] sm:$0xff]
    %v327 = vld [vmem:[%s71 + $0x128] sm:$0xff]
    %v328 = vld [vmem:[%s71 + $0x130] sm:$0xff]
    %v329 = vld [vmem:[%s71 + $0x138] sm:$0xff]
    %v330 = vld [vmem:[%s71 + $0x140] sm:$0xff]
    %v331 = vld [vmem:[%s71 + $0x148] sm:$0xff]
    %v332 = vld [vmem:[%s71 + $0x150] sm:$0xff]
    %v333 = vld [vmem:[%s71 + $0x158] sm:$0xff]
    %v334 = vld [vmem:[%s71 + $0x160] sm:$0xff]
    %v335 = vld [vmem:[%s71 + $0x168] sm:$0xff]
    %v336 = vld [vmem:[%s71 + $0x170] sm:$0xff]
    %v337 = vld [vmem:[%s71 + $0x178] sm:$0xff]
    %v338 = vld [vmem:[%s71 + $0x180] sm:$0xff]
    %v339 = vld [vmem:[%s71 + $0x188] sm:$0xff]
    %v340 = vld [vmem:[%s71 + $0x190] sm:$0xff]
    %v341 = vld [vmem:[%s71 + $0x198] sm:$0xff]
    %v342 = vld [vmem:[%s71 + $0x1a0] sm:$0xff]
    %v343 = vld [vmem:[%s71 + $0x1a8] sm:$0xff]
    %v344 = vld [vmem:[%s71 + $0x1b0] sm:$0xff]
    %v345 = vld [vmem:[%s71 + $0x1b8] sm:$0xff]
    %v346 = vld [vmem:[%s71 + $0x1c0] sm:$0xff]
    %v347 = vld [vmem:[%s71 + $0x1c8] sm:$0xff]
    %v348 = vld [vmem:[%s71 + $0x1d0] sm:$0xff]
    %v349 = vld [vmem:[%s71 + $0x1d8] sm:$0xff]
    %v350 = vld [vmem:[%s71 + $0x1e0] sm:$0xff]
    %v351 = vld [vmem:[%s71 + $0x1e8] sm:$0xff]
    %v352 = vld [vmem:[%s71 + $0x1f0] sm:$0xff]
    %v353 = vld [vmem:[%s71 + $0x1f8] sm:$0xff]
    %vm354 = vcmask 261120
    %v355 = vsel %vm354, %v290, 0.0
    %356 = vadd.xlane.f32.xlu0 %v355
    %v357 = vpop.xlane.xlu0 %356
    %v358 = vsel %vm354, %v291, 0.0
    %359 = vadd.xlane.f32.xlu0 %v358
    %v360 = vpop.xlane.xlu0 %359
    %v361 = vsel %vm354, %v292, 0.0
    %362 = vadd.xlane.f32.xlu0 %v361
    %v363 = vpop.xlane.xlu0 %362
    %v364 = vsel %vm354, %v293, 0.0
    %365 = vadd.xlane.f32.xlu0 %v364
    %v366 = vpop.xlane.xlu0 %365
    %v367 = vsel %vm354, %v294, 0.0
    %368 = vadd.xlane.f32.xlu0 %v367
    %v369 = vpop.xlane.xlu0 %368
    %v370 = vsel %vm354, %v295, 0.0
    %371 = vadd.xlane.f32.xlu0 %v370
    %v372 = vpop.xlane.xlu0 %371
    %v373 = vsel %vm354, %v296, 0.0
    %374 = vadd.xlane.f32.xlu0 %v373
    %v375 = vpop.xlane.xlu0 %374
    %v376 = vsel %vm354, %v297, 0.0
    %377 = vadd.xlane.f32.xlu0 %v376
    %v378 = vpop.xlane.xlu0 %377
    %v379 = vsel %vm354, %v298, 0.0
    %380 = vadd.xlane.f32.xlu0 %v379
    %v381 = vpop.xlane.xlu0 %380
    %v382 = vsel %vm354, %v299, 0.0
    %383 = vadd.xlane.f32.xlu0 %v382
    %v384 = vpop.xlane.xlu0 %383
    %v385 = vsel %vm354, %v300, 0.0
    %386 = vadd.xlane.f32.xlu0 %v385
    %v387 = vpop.xlane.xlu0 %386
    %v388 = vsel %vm354, %v301, 0.0
    %389 = vadd.xlane.f32.xlu0 %v388
    %v390 = vpop.xlane.xlu0 %389
    %v391 = vsel %vm354, %v302, 0.0
    %392 = vadd.xlane.f32.xlu0 %v391
    %v393 = vpop.xlane.xlu0 %392
    %v394 = vsel %vm354, %v303, 0.0
    %395 = vadd.xlane.f32.xlu0 %v394
    %v396 = vpop.xlane.xlu0 %395
    %v397 = vsel %vm354, %v304, 0.0
    %398 = vadd.xlane.f32.xlu0 %v397
    %v399 = vpop.xlane.xlu0 %398
    %v400 = vsel %vm354, %v305, 0.0
    %401 = vadd.xlane.f32.xlu0 %v400
    %v402 = vpop.xlane.xlu0 %401
    %v403 = vsel %vm354, %v306, 0.0
    %404 = vadd.xlane.f32.xlu0 %v403
    %v405 = vpop.xlane.xlu0 %404
    %v406 = vsel %vm354, %v307, 0.0
    %407 = vadd.xlane.f32.xlu0 %v406
    %v408 = vpop.xlane.xlu0 %407
    %v409 = vsel %vm354, %v308, 0.0
    %410 = vadd.xlane.f32.xlu0 %v409
    %v411 = vpop.xlane.xlu0 %410
    %v412 = vsel %vm354, %v309, 0.0
    %413 = vadd.xlane.f32.xlu0 %v412
    %v414 = vpop.xlane.xlu0 %413
    %v415 = vsel %vm354, %v310, 0.0
    %416 = vadd.xlane.f32.xlu0 %v415
    %v417 = vpop.xlane.xlu0 %416
    %v418 = vsel %vm354, %v311, 0.0
    %419 = vadd.xlane.f32.xlu0 %v418
    %v420 = vpop.xlane.xlu0 %419
    %v421 = vsel %vm354, %v312, 0.0
    %422 = vadd.xlane.f32.xlu0 %v421
    %v423 = vpop.xlane.xlu0 %422
    %v424 = vsel %vm354, %v313, 0.0
    %425 = vadd.xlane.f32.xlu0 %v424
    %v426 = vpop.xlane.xlu0 %425
    %v427 = vsel %vm354, %v314, 0.0
    %428 = vadd.xlane.f32.xlu0 %v427
    %v429 = vpop.xlane.xlu0 %428
    %v430 = vsel %vm354, %v315, 0.0
    %431 = vadd.xlane.f32.xlu0 %v430
    %v432 = vpop.xlane.xlu0 %431
    %v433 = vsel %vm354, %v316, 0.0
    %434 = vadd.xlane.f32.xlu0 %v433
    %v435 = vpop.xlane.xlu0 %434
    %v436 = vsel %vm354, %v317, 0.0
    %437 = vadd.xlane.f32.xlu0 %v436
    %v438 = vpop.xlane.xlu0 %437
    %v439 = vsel %vm354, %v318, 0.0
    %440 = vadd.xlane.f32.xlu0 %v439
    %v441 = vpop.xlane.xlu0 %440
    %v442 = vsel %vm354, %v319, 0.0
    %443 = vadd.xlane.f32.xlu0 %v442
    %v444 = vpop.xlane.xlu0 %443
    %v445 = vsel %vm354, %v320, 0.0
    %446 = vadd.xlane.f32.xlu0 %v445
    %v447 = vpop.xlane.xlu0 %446
    %v448 = vsel %vm354, %v321, 0.0
    %449 = vadd.xlane.f32.xlu0 %v448
    %v450 = vpop.xlane.xlu0 %449
    %v451 = vsel %vm354, %v322, 0.0
    %452 = vadd.xlane.f32.xlu0 %v451
    %v453 = vpop.xlane.xlu0 %452
    %v454 = vsel %vm354, %v323, 0.0
    %455 = vadd.xlane.f32.xlu0 %v454
    %v456 = vpop.xlane.xlu0 %455
    %v457 = vsel %vm354, %v324, 0.0
    %458 = vadd.xlane.f32.xlu0 %v457
    %v459 = vpop.xlane.xlu0 %458
    %v460 = vsel %vm354, %v325, 0.0
    %461 = vadd.xlane.f32.xlu0 %v460
    %v462 = vpop.xlane.xlu0 %461
    %v463 = vsel %vm354, %v326, 0.0
    %464 = vadd.xlane.f32.xlu0 %v463
    %v465 = vpop.xlane.xlu0 %464
    %v466 = vsel %vm354, %v327, 0.0
    %467 = vadd.xlane.f32.xlu0 %v466
    %v468 = vpop.xlane.xlu0 %467
    %v469 = vsel %vm354, %v328, 0.0
    %470 = vadd.xlane.f32.xlu0 %v469
    %v471 = vpop.xlane.xlu0 %470
    %v472 = vsel %vm354, %v329, 0.0
    %473 = vadd.xlane.f32.xlu0 %v472
    %v474 = vpop.xlane.xlu0 %473
    %v475 = vsel %vm354, %v330, 0.0
    %476 = vadd.xlane.f32.xlu0 %v475
    %v477 = vpop.xlane.xlu0 %476
    %v478 = vsel %vm354, %v331, 0.0
    %479 = vadd.xlane.f32.xlu0 %v478
    %v480 = vpop.xlane.xlu0 %479
    %v481 = vsel %vm354, %v332, 0.0
    %482 = vadd.xlane.f32.xlu0 %v481
    %v483 = vpop.xlane.xlu0 %482
    %v484 = vsel %vm354, %v333, 0.0
    %485 = vadd.xlane.f32.xlu0 %v484
    %v486 = vpop.xlane.xlu0 %485
    %v487 = vsel %vm354, %v334, 0.0
    %488 = vadd.xlane.f32.xlu0 %v487
    %v489 = vpop.xlane.xlu0 %488
    %v490 = vsel %vm354, %v335, 0.0
    %491 = vadd.xlane.f32.xlu0 %v490
    %v492 = vpop.xlane.xlu0 %491
    %v493 = vsel %vm354, %v336, 0.0
    %494 = vadd.xlane.f32.xlu0 %v493
    %v495 = vpop.xlane.xlu0 %494
    %v496 = vsel %vm354, %v337, 0.0
    %497 = vadd.xlane.f32.xlu0 %v496
    %v498 = vpop.xlane.xlu0 %497
    %v499 = vsel %vm354, %v338, 0.0
    %500 = vadd.xlane.f32.xlu0 %v499
    %v501 = vpop.xlane.xlu0 %500
    %v502 = vsel %vm354, %v339, 0.0
    %503 = vadd.xlane.f32.xlu0 %v502
    %v504 = vpop.xlane.xlu0 %503
    %v505 = vsel %vm354, %v340, 0.0
    %506 = vadd.xlane.f32.xlu0 %v505
    %v507 = vpop.xlane.xlu0 %506
    %v508 = vsel %vm354, %v341, 0.0
    %509 = vadd.xlane.f32.xlu0 %v508
    %v510 = vpop.xlane.xlu0 %509
    %v511 = vsel %vm354, %v342, 0.0
    %512 = vadd.xlane.f32.xlu0 %v511
    %v513 = vpop.xlane.xlu0 %512
    %v514 = vsel %vm354, %v343, 0.0
    %515 = vadd.xlane.f32.xlu0 %v514
    %v516 = vpop.xlane.xlu0 %515
    %v517 = vsel %vm354, %v344, 0.0
    %518 = vadd.xlane.f32.xlu0 %v517
    %v519 = vpop.xlane.xlu0 %518
    %v520 = vsel %vm354, %v345, 0.0
    %521 = vadd.xlane.f32.xlu0 %v520
    %v522 = vpop.xlane.xlu0 %521
    %v523 = vsel %vm354, %v346, 0.0
    %524 = vadd.xlane.f32.xlu0 %v523
    %v525 = vpop.xlane.xlu0 %524
    %v526 = vsel %vm354, %v347, 0.0
    %527 = vadd.xlane.f32.xlu0 %v526
    %v528 = vpop.xlane.xlu0 %527
    %v529 = vsel %vm354, %v348, 0.0
    %530 = vadd.xlane.f32.xlu0 %v529
    %v531 = vpop.xlane.xlu0 %530
    %v532 = vsel %vm354, %v349, 0.0
    %533 = vadd.xlane.f32.xlu0 %v532
    %v534 = vpop.xlane.xlu0 %533
    %v535 = vsel %vm354, %v350, 0.0
    %536 = vadd.xlane.f32.xlu0 %v535
    %v537 = vpop.xlane.xlu0 %536
    %v538 = vsel %vm354, %v351, 0.0
    %539 = vadd.xlane.f32.xlu0 %v538
    %v540 = vpop.xlane.xlu0 %539
    %v541 = vsel %vm354, %v352, 0.0
    %542 = vadd.xlane.f32.xlu0 %v541
    %v543 = vpop.xlane.xlu0 %542
    %v544 = vsel %vm354, %v353, 0.0
    %545 = vadd.xlane.f32.xlu0 %v544
    %v546 = vpop.xlane.xlu0 %545
    %v547 = vrcp.pop 32.0
    %v548 = vmul.f32 %v357, %v547
    %v549 = vmul.f32 %v360, %v547
    %v550 = vmul.f32 %v363, %v547
    %v551 = vmul.f32 %v366, %v547
    %v552 = vmul.f32 %v369, %v547
    %v553 = vmul.f32 %v372, %v547
    %v554 = vmul.f32 %v375, %v547
    %v555 = vmul.f32 %v378, %v547
    %v556 = vmul.f32 %v381, %v547
    %v557 = vmul.f32 %v384, %v547
    %v558 = vmul.f32 %v387, %v547
    %v559 = vmul.f32 %v390, %v547
    %v560 = vmul.f32 %v393, %v547
    %v561 = vmul.f32 %v396, %v547
    %v562 = vmul.f32 %v399, %v547
    %v563 = vmul.f32 %v402, %v547
    %v564 = vmul.f32 %v405, %v547
    %v565 = vmul.f32 %v408, %v547
    %v566 = vmul.f32 %v411, %v547
    %v567 = vmul.f32 %v414, %v547
    %v568 = vmul.f32 %v417, %v547
    %v569 = vmul.f32 %v420, %v547
    %v570 = vmul.f32 %v423, %v547
    %v571 = vmul.f32 %v426, %v547
    %v572 = vmul.f32 %v429, %v547
    %v573 = vmul.f32 %v432, %v547
    %v574 = vmul.f32 %v435, %v547
    %v575 = vmul.f32 %v438, %v547
    %v576 = vmul.f32 %v441, %v547
    %v577 = vmul.f32 %v444, %v547
    %v578 = vmul.f32 %v447, %v547
    %v579 = vmul.f32 %v450, %v547
    %v580 = vmul.f32 %v453, %v547
    %v581 = vmul.f32 %v456, %v547
    %v582 = vmul.f32 %v459, %v547
    %v583 = vmul.f32 %v462, %v547
    %v584 = vmul.f32 %v465, %v547
    %v585 = vmul.f32 %v468, %v547
    %v586 = vmul.f32 %v471, %v547
    %v587 = vmul.f32 %v474, %v547
    %v588 = vmul.f32 %v477, %v547
    %v589 = vmul.f32 %v480, %v547
    %v590 = vmul.f32 %v483, %v547
    %v591 = vmul.f32 %v486, %v547
    %v592 = vmul.f32 %v489, %v547
    %v593 = vmul.f32 %v492, %v547
    %v594 = vmul.f32 %v495, %v547
    %v595 = vmul.f32 %v498, %v547
    %v596 = vmul.f32 %v501, %v547
    %v597 = vmul.f32 %v504, %v547
    %v598 = vmul.f32 %v507, %v547
    %v599 = vmul.f32 %v510, %v547
    %v600 = vmul.f32 %v513, %v547
    %v601 = vmul.f32 %v516, %v547
    %v602 = vmul.f32 %v519, %v547
    %v603 = vmul.f32 %v522, %v547
    %v604 = vmul.f32 %v525, %v547
    %v605 = vmul.f32 %v528, %v547
    %v606 = vmul.f32 %v531, %v547
    %v607 = vmul.f32 %v534, %v547
    %v608 = vmul.f32 %v537, %v547
    %v609 = vmul.f32 %v540, %v547
    %v610 = vmul.f32 %v543, %v547
    %v611 = vmul.f32 %v546, %v547
    %v612 = vsub.f32 %v290, %v548
    %v613 = vsub.f32 %v291, %v549
    %v614 = vsub.f32 %v292, %v550
    %v615 = vsub.f32 %v293, %v551
    %v616 = vsub.f32 %v294, %v552
    %v617 = vsub.f32 %v295, %v553
    %v618 = vsub.f32 %v296, %v554
    %v619 = vsub.f32 %v297, %v555
    %v620 = vsub.f32 %v298, %v556
    %v621 = vsub.f32 %v299, %v557
    %v622 = vsub.f32 %v300, %v558
    %v623 = vsub.f32 %v301, %v559
    %v624 = vsub.f32 %v302, %v560
    %v625 = vsub.f32 %v303, %v561
    %v626 = vsub.f32 %v304, %v562
    %v627 = vsub.f32 %v305, %v563
    %v628 = vsub.f32 %v306, %v564
    %v629 = vsub.f32 %v307, %v565
    %v630 = vsub.f32 %v308, %v566
    %v631 = vsub.f32 %v309, %v567
    %v632 = vsub.f32 %v310, %v568
    %v633 = vsub.f32 %v311, %v569
    %v634 = vsub.f32 %v312, %v570
    %v635 = vsub.f32 %v313, %v571
    %v636 = vsub.f32 %v314, %v572
    %v637 = vsub.f32 %v315, %v573
    %v638 = vsub.f32 %v316, %v574
    %v639 = vsub.f32 %v317, %v575
    %v640 = vsub.f32 %v318, %v576
    %v641 = vsub.f32 %v319, %v577
    %v642 = vsub.f32 %v320, %v578
    %v643 = vsub.f32 %v321, %v579
    %v644 = vsub.f32 %v322, %v580
    %v645 = vsub.f32 %v323, %v581
    %v646 = vsub.f32 %v324, %v582
    %v647 = vsub.f32 %v325, %v583
    %v648 = vsub.f32 %v326, %v584
    %v649 = vsub.f32 %v327, %v585
    %v650 = vsub.f32 %v328, %v586
    %v651 = vsub.f32 %v329, %v587
    %v652 = vsub.f32 %v330, %v588
    %v653 = vsub.f32 %v331, %v589
    %v654 = vsub.f32 %v332, %v590
    %v655 = vsub.f32 %v333, %v591
    %v656 = vsub.f32 %v334, %v592
    %v657 = vsub.f32 %v335, %v593
    %v658 = vsub.f32 %v336, %v594
    %v659 = vsub.f32 %v337, %v595
    %v660 = vsub.f32 %v338, %v596
    %v661 = vsub.f32 %v339, %v597
    %v662 = vsub.f32 %v340, %v598
    %v663 = vsub.f32 %v341, %v599
    %v664 = vsub.f32 %v342, %v600
    %v665 = vsub.f32 %v343, %v601
    %v666 = vsub.f32 %v344, %v602
    %v667 = vsub.f32 %v345, %v603
    %v668 = vsub.f32 %v346, %v604
    %v669 = vsub.f32 %v347, %v605
    %v670 = vsub.f32 %v348, %v606
    %v671 = vsub.f32 %v349, %v607
    %v672 = vsub.f32 %v350, %v608
    %v673 = vsub.f32 %v351, %v609
    %v674 = vsub.f32 %v352, %v610
    %v675 = vsub.f32 %v353, %v611
    %v676 = vmul.f32 %v612, %v612
    %v677 = vmul.f32 %v613, %v613
    %v678 = vmul.f32 %v614, %v614
    %v679 = vmul.f32 %v615, %v615
    %v680 = vmul.f32 %v616, %v616
    %v681 = vmul.f32 %v617, %v617
    %v682 = vmul.f32 %v618, %v618
    %v683 = vmul.f32 %v619, %v619
    %v684 = vmul.f32 %v620, %v620
    %v685 = vmul.f32 %v621, %v621
    %v686 = vmul.f32 %v622, %v622
    %v687 = vmul.f32 %v623, %v623
    %v688 = vmul.f32 %v624, %v624
    %v689 = vmul.f32 %v625, %v625
    %v690 = vmul.f32 %v626, %v626
    %v691 = vmul.f32 %v627, %v627
    %v692 = vmul.f32 %v628, %v628
    %v693 = vmul.f32 %v629, %v629
    %v694 = vmul.f32 %v630, %v630
    %v695 = vmul.f32 %v631, %v631
    %v696 = vmul.f32 %v632, %v632
    %v697 = vmul.f32 %v633, %v633
    %v698 = vmul.f32 %v634, %v634
    %v699 = vmul.f32 %v635, %v635
    %v700 = vmul.f32 %v636, %v636
    %v701 = vmul.f32 %v637, %v637
    %v702 = vmul.f32 %v638, %v638
    %v703 = vmul.f32 %v639, %v639
    %v704 = vmul.f32 %v640, %v640
    %v705 = vmul.f32 %v641, %v641
    %v706 = vmul.f32 %v642, %v642
    %v707 = vmul.f32 %v643, %v643
    %v708 = vmul.f32 %v644, %v644
    %v709 = vmul.f32 %v645, %v645
    %v710 = vmul.f32 %v646, %v646
    %v711 = vmul.f32 %v647, %v647
    %v712 = vmul.f32 %v648, %v648
    %v713 = vmul.f32 %v649, %v649
    %v714 = vmul.f32 %v650, %v650
    %v715 = vmul.f32 %v651, %v651
    %v716 = vmul.f32 %v652, %v652
    %v717 = vmul.f32 %v653, %v653
    %v718 = vmul.f32 %v654, %v654
    %v719 = vmul.f32 %v655, %v655
    %v720 = vmul.f32 %v656, %v656
    %v721 = vmul.f32 %v657, %v657
    %v722 = vmul.f32 %v658, %v658
    %v723 = vmul.f32 %v659, %v659
    %v724 = vmul.f32 %v660, %v660
    %v725 = vmul.f32 %v661, %v661
    %v726 = vmul.f32 %v662, %v662
    %v727 = vmul.f32 %v663, %v663
    %v728 = vmul.f32 %v664, %v664
    %v729 = vmul.f32 %v665, %v665
    %v730 = vmul.f32 %v666, %v666
    %v731 = vmul.f32 %v667, %v667
    %v732 = vmul.f32 %v668, %v668
    %v733 = vmul.f32 %v669, %v669
    %v734 = vmul.f32 %v670, %v670
    %v735 = vmul.f32 %v671, %v671
    %v736 = vmul.f32 %v672, %v672
    %v737 = vmul.f32 %v673, %v673
    %v738 = vmul.f32 %v674, %v674
    %v739 = vmul.f32 %v675, %v675
    %v740 = vsel %vm354, %v676, 0.0
    %741 = vadd.xlane.f32.xlu0 %v740
    %v742 = vpop.xlane.xlu0 %741
    %v743 = vsel %vm354, %v677, 0.0
    %744 = vadd.xlane.f32.xlu0 %v743
    %v745 = vpop.xlane.xlu0 %744
    %v746 = vsel %vm354, %v678, 0.0
    %747 = vadd.xlane.f32.xlu0 %v746
    %v748 = vpop.xlane.xlu0 %747
    %v749 = vsel %vm354, %v679, 0.0
    %750 = vadd.xlane.f32.xlu0 %v749
    %v751 = vpop.xlane.xlu0 %750
    %v752 = vsel %vm354, %v680, 0.0
    %753 = vadd.xlane.f32.xlu0 %v752
    %v754 = vpop.xlane.xlu0 %753
    %v755 = vsel %vm354, %v681, 0.0
    %756 = vadd.xlane.f32.xlu0 %v755
    %v757 = vpop.xlane.xlu0 %756
    %v758 = vsel %vm354, %v682, 0.0
    %759 = vadd.xlane.f32.xlu0 %v758
    %v760 = vpop.xlane.xlu0 %759
    %v761 = vsel %vm354, %v683, 0.0
    %762 = vadd.xlane.f32.xlu0 %v761
    %v763 = vpop.xlane.xlu0 %762
    %v764 = vsel %vm354, %v684, 0.0
    %765 = vadd.xlane.f32.xlu0 %v764
    %v766 = vpop.xlane.xlu0 %765
    %v767 = vsel %vm354, %v685, 0.0
    %768 = vadd.xlane.f32.xlu0 %v767
    %v769 = vpop.xlane.xlu0 %768
    %v770 = vsel %vm354, %v686, 0.0
    %771 = vadd.xlane.f32.xlu0 %v770
    %v772 = vpop.xlane.xlu0 %771
    %v773 = vsel %vm354, %v687, 0.0
    %774 = vadd.xlane.f32.xlu0 %v773
    %v775 = vpop.xlane.xlu0 %774
    %v776 = vsel %vm354, %v688, 0.0
    %777 = vadd.xlane.f32.xlu0 %v776
    %v778 = vpop.xlane.xlu0 %777
    %v779 = vsel %vm354, %v689, 0.0
    %780 = vadd.xlane.f32.xlu0 %v779
    %v781 = vpop.xlane.xlu0 %780
    %v782 = vsel %vm354, %v690, 0.0
    %783 = vadd.xlane.f32.xlu0 %v782
    %v784 = vpop.xlane.xlu0 %783
    %v785 = vsel %vm354, %v691, 0.0
    %786 = vadd.xlane.f32.xlu0 %v785
    %v787 = vpop.xlane.xlu0 %786
    %v788 = vsel %vm354, %v692, 0.0
    %789 = vadd.xlane.f32.xlu0 %v788
    %v790 = vpop.xlane.xlu0 %789
    %v791 = vsel %vm354, %v693, 0.0
    %792 = vadd.xlane.f32.xlu0 %v791
    %v793 = vpop.xlane.xlu0 %792
    %v794 = vsel %vm354, %v694, 0.0
    %795 = vadd.xlane.f32.xlu0 %v794
    %v796 = vpop.xlane.xlu0 %795
    %v797 = vsel %vm354, %v695, 0.0
    %798 = vadd.xlane.f32.xlu0 %v797
    %v799 = vpop.xlane.xlu0 %798
    %v800 = vsel %vm354, %v696, 0.0
    %801 = vadd.xlane.f32.xlu0 %v800
    %v802 = vpop.xlane.xlu0 %801
    %v803 = vsel %vm354, %v697, 0.0
    %804 = vadd.xlane.f32.xlu0 %v803
    %v805 = vpop.xlane.xlu0 %804
    %v806 = vsel %vm354, %v698, 0.0
    %807 = vadd.xlane.f32.xlu0 %v806
    %v808 = vpop.xlane.xlu0 %807
    %v809 = vsel %vm354, %v699, 0.0
    %810 = vadd.xlane.f32.xlu0 %v809
    %v811 = vpop.xlane.xlu0 %810
    %v812 = vsel %vm354, %v700, 0.0
    %813 = vadd.xlane.f32.xlu0 %v812
    %v814 = vpop.xlane.xlu0 %813
    %v815 = vsel %vm354, %v701, 0.0
    %816 = vadd.xlane.f32.xlu0 %v815
    %v817 = vpop.xlane.xlu0 %816
    %v818 = vsel %vm354, %v702, 0.0
    %819 = vadd.xlane.f32.xlu0 %v818
    %v820 = vpop.xlane.xlu0 %819
    %v821 = vsel %vm354, %v703, 0.0
    %822 = vadd.xlane.f32.xlu0 %v821
    %v823 = vpop.xlane.xlu0 %822
    %v824 = vsel %vm354, %v704, 0.0
    %825 = vadd.xlane.f32.xlu0 %v824
    %v826 = vpop.xlane.xlu0 %825
    %v827 = vsel %vm354, %v705, 0.0
    %828 = vadd.xlane.f32.xlu0 %v827
    %v829 = vpop.xlane.xlu0 %828
    %v830 = vsel %vm354, %v706, 0.0
    %831 = vadd.xlane.f32.xlu0 %v830
    %v832 = vpop.xlane.xlu0 %831
    %v833 = vsel %vm354, %v707, 0.0
    %834 = vadd.xlane.f32.xlu0 %v833
    %v835 = vpop.xlane.xlu0 %834
    %v836 = vsel %vm354, %v708, 0.0
    %837 = vadd.xlane.f32.xlu0 %v836
    %v838 = vpop.xlane.xlu0 %837
    %v839 = vsel %vm354, %v709, 0.0
    %840 = vadd.xlane.f32.xlu0 %v839
    %v841 = vpop.xlane.xlu0 %840
    %v842 = vsel %vm354, %v710, 0.0
    %843 = vadd.xlane.f32.xlu0 %v842
    %v844 = vpop.xlane.xlu0 %843
    %v845 = vsel %vm354, %v711, 0.0
    %846 = vadd.xlane.f32.xlu0 %v845
    %v847 = vpop.xlane.xlu0 %846
    %v848 = vsel %vm354, %v712, 0.0
    %849 = vadd.xlane.f32.xlu0 %v848
    %v850 = vpop.xlane.xlu0 %849
    %v851 = vsel %vm354, %v713, 0.0
    %852 = vadd.xlane.f32.xlu0 %v851
    %v853 = vpop.xlane.xlu0 %852
    %v854 = vsel %vm354, %v714, 0.0
    %855 = vadd.xlane.f32.xlu0 %v854
    %v856 = vpop.xlane.xlu0 %855
    %v857 = vsel %vm354, %v715, 0.0
    %858 = vadd.xlane.f32.xlu0 %v857
    %v859 = vpop.xlane.xlu0 %858
    %v860 = vsel %vm354, %v716, 0.0
    %861 = vadd.xlane.f32.xlu0 %v860
    %v862 = vpop.xlane.xlu0 %861
    %v863 = vsel %vm354, %v717, 0.0
    %864 = vadd.xlane.f32.xlu0 %v863
    %v865 = vpop.xlane.xlu0 %864
    %v866 = vsel %vm354, %v718, 0.0
    %867 = vadd.xlane.f32.xlu0 %v866
    %v868 = vpop.xlane.xlu0 %867
    %v869 = vsel %vm354, %v719, 0.0
    %870 = vadd.xlane.f32.xlu0 %v869
    %v871 = vpop.xlane.xlu0 %870
    %v872 = vsel %vm354, %v720, 0.0
    %873 = vadd.xlane.f32.xlu0 %v872
    %v874 = vpop.xlane.xlu0 %873
    %v875 = vsel %vm354, %v721, 0.0
    %876 = vadd.xlane.f32.xlu0 %v875
    %v877 = vpop.xlane.xlu0 %876
    %v878 = vsel %vm354, %v722, 0.0
    %879 = vadd.xlane.f32.xlu0 %v878
    %v880 = vpop.xlane.xlu0 %879
    %v881 = vsel %vm354, %v723, 0.0
    %882 = vadd.xlane.f32.xlu0 %v881
    %v883 = vpop.xlane.xlu0 %882
    %v884 = vsel %vm354, %v724, 0.0
    %885 = vadd.xlane.f32.xlu0 %v884
    %v886 = vpop.xlane.xlu0 %885
    %v887 = vsel %vm354, %v725, 0.0
    %888 = vadd.xlane.f32.xlu0 %v887
    %v889 = vpop.xlane.xlu0 %888
    %v890 = vsel %vm354, %v726, 0.0
    %891 = vadd.xlane.f32.xlu0 %v890
    %v892 = vpop.xlane.xlu0 %891
    %v893 = vsel %vm354, %v727, 0.0
    %894 = vadd.xlane.f32.xlu0 %v893
    %v895 = vpop.xlane.xlu0 %894
    %v896 = vsel %vm354, %v728, 0.0
    %897 = vadd.xlane.f32.xlu0 %v896
    %v898 = vpop.xlane.xlu0 %897
    %v899 = vsel %vm354, %v729, 0.0
    %900 = vadd.xlane.f32.xlu0 %v899
    %v901 = vpop.xlane.xlu0 %900
    %v902 = vsel %vm354, %v730, 0.0
    %903 = vadd.xlane.f32.xlu0 %v902
    %v904 = vpop.xlane.xlu0 %903
    %v905 = vsel %vm354, %v731, 0.0
    %906 = vadd.xlane.f32.xlu0 %v905
    %v907 = vpop.xlane.xlu0 %906
    %v908 = vsel %vm354, %v732, 0.0
    %909 = vadd.xlane.f32.xlu0 %v908
    %v910 = vpop.xlane.xlu0 %909
    %v911 = vsel %vm354, %v733, 0.0
    %912 = vadd.xlane.f32.xlu0 %v911
    %v913 = vpop.xlane.xlu0 %912
    %v914 = vsel %vm354, %v734, 0.0
    %915 = vadd.xlane.f32.xlu0 %v914
    %v916 = vpop.xlane.xlu0 %915
    %v917 = vsel %vm354, %v735, 0.0
    %918 = vadd.xlane.f32.xlu0 %v917
    %v919 = vpop.xlane.xlu0 %918
    %v920 = vsel %vm354, %v736, 0.0
    %921 = vadd.xlane.f32.xlu0 %v920
    %v922 = vpop.xlane.xlu0 %921
    %v923 = vsel %vm354, %v737, 0.0
    %924 = vadd.xlane.f32.xlu0 %v923
    %v925 = vpop.xlane.xlu0 %924
    %v926 = vsel %vm354, %v738, 0.0
    %927 = vadd.xlane.f32.xlu0 %v926
    %v928 = vpop.xlane.xlu0 %927
    %v929 = vsel %vm354, %v739, 0.0
    %930 = vadd.xlane.f32.xlu0 %v929
    %v931 = vpop.xlane.xlu0 %930
    %v932 = vmul.f32 %v742, %v547
    %v933 = vmul.f32 %v745, %v547
    %v934 = vmul.f32 %v748, %v547
    %v935 = vmul.f32 %v751, %v547
    %v936 = vmul.f32 %v754, %v547
    %v937 = vmul.f32 %v757, %v547
    %v938 = vmul.f32 %v760, %v547
    %v939 = vmul.f32 %v763, %v547
    %v940 = vmul.f32 %v766, %v547
    %v941 = vmul.f32 %v769, %v547
    %v942 = vmul.f32 %v772, %v547
    %v943 = vmul.f32 %v775, %v547
    %v944 = vmul.f32 %v778, %v547
    %v945 = vmul.f32 %v781, %v547
    %v946 = vmul.f32 %v784, %v547
    %v947 = vmul.f32 %v787, %v547
    %v948 = vmul.f32 %v790, %v547
    %v949 = vmul.f32 %v793, %v547
    %v950 = vmul.f32 %v796, %v547
    %v951 = vmul.f32 %v799, %v547
    %v952 = vmul.f32 %v802, %v547
    %v953 = vmul.f32 %v805, %v547
    %v954 = vmul.f32 %v808, %v547
    %v955 = vmul.f32 %v811, %v547
    %v956 = vmul.f32 %v814, %v547
    %v957 = vmul.f32 %v817, %v547
    %v958 = vmul.f32 %v820, %v547
    %v959 = vmul.f32 %v823, %v547
    %v960 = vmul.f32 %v826, %v547
    %v961 = vmul.f32 %v829, %v547
    %v962 = vmul.f32 %v832, %v547
    %v963 = vmul.f32 %v835, %v547
    %v964 = vmul.f32 %v838, %v547
    %v965 = vmul.f32 %v841, %v547
    %v966 = vmul.f32 %v844, %v547
    %v967 = vmul.f32 %v847, %v547
    %v968 = vmul.f32 %v850, %v547
    %v969 = vmul.f32 %v853, %v547
    %v970 = vmul.f32 %v856, %v547
    %v971 = vmul.f32 %v859, %v547
    %v972 = vmul.f32 %v862, %v547
    %v973 = vmul.f32 %v865, %v547
    %v974 = vmul.f32 %v868, %v547
    %v975 = vmul.f32 %v871, %v547
    %v976 = vmul.f32 %v874, %v547
    %v977 = vmul.f32 %v877, %v547
    %v978 = vmul.f32 %v880, %v547
    %v979 = vmul.f32 %v883, %v547
    %v980 = vmul.f32 %v886, %v547
    %v981 = vmul.f32 %v889, %v547
    %v982 = vmul.f32 %v892, %v547
    %v983 = vmul.f32 %v895, %v547
    %v984 = vmul.f32 %v898, %v547
    %v985 = vmul.f32 %v901, %v547
    %v986 = vmul.f32 %v904, %v547
    %v987 = vmul.f32 %v907, %v547
    %v988 = vmul.f32 %v910, %v547
    %v989 = vmul.f32 %v913, %v547
    %v990 = vmul.f32 %v916, %v547
    %v991 = vmul.f32 %v919, %v547
    %v992 = vmul.f32 %v922, %v547
    %v993 = vmul.f32 %v925, %v547
    %v994 = vmul.f32 %v928, %v547
    %v995 = vmul.f32 %v931, %v547
    %v996 = vadd.f32 %v932, 1e-05
    %v997 = vadd.f32 %v933, 1e-05
    %v998 = vadd.f32 %v934, 1e-05
    %v999 = vadd.f32 %v935, 1e-05
    %v1000 = vadd.f32 %v936, 1e-05
    %v1001 = vadd.f32 %v937, 1e-05
    %v1002 = vadd.f32 %v938, 1e-05
    %v1003 = vadd.f32 %v939, 1e-05
    %v1004 = vadd.f32 %v940, 1e-05
    %v1005 = vadd.f32 %v941, 1e-05
    %v1006 = vadd.f32 %v942, 1e-05
    %v1007 = vadd.f32 %v943, 1e-05
    %v1008 = vadd.f32 %v944, 1e-05
    %v1009 = vadd.f32 %v945, 1e-05
    %v1010 = vadd.f32 %v946, 1e-05
    %v1011 = vadd.f32 %v947, 1e-05
    %v1012 = vadd.f32 %v948, 1e-05
    %v1013 = vadd.f32 %v949, 1e-05
    %v1014 = vadd.f32 %v950, 1e-05
    %v1015 = vadd.f32 %v951, 1e-05
    %v1016 = vadd.f32 %v952, 1e-05
    %v1017 = vadd.f32 %v953, 1e-05
    %v1018 = vadd.f32 %v954, 1e-05
    %v1019 = vadd.f32 %v955, 1e-05
    %v1020 = vadd.f32 %v956, 1e-05
    %v1021 = vadd.f32 %v957, 1e-05
    %v1022 = vadd.f32 %v958, 1e-05
    %v1023 = vadd.f32 %v959, 1e-05
    %v1024 = vadd.f32 %v960, 1e-05
    %v1025 = vadd.f32 %v961, 1e-05
    %v1026 = vadd.f32 %v962, 1e-05
    %v1027 = vadd.f32 %v963, 1e-05
    %v1028 = vadd.f32 %v964, 1e-05
    %v1029 = vadd.f32 %v965, 1e-05
    %v1030 = vadd.f32 %v966, 1e-05
    %v1031 = vadd.f32 %v967, 1e-05
    %v1032 = vadd.f32 %v968, 1e-05
    %v1033 = vadd.f32 %v969, 1e-05
    %v1034 = vadd.f32 %v970, 1e-05
    %v1035 = vadd.f32 %v971, 1e-05
    %v1036 = vadd.f32 %v972, 1e-05
    %v1037 = vadd.f32 %v973, 1e-05
    %v1038 = vadd.f32 %v974, 1e-05
    %v1039 = vadd.f32 %v975, 1e-05
    %v1040 = vadd.f32 %v976, 1e-05
    %v1041 = vadd.f32 %v977, 1e-05
    %v1042 = vadd.f32 %v978, 1e-05
    %v1043 = vadd.f32 %v979, 1e-05
    %v1044 = vadd.f32 %v980, 1e-05
    %v1045 = vadd.f32 %v981, 1e-05
    %v1046 = vadd.f32 %v982, 1e-05
    %v1047 = vadd.f32 %v983, 1e-05
    %v1048 = vadd.f32 %v984, 1e-05
    %v1049 = vadd.f32 %v985, 1e-05
    %v1050 = vadd.f32 %v986, 1e-05
    %v1051 = vadd.f32 %v987, 1e-05
    %v1052 = vadd.f32 %v988, 1e-05
    %v1053 = vadd.f32 %v989, 1e-05
    %v1054 = vadd.f32 %v990, 1e-05
    %v1055 = vadd.f32 %v991, 1e-05
    %v1056 = vadd.f32 %v992, 1e-05
    %v1057 = vadd.f32 %v993, 1e-05
    %v1058 = vadd.f32 %v994, 1e-05
    %v1059 = vadd.f32 %v995, 1e-05
    %v1060 = vrsqrt.pop %v996
    %v1061 = vrsqrt.pop %v997
    %v1062 = vrsqrt.pop %v998
    %v1063 = vrsqrt.pop %v999
    %v1064 = vrsqrt.pop %v1000
    %v1065 = vrsqrt.pop %v1001
    %v1066 = vrsqrt.pop %v1002
    %v1067 = vrsqrt.pop %v1003
    %v1068 = vrsqrt.pop %v1004
    %v1069 = vrsqrt.pop %v1005
    %v1070 = vrsqrt.pop %v1006
    %v1071 = vrsqrt.pop %v1007
    %v1072 = vrsqrt.pop %v1008
    %v1073 = vrsqrt.pop %v1009
    %v1074 = vrsqrt.pop %v1010
    %v1075 = vrsqrt.pop %v1011
    %v1076 = vrsqrt.pop %v1012
    %v1077 = vrsqrt.pop %v1013
    %v1078 = vrsqrt.pop %v1014
    %v1079 = vrsqrt.pop %v1015
    %v1080 = vrsqrt.pop %v1016
    %v1081 = vrsqrt.pop %v1017
    %v1082 = vrsqrt.pop %v1018
    %v1083 = vrsqrt.pop %v1019
    %v1084 = vrsqrt.pop %v1020
    %v1085 = vrsqrt.pop %v1021
    %v1086 = vrsqrt.pop %v1022
    %v1087 = vrsqrt.pop %v1023
    %v1088 = vrsqrt.pop %v1024
    %v1089 = vrsqrt.pop %v1025
    %v1090 = vrsqrt.pop %v1026
    %v1091 = vrsqrt.pop %v1027
    %v1092 = vrsqrt.pop %v1028
    %v1093 = vrsqrt.pop %v1029
    %v1094 = vrsqrt.pop %v1030
    %v1095 = vrsqrt.pop %v1031
    %v1096 = vrsqrt.pop %v1032
    %v1097 = vrsqrt.pop %v1033
    %v1098 = vrsqrt.pop %v1034
    %v1099 = vrsqrt.pop %v1035
    %v1100 = vrsqrt.pop %v1036
    %v1101 = vrsqrt.pop %v1037
    %v1102 = vrsqrt.pop %v1038
    %v1103 = vrsqrt.pop %v1039
    %v1104 = vrsqrt.pop %v1040
    %v1105 = vrsqrt.pop %v1041
    %v1106 = vrsqrt.pop %v1042
    %v1107 = vrsqrt.pop %v1043
    %v1108 = vrsqrt.pop %v1044
    %v1109 = vrsqrt.pop %v1045
    %v1110 = vrsqrt.pop %v1046
    %v1111 = vrsqrt.pop %v1047
    %v1112 = vrsqrt.pop %v1048
    %v1113 = vrsqrt.pop %v1049
    %v1114 = vrsqrt.pop %v1050
    %v1115 = vrsqrt.pop %v1051
    %v1116 = vrsqrt.pop %v1052
    %v1117 = vrsqrt.pop %v1053
    %v1118 = vrsqrt.pop %v1054
    %v1119 = vrsqrt.pop %v1055
    %v1120 = vrsqrt.pop %v1056
    %v1121 = vrsqrt.pop %v1057
    %v1122 = vrsqrt.pop %v1058
    %v1123 = vrsqrt.pop %v1059
    %v1124 = vmul.f32 %v612, %v1060
    %v1125 = vmul.f32 %v613, %v1061
    %v1126 = vmul.f32 %v614, %v1062
    %v1127 = vmul.f32 %v615, %v1063
    %v1128 = vmul.f32 %v616, %v1064
    %v1129 = vmul.f32 %v617, %v1065
    %v1130 = vmul.f32 %v618, %v1066
    %v1131 = vmul.f32 %v619, %v1067
    %v1132 = vmul.f32 %v620, %v1068
    %v1133 = vmul.f32 %v621, %v1069
    %v1134 = vmul.f32 %v622, %v1070
    %v1135 = vmul.f32 %v623, %v1071
    %v1136 = vmul.f32 %v624, %v1072
    %v1137 = vmul.f32 %v625, %v1073
    %v1138 = vmul.f32 %v626, %v1074
    %v1139 = vmul.f32 %v627, %v1075
    %v1140 = vmul.f32 %v628, %v1076
    %v1141 = vmul.f32 %v629, %v1077
    %v1142 = vmul.f32 %v630, %v1078
    %v1143 = vmul.f32 %v631, %v1079
    %v1144 = vmul.f32 %v632, %v1080
    %v1145 = vmul.f32 %v633, %v1081
    %v1146 = vmul.f32 %v634, %v1082
    %v1147 = vmul.f32 %v635, %v1083
    %v1148 = vmul.f32 %v636, %v1084
    %v1149 = vmul.f32 %v637, %v1085
    %v1150 = vmul.f32 %v638, %v1086
    %v1151 = vmul.f32 %v639, %v1087
    %v1152 = vmul.f32 %v640, %v1088
    %v1153 = vmul.f32 %v641, %v1089
    %v1154 = vmul.f32 %v642, %v1090
    %v1155 = vmul.f32 %v643, %v1091
    %v1156 = vmul.f32 %v644, %v1092
    %v1157 = vmul.f32 %v645, %v1093
    %v1158 = vmul.f32 %v646, %v1094
    %v1159 = vmul.f32 %v647, %v1095
    %v1160 = vmul.f32 %v648, %v1096
    %v1161 = vmul.f32 %v649, %v1097
    %v1162 = vmul.f32 %v650, %v1098
    %v1163 = vmul.f32 %v651, %v1099
    %v1164 = vmul.f32 %v652, %v1100
    %v1165 = vmul.f32 %v653, %v1101
    %v1166 = vmul.f32 %v654, %v1102
    %v1167 = vmul.f32 %v655, %v1103
    %v1168 = vmul.f32 %v656, %v1104
    %v1169 = vmul.f32 %v657, %v1105
    %v1170 = vmul.f32 %v658, %v1106
    %v1171 = vmul.f32 %v659, %v1107
    %v1172 = vmul.f32 %v660, %v1108
    %v1173 = vmul.f32 %v661, %v1109
    %v1174 = vmul.f32 %v662, %v1110
    %v1175 = vmul.f32 %v663, %v1111
    %v1176 = vmul.f32 %v664, %v1112
    %v1177 = vmul.f32 %v665, %v1113
    %v1178 = vmul.f32 %v666, %v1114
    %v1179 = vmul.f32 %v667, %v1115
    %v1180 = vmul.f32 %v668, %v1116
    %v1181 = vmul.f32 %v669, %v1117
    %v1182 = vmul.f32 %v670, %v1118
    %v1183 = vmul.f32 %v671, %v1119
    %v1184 = vmul.f32 %v672, %v1120
    %v1185 = vmul.f32 %v673, %v1121
    %v1186 = vmul.f32 %v674, %v1122
    %v1187 = vmul.f32 %v675, %v1123
    %v1188 = vld [vmem:[%s3] sm:$0x1]
    %v1190 = vlaneseq
    %v1191 = vshrl.u32 %v1190, 7
    %v1192 = vsub.s32 0, %v1191
    %v1193 = vrot.slane %v1188, %v1192
    %v1195 = vmul.f32 %v1124, %v1193
    %v1196 = vmul.f32 %v1125, %v1193
    %v1197 = vmul.f32 %v1126, %v1193
    %v1198 = vmul.f32 %v1127, %v1193
    %v1199 = vmul.f32 %v1128, %v1193
    %v1200 = vmul.f32 %v1129, %v1193
    %v1201 = vmul.f32 %v1130, %v1193
    %v1202 = vmul.f32 %v1131, %v1193
    %v1203 = vmul.f32 %v1132, %v1193
    %v1204 = vmul.f32 %v1133, %v1193
    %v1205 = vmul.f32 %v1134, %v1193
    %v1206 = vmul.f32 %v1135, %v1193
    %v1207 = vmul.f32 %v1136, %v1193
    %v1208 = vmul.f32 %v1137, %v1193
    %v1209 = vmul.f32 %v1138, %v1193
    %v1210 = vmul.f32 %v1139, %v1193
    %v1211 = vmul.f32 %v1140, %v1193
    %v1212 = vmul.f32 %v1141, %v1193
    %v1213 = vmul.f32 %v1142, %v1193
    %v1214 = vmul.f32 %v1143, %v1193
    %v1215 = vmul.f32 %v1144, %v1193
    %v1216 = vmul.f32 %v1145, %v1193
    %v1217 = vmul.f32 %v1146, %v1193
    %v1218 = vmul.f32 %v1147, %v1193
    %v1219 = vmul.f32 %v1148, %v1193
    %v1220 = vmul.f32 %v1149, %v1193
    %v1221 = vmul.f32 %v1150, %v1193
    %v1222 = vmul.f32 %v1151, %v1193
    %v1223 = vmul.f32 %v1152, %v1193
    %v1224 = vmul.f32 %v1153, %v1193
    %v1225 = vmul.f32 %v1154, %v1193
    %v1226 = vmul.f32 %v1155, %v1193
    %v1227 = vmul.f32 %v1156, %v1193
    %v1228 = vmul.f32 %v1157, %v1193
    %v1229 = vmul.f32 %v1158, %v1193
    %v1230 = vmul.f32 %v1159, %v1193
    %v1231 = vmul.f32 %v1160, %v1193
    %v1232 = vmul.f32 %v1161, %v1193
    %v1233 = vmul.f32 %v1162, %v1193
    %v1234 = vmul.f32 %v1163, %v1193
    %v1235 = vmul.f32 %v1164, %v1193
    %v1236 = vmul.f32 %v1165, %v1193
    %v1237 = vmul.f32 %v1166, %v1193
    %v1238 = vmul.f32 %v1167, %v1193
    %v1239 = vmul.f32 %v1168, %v1193
    %v1240 = vmul.f32 %v1169, %v1193
    %v1241 = vmul.f32 %v1170, %v1193
    %v1242 = vmul.f32 %v1171, %v1193
    %v1243 = vmul.f32 %v1172, %v1193
    %v1244 = vmul.f32 %v1173, %v1193
    %v1245 = vmul.f32 %v1174, %v1193
    %v1246 = vmul.f32 %v1175, %v1193
    %v1247 = vmul.f32 %v1176, %v1193
    %v1248 = vmul.f32 %v1177, %v1193
    %v1249 = vmul.f32 %v1178, %v1193
    %v1250 = vmul.f32 %v1179, %v1193
    %v1251 = vmul.f32 %v1180, %v1193
    %v1252 = vmul.f32 %v1181, %v1193
    %v1253 = vmul.f32 %v1182, %v1193
    %v1254 = vmul.f32 %v1183, %v1193
    %v1255 = vmul.f32 %v1184, %v1193
    %v1256 = vmul.f32 %v1185, %v1193
    %v1257 = vmul.f32 %v1186, %v1193
    %v1258 = vmul.f32 %v1187, %v1193
    %v1259 = vld [vmem:[%s4] sm:$0x1]
    %v1261 = vlaneseq
    %v1262 = vshrl.u32 %v1261, 7
    %v1263 = vsub.s32 0, %v1262
    %v1264 = vrot.slane %v1259, %v1263
    %v1266 = vadd.f32 %v1195, %v1264
    %v1267 = vadd.f32 %v1196, %v1264
    %v1268 = vadd.f32 %v1197, %v1264
    %v1269 = vadd.f32 %v1198, %v1264
    %v1270 = vadd.f32 %v1199, %v1264
    %v1271 = vadd.f32 %v1200, %v1264
    %v1272 = vadd.f32 %v1201, %v1264
    %v1273 = vadd.f32 %v1202, %v1264
    %v1274 = vadd.f32 %v1203, %v1264
    %v1275 = vadd.f32 %v1204, %v1264
    %v1276 = vadd.f32 %v1205, %v1264
    %v1277 = vadd.f32 %v1206, %v1264
    %v1278 = vadd.f32 %v1207, %v1264
    %v1279 = vadd.f32 %v1208, %v1264
    %v1280 = vadd.f32 %v1209, %v1264
    %v1281 = vadd.f32 %v1210, %v1264
    %v1282 = vadd.f32 %v1211, %v1264
    %v1283 = vadd.f32 %v1212, %v1264
    %v1284 = vadd.f32 %v1213, %v1264
    %v1285 = vadd.f32 %v1214, %v1264
    %v1286 = vadd.f32 %v1215, %v1264
    %v1287 = vadd.f32 %v1216, %v1264
    %v1288 = vadd.f32 %v1217, %v1264
    %v1289 = vadd.f32 %v1218, %v1264
    %v1290 = vadd.f32 %v1219, %v1264
    %v1291 = vadd.f32 %v1220, %v1264
    %v1292 = vadd.f32 %v1221, %v1264
    %v1293 = vadd.f32 %v1222, %v1264
    %v1294 = vadd.f32 %v1223, %v1264
    %v1295 = vadd.f32 %v1224, %v1264
    %v1296 = vadd.f32 %v1225, %v1264
    %v1297 = vadd.f32 %v1226, %v1264
    %v1298 = vadd.f32 %v1227, %v1264
    %v1299 = vadd.f32 %v1228, %v1264
    %v1300 = vadd.f32 %v1229, %v1264
    %v1301 = vadd.f32 %v1230, %v1264
    %v1302 = vadd.f32 %v1231, %v1264
    %v1303 = vadd.f32 %v1232, %v1264
    %v1304 = vadd.f32 %v1233, %v1264
    %v1305 = vadd.f32 %v1234, %v1264
    %v1306 = vadd.f32 %v1235, %v1264
    %v1307 = vadd.f32 %v1236, %v1264
    %v1308 = vadd.f32 %v1237, %v1264
    %v1309 = vadd.f32 %v1238, %v1264
    %v1310 = vadd.f32 %v1239, %v1264
    %v1311 = vadd.f32 %v1240, %v1264
    %v1312 = vadd.f32 %v1241, %v1264
    %v1313 = vadd.f32 %v1242, %v1264
    %v1314 = vadd.f32 %v1243, %v1264
    %v1315 = vadd.f32 %v1244, %v1264
    %v1316 = vadd.f32 %v1245, %v1264
    %v1317 = vadd.f32 %v1246, %v1264
    %v1318 = vadd.f32 %v1247, %v1264
    %v1319 = vadd.f32 %v1248, %v1264
    %v1320 = vadd.f32 %v1249, %v1264
    %v1321 = vadd.f32 %v1250, %v1264
    %v1322 = vadd.f32 %v1251, %v1264
    %v1323 = vadd.f32 %v1252, %v1264
    %v1324 = vadd.f32 %v1253, %v1264
    %v1325 = vadd.f32 %v1254, %v1264
    %v1326 = vadd.f32 %v1255, %v1264
    %v1327 = vadd.f32 %v1256, %v1264
    %v1328 = vadd.f32 %v1257, %v1264
    %v1329 = vadd.f32 %v1258, %v1264
    %v1330 = vld [vmem:[%s83] sm:$0xff]
    %v1331 = vld [vmem:[%s83 + $0x8] sm:$0xff]
    %v1332 = vld [vmem:[%s83 + $0x10] sm:$0xff]
    %v1333 = vld [vmem:[%s83 + $0x18] sm:$0xff]
    %v1334 = vld [vmem:[%s83 + $0x20] sm:$0xff]
    %v1335 = vld [vmem:[%s83 + $0x28] sm:$0xff]
    %v1336 = vld [vmem:[%s83 + $0x30] sm:$0xff]
    %v1337 = vld [vmem:[%s83 + $0x38] sm:$0xff]
    %v1338 = vld [vmem:[%s83 + $0x40] sm:$0xff]
    %v1339 = vld [vmem:[%s83 + $0x48] sm:$0xff]
    %v1340 = vld [vmem:[%s83 + $0x50] sm:$0xff]
    %v1341 = vld [vmem:[%s83 + $0x58] sm:$0xff]
    %v1342 = vld [vmem:[%s83 + $0x60] sm:$0xff]
    %v1343 = vld [vmem:[%s83 + $0x68] sm:$0xff]
    %v1344 = vld [vmem:[%s83 + $0x70] sm:$0xff]
    %v1345 = vld [vmem:[%s83 + $0x78] sm:$0xff]
    %v1346 = vld [vmem:[%s83 + $0x80] sm:$0xff]
    %v1347 = vld [vmem:[%s83 + $0x88] sm:$0xff]
    %v1348 = vld [vmem:[%s83 + $0x90] sm:$0xff]
    %v1349 = vld [vmem:[%s83 + $0x98] sm:$0xff]
    %v1350 = vld [vmem:[%s83 + $0xa0] sm:$0xff]
    %v1351 = vld [vmem:[%s83 + $0xa8] sm:$0xff]
    %v1352 = vld [vmem:[%s83 + $0xb0] sm:$0xff]
    %v1353 = vld [vmem:[%s83 + $0xb8] sm:$0xff]
    %v1354 = vld [vmem:[%s83 + $0xc0] sm:$0xff]
    %v1355 = vld [vmem:[%s83 + $0xc8] sm:$0xff]
    %v1356 = vld [vmem:[%s83 + $0xd0] sm:$0xff]
    %v1357 = vld [vmem:[%s83 + $0xd8] sm:$0xff]
    %v1358 = vld [vmem:[%s83 + $0xe0] sm:$0xff]
    %v1359 = vld [vmem:[%s83 + $0xe8] sm:$0xff]
    %v1360 = vld [vmem:[%s83 + $0xf0] sm:$0xff]
    %v1361 = vld [vmem:[%s83 + $0xf8] sm:$0xff]
    %v1362 = vld [vmem:[%s83 + $0x100] sm:$0xff]
    %v1363 = vld [vmem:[%s83 + $0x108] sm:$0xff]
    %v1364 = vld [vmem:[%s83 + $0x110] sm:$0xff]
    %v1365 = vld [vmem:[%s83 + $0x118] sm:$0xff]
    %v1366 = vld [vmem:[%s83 + $0x120] sm:$0xff]
    %v1367 = vld [vmem:[%s83 + $0x128] sm:$0xff]
    %v1368 = vld [vmem:[%s83 + $0x130] sm:$0xff]
    %v1369 = vld [vmem:[%s83 + $0x138] sm:$0xff]
    %v1370 = vld [vmem:[%s83 + $0x140] sm:$0xff]
    %v1371 = vld [vmem:[%s83 + $0x148] sm:$0xff]
    %v1372 = vld [vmem:[%s83 + $0x150] sm:$0xff]
    %v1373 = vld [vmem:[%s83 + $0x158] sm:$0xff]
    %v1374 = vld [vmem:[%s83 + $0x160] sm:$0xff]
    %v1375 = vld [vmem:[%s83 + $0x168] sm:$0xff]
    %v1376 = vld [vmem:[%s83 + $0x170] sm:$0xff]
    %v1377 = vld [vmem:[%s83 + $0x178] sm:$0xff]
    %v1378 = vld [vmem:[%s83 + $0x180] sm:$0xff]
    %v1379 = vld [vmem:[%s83 + $0x188] sm:$0xff]
    %v1380 = vld [vmem:[%s83 + $0x190] sm:$0xff]
    %v1381 = vld [vmem:[%s83 + $0x198] sm:$0xff]
    %v1382 = vld [vmem:[%s83 + $0x1a0] sm:$0xff]
    %v1383 = vld [vmem:[%s83 + $0x1a8] sm:$0xff]
    %v1384 = vld [vmem:[%s83 + $0x1b0] sm:$0xff]
    %v1385 = vld [vmem:[%s83 + $0x1b8] sm:$0xff]
    %v1386 = vld [vmem:[%s83 + $0x1c0] sm:$0xff]
    %v1387 = vld [vmem:[%s83 + $0x1c8] sm:$0xff]
    %v1388 = vld [vmem:[%s83 + $0x1d0] sm:$0xff]
    %v1389 = vld [vmem:[%s83 + $0x1d8] sm:$0xff]
    %v1390 = vld [vmem:[%s83 + $0x1e0] sm:$0xff]
    %v1391 = vld [vmem:[%s83 + $0x1e8] sm:$0xff]
    %v1392 = vld [vmem:[%s83 + $0x1f0] sm:$0xff]
    %v1393 = vld [vmem:[%s83 + $0x1f8] sm:$0xff]
    %vm1394 = vcmp.ne.s32.totalorder %v1330, 4294967295
    %vm1395 = vcmp.ne.s32.totalorder %v1331, 4294967295
    %vm1396 = vcmp.ne.s32.totalorder %v1332, 4294967295
    %vm1397 = vcmp.ne.s32.totalorder %v1333, 4294967295
    %vm1398 = vcmp.ne.s32.totalorder %v1334, 4294967295
    %vm1399 = vcmp.ne.s32.totalorder %v1335, 4294967295
    %vm1400 = vcmp.ne.s32.totalorder %v1336, 4294967295
    %vm1401 = vcmp.ne.s32.totalorder %v1337, 4294967295
    %vm1402 = vcmp.ne.s32.totalorder %v1338, 4294967295
    %vm1403 = vcmp.ne.s32.totalorder %v1339, 4294967295
    %vm1404 = vcmp.ne.s32.totalorder %v1340, 4294967295
    %vm1405 = vcmp.ne.s32.totalorder %v1341, 4294967295
    %vm1406 = vcmp.ne.s32.totalorder %v1342, 4294967295
    %vm1407 = vcmp.ne.s32.totalorder %v1343, 4294967295
    %vm1408 = vcmp.ne.s32.totalorder %v1344, 4294967295
    %vm1409 = vcmp.ne.s32.totalorder %v1345, 4294967295
    %vm1410 = vcmp.ne.s32.totalorder %v1346, 4294967295
    %vm1411 = vcmp.ne.s32.totalorder %v1347, 4294967295
    %vm1412 = vcmp.ne.s32.totalorder %v1348, 4294967295
    %vm1413 = vcmp.ne.s32.totalorder %v1349, 4294967295
    %vm1414 = vcmp.ne.s32.totalorder %v1350, 4294967295
    %vm1415 = vcmp.ne.s32.totalorder %v1351, 4294967295
    %vm1416 = vcmp.ne.s32.totalorder %v1352, 4294967295
    %vm1417 = vcmp.ne.s32.totalorder %v1353, 4294967295
    %vm1418 = vcmp.ne.s32.totalorder %v1354, 4294967295
    %vm1419 = vcmp.ne.s32.totalorder %v1355, 4294967295
    %vm1420 = vcmp.ne.s32.totalorder %v1356, 4294967295
    %vm1421 = vcmp.ne.s32.totalorder %v1357, 4294967295
    %vm1422 = vcmp.ne.s32.totalorder %v1358, 4294967295
    %vm1423 = vcmp.ne.s32.totalorder %v1359, 4294967295
    %vm1424 = vcmp.ne.s32.totalorder %v1360, 4294967295
    %vm1425 = vcmp.ne.s32.totalorder %v1361, 4294967295
    %vm1426 = vcmp.ne.s32.totalorder %v1362, 4294967295
    %vm1427 = vcmp.ne.s32.totalorder %v1363, 4294967295
    %vm1428 = vcmp.ne.s32.totalorder %v1364, 4294967295
    %vm1429 = vcmp.ne.s32.totalorder %v1365, 4294967295
    %vm1430 = vcmp.ne.s32.totalorder %v1366, 4294967295
    %vm1431 = vcmp.ne.s32.totalorder %v1367, 4294967295
    %vm1432 = vcmp.ne.s32.totalorder %v1368, 4294967295
    %vm1433 = vcmp.ne.s32.totalorder %v1369, 4294967295
    %vm1434 = vcmp.ne.s32.totalorder %v1370, 4294967295
    %vm1435 = vcmp.ne.s32.totalorder %v1371, 4294967295
    %vm1436 = vcmp.ne.s32.totalorder %v1372, 4294967295
    %vm1437 = vcmp.ne.s32.totalorder %v1373, 4294967295
    %vm1438 = vcmp.ne.s32.totalorder %v1374, 4294967295
    %vm1439 = vcmp.ne.s32.totalorder %v1375, 4294967295
    %vm1440 = vcmp.ne.s32.totalorder %v1376, 4294967295
    %vm1441 = vcmp.ne.s32.totalorder %v1377, 4294967295
    %vm1442 = vcmp.ne.s32.totalorder %v1378, 4294967295
    %vm1443 = vcmp.ne.s32.totalorder %v1379, 4294967295
    %vm1444 = vcmp.ne.s32.totalorder %v1380, 4294967295
    %vm1445 = vcmp.ne.s32.totalorder %v1381, 4294967295
    %vm1446 = vcmp.ne.s32.totalorder %v1382, 4294967295
    %vm1447 = vcmp.ne.s32.totalorder %v1383, 4294967295
    %vm1448 = vcmp.ne.s32.totalorder %v1384, 4294967295
    %vm1449 = vcmp.ne.s32.totalorder %v1385, 4294967295
    %vm1450 = vcmp.ne.s32.totalorder %v1386, 4294967295
    %vm1451 = vcmp.ne.s32.totalorder %v1387, 4294967295
    %vm1452 = vcmp.ne.s32.totalorder %v1388, 4294967295
    %vm1453 = vcmp.ne.s32.totalorder %v1389, 4294967295
    %vm1454 = vcmp.ne.s32.totalorder %v1390, 4294967295
    %vm1455 = vcmp.ne.s32.totalorder %v1391, 4294967295
    %vm1456 = vcmp.ne.s32.totalorder %v1392, 4294967295
    %vm1457 = vcmp.ne.s32.totalorder %v1393, 4294967295
    %vm1458 = vmand %vm226, %vm1394
    %vm1459 = vmand %vm227, %vm1395
    %vm1460 = vmand %vm228, %vm1396
    %vm1461 = vmand %vm229, %vm1397
    %vm1462 = vmand %vm230, %vm1398
    %vm1463 = vmand %vm231, %vm1399
    %vm1464 = vmand %vm232, %vm1400
    %vm1465 = vmand %vm233, %vm1401
    %vm1466 = vmand %vm234, %vm1402
    %vm1467 = vmand %vm235, %vm1403
    %vm1468 = vmand %vm236, %vm1404
    %vm1469 = vmand %vm237, %vm1405
    %vm1470 = vmand %vm238, %vm1406
    %vm1471 = vmand %vm239, %vm1407
    %vm1472 = vmand %vm240, %vm1408
    %vm1473 = vmand %vm241, %vm1409
    %vm1474 = vmand %vm242, %vm1410
    %vm1475 = vmand %vm243, %vm1411
    %vm1476 = vmand %vm244, %vm1412
    %vm1477 = vmand %vm245, %vm1413
    %vm1478 = vmand %vm246, %vm1414
    %vm1479 = vmand %vm247, %vm1415
    %vm1480 = vmand %vm248, %vm1416
    %vm1481 = vmand %vm249, %vm1417
    %vm1482 = vmand %vm250, %vm1418
    %vm1483 = vmand %vm251, %vm1419
    %vm1484 = vmand %vm252, %vm1420
    %vm1485 = vmand %vm253, %vm1421
    %vm1486 = vmand %vm254, %vm1422
    %vm1487 = vmand %vm255, %vm1423
    %vm1488 = vmand %vm256, %vm1424
    %vm1489 = vmand %vm257, %vm1425
    %vm1490 = vmand %vm258, %vm1426
    %vm1491 = vmand %vm259, %vm1427
    %vm1492 = vmand %vm260, %vm1428
    %vm1493 = vmand %vm261, %vm1429
    %vm1494 = vmand %vm262, %vm1430
    %vm1495 = vmand %vm263, %vm1431
    %vm1496 = vmand %vm264, %vm1432
    %vm1497 = vmand %vm265, %vm1433
    %vm1498 = vmand %vm266, %vm1434
    %vm1499 = vmand %vm267, %vm1435
    %vm1500 = vmand %vm268, %vm1436
    %vm1501 = vmand %vm269, %vm1437
    %vm1502 = vmand %vm270, %vm1438
    %vm1503 = vmand %vm271, %vm1439
    %vm1504 = vmand %vm272, %vm1440
    %vm1505 = vmand %vm273, %vm1441
    %vm1506 = vmand %vm274, %vm1442
    %vm1507 = vmand %vm275, %vm1443
    %vm1508 = vmand %vm276, %vm1444
    %vm1509 = vmand %vm277, %vm1445
    %vm1510 = vmand %vm278, %vm1446
    %vm1511 = vmand %vm279, %vm1447
    %vm1512 = vmand %vm280, %vm1448
    %vm1513 = vmand %vm281, %vm1449
    %vm1514 = vmand %vm282, %vm1450
    %vm1515 = vmand %vm283, %vm1451
    %vm1516 = vmand %vm284, %vm1452
    %vm1517 = vmand %vm285, %vm1453
    %vm1518 = vmand %vm286, %vm1454
    %vm1519 = vmand %vm287, %vm1455
    %vm1520 = vmand %vm288, %vm1456
    %vm1521 = vmand %vm289, %vm1457
    %v1522 = vsel %vm354, %v1266, -inf
    %1523 = vmax.xlane.f32.xlu0 %v1522
    %v1524 = vpop.xlane.xlu0 %1523
    %v1525 = vsel %vm354, %v1267, -inf
    %1526 = vmax.xlane.f32.xlu0 %v1525
    %v1527 = vpop.xlane.xlu0 %1526
    %v1528 = vsel %vm354, %v1268, -inf
    %1529 = vmax.xlane.f32.xlu0 %v1528
    %v1530 = vpop.xlane.xlu0 %1529
    %v1531 = vsel %vm354, %v1269, -inf
    %1532 = vmax.xlane.f32.xlu0 %v1531
    %v1533 = vpop.xlane.xlu0 %1532
    %v1534 = vsel %vm354, %v1270, -inf
    %1535 = vmax.xlane.f32.xlu0 %v1534
    %v1536 = vpop.xlane.xlu0 %1535
    %v1537 = vsel %vm354, %v1271, -inf
    %1538 = vmax.xlane.f32.xlu0 %v1537
    %v1539 = vpop.xlane.xlu0 %1538
    %v1540 = vsel %vm354, %v1272, -inf
    %1541 = vmax.xlane.f32.xlu0 %v1540
    %v1542 = vpop.xlane.xlu0 %1541
    %v1543 = vsel %vm354, %v1273, -inf
    %1544 = vmax.xlane.f32.xlu0 %v1543
    %v1545 = vpop.xlane.xlu0 %1544
    %v1546 = vsel %vm354, %v1274, -inf
    %1547 = vmax.xlane.f32.xlu0 %v1546
    %v1548 = vpop.xlane.xlu0 %1547
    %v1549 = vsel %vm354, %v1275, -inf
    %1550 = vmax.xlane.f32.xlu0 %v1549
    %v1551 = vpop.xlane.xlu0 %1550
    %v1552 = vsel %vm354, %v1276, -inf
    %1553 = vmax.xlane.f32.xlu0 %v1552
    %v1554 = vpop.xlane.xlu0 %1553
    %v1555 = vsel %vm354, %v1277, -inf
    %1556 = vmax.xlane.f32.xlu0 %v1555
    %v1557 = vpop.xlane.xlu0 %1556
    %v1558 = vsel %vm354, %v1278, -inf
    %1559 = vmax.xlane.f32.xlu0 %v1558
    %v1560 = vpop.xlane.xlu0 %1559
    %v1561 = vsel %vm354, %v1279, -inf
    %1562 = vmax.xlane.f32.xlu0 %v1561
    %v1563 = vpop.xlane.xlu0 %1562
    %v1564 = vsel %vm354, %v1280, -inf
    %1565 = vmax.xlane.f32.xlu0 %v1564
    %v1566 = vpop.xlane.xlu0 %1565
    %v1567 = vsel %vm354, %v1281, -inf
    %1568 = vmax.xlane.f32.xlu0 %v1567
    %v1569 = vpop.xlane.xlu0 %1568
    %v1570 = vsel %vm354, %v1282, -inf
    %1571 = vmax.xlane.f32.xlu0 %v1570
    %v1572 = vpop.xlane.xlu0 %1571
    %v1573 = vsel %vm354, %v1283, -inf
    %1574 = vmax.xlane.f32.xlu0 %v1573
    %v1575 = vpop.xlane.xlu0 %1574
    %v1576 = vsel %vm354, %v1284, -inf
    %1577 = vmax.xlane.f32.xlu0 %v1576
    %v1578 = vpop.xlane.xlu0 %1577
    %v1579 = vsel %vm354, %v1285, -inf
    %1580 = vmax.xlane.f32.xlu0 %v1579
    %v1581 = vpop.xlane.xlu0 %1580
    %v1582 = vsel %vm354, %v1286, -inf
    %1583 = vmax.xlane.f32.xlu0 %v1582
    %v1584 = vpop.xlane.xlu0 %1583
    %v1585 = vsel %vm354, %v1287, -inf
    %1586 = vmax.xlane.f32.xlu0 %v1585
    %v1587 = vpop.xlane.xlu0 %1586
    %v1588 = vsel %vm354, %v1288, -inf
    %1589 = vmax.xlane.f32.xlu0 %v1588
    %v1590 = vpop.xlane.xlu0 %1589
    %v1591 = vsel %vm354, %v1289, -inf
    %1592 = vmax.xlane.f32.xlu0 %v1591
    %v1593 = vpop.xlane.xlu0 %1592
    %v1594 = vsel %vm354, %v1290, -inf
    %1595 = vmax.xlane.f32.xlu0 %v1594
    %v1596 = vpop.xlane.xlu0 %1595
    %v1597 = vsel %vm354, %v1291, -inf
    %1598 = vmax.xlane.f32.xlu0 %v1597
    %v1599 = vpop.xlane.xlu0 %1598
    %v1600 = vsel %vm354, %v1292, -inf
    %1601 = vmax.xlane.f32.xlu0 %v1600
    %v1602 = vpop.xlane.xlu0 %1601
    %v1603 = vsel %vm354, %v1293, -inf
    %1604 = vmax.xlane.f32.xlu0 %v1603
    %v1605 = vpop.xlane.xlu0 %1604
    %v1606 = vsel %vm354, %v1294, -inf
    %1607 = vmax.xlane.f32.xlu0 %v1606
    %v1608 = vpop.xlane.xlu0 %1607
    %v1609 = vsel %vm354, %v1295, -inf
    %1610 = vmax.xlane.f32.xlu0 %v1609
    %v1611 = vpop.xlane.xlu0 %1610
    %v1612 = vsel %vm354, %v1296, -inf
    %1613 = vmax.xlane.f32.xlu0 %v1612
    %v1614 = vpop.xlane.xlu0 %1613
    %v1615 = vsel %vm354, %v1297, -inf
    %1616 = vmax.xlane.f32.xlu0 %v1615
    %v1617 = vpop.xlane.xlu0 %1616
    %v1618 = vsel %vm354, %v1298, -inf
    %1619 = vmax.xlane.f32.xlu0 %v1618
    %v1620 = vpop.xlane.xlu0 %1619
    %v1621 = vsel %vm354, %v1299, -inf
    %1622 = vmax.xlane.f32.xlu0 %v1621
    %v1623 = vpop.xlane.xlu0 %1622
    %v1624 = vsel %vm354, %v1300, -inf
    %1625 = vmax.xlane.f32.xlu0 %v1624
    %v1626 = vpop.xlane.xlu0 %1625
    %v1627 = vsel %vm354, %v1301, -inf
    %1628 = vmax.xlane.f32.xlu0 %v1627
    %v1629 = vpop.xlane.xlu0 %1628
    %v1630 = vsel %vm354, %v1302, -inf
    %1631 = vmax.xlane.f32.xlu0 %v1630
    %v1632 = vpop.xlane.xlu0 %1631
    %v1633 = vsel %vm354, %v1303, -inf
    %1634 = vmax.xlane.f32.xlu0 %v1633
    %v1635 = vpop.xlane.xlu0 %1634
    %v1636 = vsel %vm354, %v1304, -inf
    %1637 = vmax.xlane.f32.xlu0 %v1636
    %v1638 = vpop.xlane.xlu0 %1637
    %v1639 = vsel %vm354, %v1305, -inf
    %1640 = vmax.xlane.f32.xlu0 %v1639
    %v1641 = vpop.xlane.xlu0 %1640
    %v1642 = vsel %vm354, %v1306, -inf
    %1643 = vmax.xlane.f32.xlu0 %v1642
    %v1644 = vpop.xlane.xlu0 %1643
    %v1645 = vsel %vm354, %v1307, -inf
    %1646 = vmax.xlane.f32.xlu0 %v1645
    %v1647 = vpop.xlane.xlu0 %1646
    %v1648 = vsel %vm354, %v1308, -inf
    %1649 = vmax.xlane.f32.xlu0 %v1648
    %v1650 = vpop.xlane.xlu0 %1649
    %v1651 = vsel %vm354, %v1309, -inf
    %1652 = vmax.xlane.f32.xlu0 %v1651
    %v1653 = vpop.xlane.xlu0 %1652
    %v1654 = vsel %vm354, %v1310, -inf
    %1655 = vmax.xlane.f32.xlu0 %v1654
    %v1656 = vpop.xlane.xlu0 %1655
    %v1657 = vsel %vm354, %v1311, -inf
    %1658 = vmax.xlane.f32.xlu0 %v1657
    %v1659 = vpop.xlane.xlu0 %1658
    %v1660 = vsel %vm354, %v1312, -inf
    %1661 = vmax.xlane.f32.xlu0 %v1660
    %v1662 = vpop.xlane.xlu0 %1661
    %v1663 = vsel %vm354, %v1313, -inf
    %1664 = vmax.xlane.f32.xlu0 %v1663
    %v1665 = vpop.xlane.xlu0 %1664
    %v1666 = vsel %vm354, %v1314, -inf
    %1667 = vmax.xlane.f32.xlu0 %v1666
    %v1668 = vpop.xlane.xlu0 %1667
    %v1669 = vsel %vm354, %v1315, -inf
    %1670 = vmax.xlane.f32.xlu0 %v1669
    %v1671 = vpop.xlane.xlu0 %1670
    %v1672 = vsel %vm354, %v1316, -inf
    %1673 = vmax.xlane.f32.xlu0 %v1672
    %v1674 = vpop.xlane.xlu0 %1673
    %v1675 = vsel %vm354, %v1317, -inf
    %1676 = vmax.xlane.f32.xlu0 %v1675
    %v1677 = vpop.xlane.xlu0 %1676
    %v1678 = vsel %vm354, %v1318, -inf
    %1679 = vmax.xlane.f32.xlu0 %v1678
    %v1680 = vpop.xlane.xlu0 %1679
    %v1681 = vsel %vm354, %v1319, -inf
    %1682 = vmax.xlane.f32.xlu0 %v1681
    %v1683 = vpop.xlane.xlu0 %1682
    %v1684 = vsel %vm354, %v1320, -inf
    %1685 = vmax.xlane.f32.xlu0 %v1684
    %v1686 = vpop.xlane.xlu0 %1685
    %v1687 = vsel %vm354, %v1321, -inf
    %1688 = vmax.xlane.f32.xlu0 %v1687
    %v1689 = vpop.xlane.xlu0 %1688
    %v1690 = vsel %vm354, %v1322, -inf
    %1691 = vmax.xlane.f32.xlu0 %v1690
    %v1692 = vpop.xlane.xlu0 %1691
    %v1693 = vsel %vm354, %v1323, -inf
    %1694 = vmax.xlane.f32.xlu0 %v1693
    %v1695 = vpop.xlane.xlu0 %1694
    %v1696 = vsel %vm354, %v1324, -inf
    %1697 = vmax.xlane.f32.xlu0 %v1696
    %v1698 = vpop.xlane.xlu0 %1697
    %v1699 = vsel %vm354, %v1325, -inf
    %1700 = vmax.xlane.f32.xlu0 %v1699
    %v1701 = vpop.xlane.xlu0 %1700
    %v1702 = vsel %vm354, %v1326, -inf
    %1703 = vmax.xlane.f32.xlu0 %v1702
    %v1704 = vpop.xlane.xlu0 %1703
    %v1705 = vsel %vm354, %v1327, -inf
    %1706 = vmax.xlane.f32.xlu0 %v1705
    %v1707 = vpop.xlane.xlu0 %1706
    %v1708 = vsel %vm354, %v1328, -inf
    %1709 = vmax.xlane.f32.xlu0 %v1708
    %v1710 = vpop.xlane.xlu0 %1709
    %v1711 = vsel %vm354, %v1329, -inf
    %1712 = vmax.xlane.f32.xlu0 %v1711
    %v1713 = vpop.xlane.xlu0 %1712
    %v1714 = vsub.f32 %v1266, %v1524
    %v1715 = vsub.f32 %v1267, %v1527
    %v1716 = vsub.f32 %v1268, %v1530
    %v1717 = vsub.f32 %v1269, %v1533
    %v1718 = vsub.f32 %v1270, %v1536
    %v1719 = vsub.f32 %v1271, %v1539
    %v1720 = vsub.f32 %v1272, %v1542
    %v1721 = vsub.f32 %v1273, %v1545
    %v1722 = vsub.f32 %v1274, %v1548
    %v1723 = vsub.f32 %v1275, %v1551
    %v1724 = vsub.f32 %v1276, %v1554
    %v1725 = vsub.f32 %v1277, %v1557
    %v1726 = vsub.f32 %v1278, %v1560
    %v1727 = vsub.f32 %v1279, %v1563
    %v1728 = vsub.f32 %v1280, %v1566
    %v1729 = vsub.f32 %v1281, %v1569
    %v1730 = vsub.f32 %v1282, %v1572
    %v1731 = vsub.f32 %v1283, %v1575
    %v1732 = vsub.f32 %v1284, %v1578
    %v1733 = vsub.f32 %v1285, %v1581
    %v1734 = vsub.f32 %v1286, %v1584
    %v1735 = vsub.f32 %v1287, %v1587
    %v1736 = vsub.f32 %v1288, %v1590
    %v1737 = vsub.f32 %v1289, %v1593
    %v1738 = vsub.f32 %v1290, %v1596
    %v1739 = vsub.f32 %v1291, %v1599
    %v1740 = vsub.f32 %v1292, %v1602
    %v1741 = vsub.f32 %v1293, %v1605
    %v1742 = vsub.f32 %v1294, %v1608
    %v1743 = vsub.f32 %v1295, %v1611
    %v1744 = vsub.f32 %v1296, %v1614
    %v1745 = vsub.f32 %v1297, %v1617
    %v1746 = vsub.f32 %v1298, %v1620
    %v1747 = vsub.f32 %v1299, %v1623
    %v1748 = vsub.f32 %v1300, %v1626
    %v1749 = vsub.f32 %v1301, %v1629
    %v1750 = vsub.f32 %v1302, %v1632
    %v1751 = vsub.f32 %v1303, %v1635
    %v1752 = vsub.f32 %v1304, %v1638
    %v1753 = vsub.f32 %v1305, %v1641
    %v1754 = vsub.f32 %v1306, %v1644
    %v1755 = vsub.f32 %v1307, %v1647
    %v1756 = vsub.f32 %v1308, %v1650
    %v1757 = vsub.f32 %v1309, %v1653
    %v1758 = vsub.f32 %v1310, %v1656
    %v1759 = vsub.f32 %v1311, %v1659
    %v1760 = vsub.f32 %v1312, %v1662
    %v1761 = vsub.f32 %v1313, %v1665
    %v1762 = vsub.f32 %v1314, %v1668
    %v1763 = vsub.f32 %v1315, %v1671
    %v1764 = vsub.f32 %v1316, %v1674
    %v1765 = vsub.f32 %v1317, %v1677
    %v1766 = vsub.f32 %v1318, %v1680
    %v1767 = vsub.f32 %v1319, %v1683
    %v1768 = vsub.f32 %v1320, %v1686
    %v1769 = vsub.f32 %v1321, %v1689
    %v1770 = vsub.f32 %v1322, %v1692
    %v1771 = vsub.f32 %v1323, %v1695
    %v1772 = vsub.f32 %v1324, %v1698
    %v1773 = vsub.f32 %v1325, %v1701
    %v1774 = vsub.f32 %v1326, %v1704
    %v1775 = vsub.f32 %v1327, %v1707
    %v1776 = vsub.f32 %v1328, %v1710
    %v1777 = vsub.f32 %v1329, %v1713
    %v1778 = vmul.f32 %v1714, 1.442695
    %v1779 = vpow.pop %v1778
    %v1780 = vmul.f32 %v1715, 1.442695
    %v1781 = vpow.pop %v1780
    %v1782 = vmul.f32 %v1716, 1.442695
    %v1783 = vpow.pop %v1782
    %v1784 = vmul.f32 %v1717, 1.442695
    %v1785 = vpow.pop %v1784
    %v1786 = vmul.f32 %v1718, 1.442695
    %v1787 = vpow.pop %v1786
    %v1788 = vmul.f32 %v1719, 1.442695
    %v1789 = vpow.pop %v1788
    %v1790 = vmul.f32 %v1720, 1.442695
    %v1791 = vpow.pop %v1790
    %v1792 = vmul.f32 %v1721, 1.442695
    %v1793 = vpow.pop %v1792
    %v1794 = vmul.f32 %v1722, 1.442695
    %v1795 = vpow.pop %v1794
    %v1796 = vmul.f32 %v1723, 1.442695
    %v1797 = vpow.pop %v1796
    %v1798 = vmul.f32 %v1724, 1.442695
    %v1799 = vpow.pop %v1798
    %v1800 = vmul.f32 %v1725, 1.442695
    %v1801 = vpow.pop %v1800
    %v1802 = vmul.f32 %v1726, 1.442695
    %v1803 = vpow.pop %v1802
    %v1804 = vmul.f32 %v1727, 1.442695
    %v1805 = vpow.pop %v1804
    %v1806 = vmul.f32 %v1728, 1.442695
    %v1807 = vpow.pop %v1806
    %v1808 = vmul.f32 %v1729, 1.442695
    %v1809 = vpow.pop %v1808
    %v1810 = vmul.f32 %v1730, 1.442695
    %v1811 = vpow.pop %v1810
    %v1812 = vmul.f32 %v1731, 1.442695
    %v1813 = vpow.pop %v1812
    %v1814 = vmul.f32 %v1732, 1.442695
    %v1815 = vpow.pop %v1814
    %v1816 = vmul.f32 %v1733, 1.442695
    %v1817 = vpow.pop %v1816
    %v1818 = vmul.f32 %v1734, 1.442695
    %v1819 = vpow.pop %v1818
    %v1820 = vmul.f32 %v1735, 1.442695
    %v1821 = vpow.pop %v1820
    %v1822 = vmul.f32 %v1736, 1.442695
    %v1823 = vpow.pop %v1822
    %v1824 = vmul.f32 %v1737, 1.442695
    %v1825 = vpow.pop %v1824
    %v1826 = vmul.f32 %v1738, 1.442695
    %v1827 = vpow.pop %v1826
    %v1828 = vmul.f32 %v1739, 1.442695
    %v1829 = vpow.pop %v1828
    %v1830 = vmul.f32 %v1740, 1.442695
    %v1831 = vpow.pop %v1830
    %v1832 = vmul.f32 %v1741, 1.442695
    %v1833 = vpow.pop %v1832
    %v1834 = vmul.f32 %v1742, 1.442695
    %v1835 = vpow.pop %v1834
    %v1836 = vmul.f32 %v1743, 1.442695
    %v1837 = vpow.pop %v1836
    %v1838 = vmul.f32 %v1744, 1.442695
    %v1839 = vpow.pop %v1838
    %v1840 = vmul.f32 %v1745, 1.442695
    %v1841 = vpow.pop %v1840
    %v1842 = vmul.f32 %v1746, 1.442695
    %v1843 = vpow.pop %v1842
    %v1844 = vmul.f32 %v1747, 1.442695
    %v1845 = vpow.pop %v1844
    %v1846 = vmul.f32 %v1748, 1.442695
    %v1847 = vpow.pop %v1846
    %v1848 = vmul.f32 %v1749, 1.442695
    %v1849 = vpow.pop %v1848
    %v1850 = vmul.f32 %v1750, 1.442695
    %v1851 = vpow.pop %v1850
    %v1852 = vmul.f32 %v1751, 1.442695
    %v1853 = vpow.pop %v1852
    %v1854 = vmul.f32 %v1752, 1.442695
    %v1855 = vpow.pop %v1854
    %v1856 = vmul.f32 %v1753, 1.442695
    %v1857 = vpow.pop %v1856
    %v1858 = vmul.f32 %v1754, 1.442695
    %v1859 = vpow.pop %v1858
    %v1860 = vmul.f32 %v1755, 1.442695
    %v1861 = vpow.pop %v1860
    %v1862 = vmul.f32 %v1756, 1.442695
    %v1863 = vpow.pop %v1862
    %v1864 = vmul.f32 %v1757, 1.442695
    %v1865 = vpow.pop %v1864
    %v1866 = vmul.f32 %v1758, 1.442695
    %v1867 = vpow.pop %v1866
    %v1868 = vmul.f32 %v1759, 1.442695
    %v1869 = vpow.pop %v1868
    %v1870 = vmul.f32 %v1760, 1.442695
    %v1871 = vpow.pop %v1870
    %v1872 = vmul.f32 %v1761, 1.442695
    %v1873 = vpow.pop %v1872
    %v1874 = vmul.f32 %v1762, 1.442695
    %v1875 = vpow.pop %v1874
    %v1876 = vmul.f32 %v1763, 1.442695
    %v1877 = vpow.pop %v1876
    %v1878 = vmul.f32 %v1764, 1.442695
    %v1879 = vpow.pop %v1878
    %v1880 = vmul.f32 %v1765, 1.442695
    %v1881 = vpow.pop %v1880
    %v1882 = vmul.f32 %v1766, 1.442695
    %v1883 = vpow.pop %v1882
    %v1884 = vmul.f32 %v1767, 1.442695
    %v1885 = vpow.pop %v1884
    %v1886 = vmul.f32 %v1768, 1.442695
    %v1887 = vpow.pop %v1886
    %v1888 = vmul.f32 %v1769, 1.442695
    %v1889 = vpow.pop %v1888
    %v1890 = vmul.f32 %v1770, 1.442695
    %v1891 = vpow.pop %v1890
    %v1892 = vmul.f32 %v1771, 1.442695
    %v1893 = vpow.pop %v1892
    %v1894 = vmul.f32 %v1772, 1.442695
    %v1895 = vpow.pop %v1894
    %v1896 = vmul.f32 %v1773, 1.442695
    %v1897 = vpow.pop %v1896
    %v1898 = vmul.f32 %v1774, 1.442695
    %v1899 = vpow.pop %v1898
    %v1900 = vmul.f32 %v1775, 1.442695
    %v1901 = vpow.pop %v1900
    %v1902 = vmul.f32 %v1776, 1.442695
    %v1903 = vpow.pop %v1902
    %v1904 = vmul.f32 %v1777, 1.442695
    %v1905 = vpow.pop %v1904
    %v1906 = vsel %vm354, %v1779, 0.0
    %1907 = vadd.xlane.f32.xlu0 %v1906
    %v1908 = vpop.xlane.xlu0 %1907
    %v1909 = vsel %vm354, %v1781, 0.0
    %1910 = vadd.xlane.f32.xlu0 %v1909
    %v1911 = vpop.xlane.xlu0 %1910
    %v1912 = vsel %vm354, %v1783, 0.0
    %1913 = vadd.xlane.f32.xlu0 %v1912
    %v1914 = vpop.xlane.xlu0 %1913
    %v1915 = vsel %vm354, %v1785, 0.0
    %1916 = vadd.xlane.f32.xlu0 %v1915
    %v1917 = vpop.xlane.xlu0 %1916
    %v1918 = vsel %vm354, %v1787, 0.0
    %1919 = vadd.xlane.f32.xlu0 %v1918
    %v1920 = vpop.xlane.xlu0 %1919
    %v1921 = vsel %vm354, %v1789, 0.0
    %1922 = vadd.xlane.f32.xlu0 %v1921
    %v1923 = vpop.xlane.xlu0 %1922
    %v1924 = vsel %vm354, %v1791, 0.0
    %1925 = vadd.xlane.f32.xlu0 %v1924
    %v1926 = vpop.xlane.xlu0 %1925
    %v1927 = vsel %vm354, %v1793, 0.0
    %1928 = vadd.xlane.f32.xlu0 %v1927
    %v1929 = vpop.xlane.xlu0 %1928
    %v1930 = vsel %vm354, %v1795, 0.0
    %1931 = vadd.xlane.f32.xlu0 %v1930
    %v1932 = vpop.xlane.xlu0 %1931
    %v1933 = vsel %vm354, %v1797, 0.0
    %1934 = vadd.xlane.f32.xlu0 %v1933
    %v1935 = vpop.xlane.xlu0 %1934
    %v1936 = vsel %vm354, %v1799, 0.0
    %1937 = vadd.xlane.f32.xlu0 %v1936
    %v1938 = vpop.xlane.xlu0 %1937
    %v1939 = vsel %vm354, %v1801, 0.0
    %1940 = vadd.xlane.f32.xlu0 %v1939
    %v1941 = vpop.xlane.xlu0 %1940
    %v1942 = vsel %vm354, %v1803, 0.0
    %1943 = vadd.xlane.f32.xlu0 %v1942
    %v1944 = vpop.xlane.xlu0 %1943
    %v1945 = vsel %vm354, %v1805, 0.0
    %1946 = vadd.xlane.f32.xlu0 %v1945
    %v1947 = vpop.xlane.xlu0 %1946
    %v1948 = vsel %vm354, %v1807, 0.0
    %1949 = vadd.xlane.f32.xlu0 %v1948
    %v1950 = vpop.xlane.xlu0 %1949
    %v1951 = vsel %vm354, %v1809, 0.0
    %1952 = vadd.xlane.f32.xlu0 %v1951
    %v1953 = vpop.xlane.xlu0 %1952
    %v1954 = vsel %vm354, %v1811, 0.0
    %1955 = vadd.xlane.f32.xlu0 %v1954
    %v1956 = vpop.xlane.xlu0 %1955
    %v1957 = vsel %vm354, %v1813, 0.0
    %1958 = vadd.xlane.f32.xlu0 %v1957
    %v1959 = vpop.xlane.xlu0 %1958
    %v1960 = vsel %vm354, %v1815, 0.0
    %1961 = vadd.xlane.f32.xlu0 %v1960
    %v1962 = vpop.xlane.xlu0 %1961
    %v1963 = vsel %vm354, %v1817, 0.0
    %1964 = vadd.xlane.f32.xlu0 %v1963
    %v1965 = vpop.xlane.xlu0 %1964
    %v1966 = vsel %vm354, %v1819, 0.0
    %1967 = vadd.xlane.f32.xlu0 %v1966
    %v1968 = vpop.xlane.xlu0 %1967
    %v1969 = vsel %vm354, %v1821, 0.0
    %1970 = vadd.xlane.f32.xlu0 %v1969
    %v1971 = vpop.xlane.xlu0 %1970
    %v1972 = vsel %vm354, %v1823, 0.0
    %1973 = vadd.xlane.f32.xlu0 %v1972
    %v1974 = vpop.xlane.xlu0 %1973
    %v1975 = vsel %vm354, %v1825, 0.0
    %1976 = vadd.xlane.f32.xlu0 %v1975
    %v1977 = vpop.xlane.xlu0 %1976
    %v1978 = vsel %vm354, %v1827, 0.0
    %1979 = vadd.xlane.f32.xlu0 %v1978
    %v1980 = vpop.xlane.xlu0 %1979
    %v1981 = vsel %vm354, %v1829, 0.0
    %1982 = vadd.xlane.f32.xlu0 %v1981
    %v1983 = vpop.xlane.xlu0 %1982
    %v1984 = vsel %vm354, %v1831, 0.0
    %1985 = vadd.xlane.f32.xlu0 %v1984
    %v1986 = vpop.xlane.xlu0 %1985
    %v1987 = vsel %vm354, %v1833, 0.0
    %1988 = vadd.xlane.f32.xlu0 %v1987
    %v1989 = vpop.xlane.xlu0 %1988
    %v1990 = vsel %vm354, %v1835, 0.0
    %1991 = vadd.xlane.f32.xlu0 %v1990
    %v1992 = vpop.xlane.xlu0 %1991
    %v1993 = vsel %vm354, %v1837, 0.0
    %1994 = vadd.xlane.f32.xlu0 %v1993
    %v1995 = vpop.xlane.xlu0 %1994
    %v1996 = vsel %vm354, %v1839, 0.0
    %1997 = vadd.xlane.f32.xlu0 %v1996
    %v1998 = vpop.xlane.xlu0 %1997
    %v1999 = vsel %vm354, %v1841, 0.0
    %2000 = vadd.xlane.f32.xlu0 %v1999
    %v2001 = vpop.xlane.xlu0 %2000
    %v2002 = vsel %vm354, %v1843, 0.0
    %2003 = vadd.xlane.f32.xlu0 %v2002
    %v2004 = vpop.xlane.xlu0 %2003
    %v2005 = vsel %vm354, %v1845, 0.0
    %2006 = vadd.xlane.f32.xlu0 %v2005
    %v2007 = vpop.xlane.xlu0 %2006
    %v2008 = vsel %vm354, %v1847, 0.0
    %2009 = vadd.xlane.f32.xlu0 %v2008
    %v2010 = vpop.xlane.xlu0 %2009
    %v2011 = vsel %vm354, %v1849, 0.0
    %2012 = vadd.xlane.f32.xlu0 %v2011
    %v2013 = vpop.xlane.xlu0 %2012
    %v2014 = vsel %vm354, %v1851, 0.0
    %2015 = vadd.xlane.f32.xlu0 %v2014
    %v2016 = vpop.xlane.xlu0 %2015
    %v2017 = vsel %vm354, %v1853, 0.0
    %2018 = vadd.xlane.f32.xlu0 %v2017
    %v2019 = vpop.xlane.xlu0 %2018
    %v2020 = vsel %vm354, %v1855, 0.0
    %2021 = vadd.xlane.f32.xlu0 %v2020
    %v2022 = vpop.xlane.xlu0 %2021
    %v2023 = vsel %vm354, %v1857, 0.0
    %2024 = vadd.xlane.f32.xlu0 %v2023
    %v2025 = vpop.xlane.xlu0 %2024
    %v2026 = vsel %vm354, %v1859, 0.0
    %2027 = vadd.xlane.f32.xlu0 %v2026
    %v2028 = vpop.xlane.xlu0 %2027
    %v2029 = vsel %vm354, %v1861, 0.0
    %2030 = vadd.xlane.f32.xlu0 %v2029
    %v2031 = vpop.xlane.xlu0 %2030
    %v2032 = vsel %vm354, %v1863, 0.0
    %2033 = vadd.xlane.f32.xlu0 %v2032
    %v2034 = vpop.xlane.xlu0 %2033
    %v2035 = vsel %vm354, %v1865, 0.0
    %2036 = vadd.xlane.f32.xlu0 %v2035
    %v2037 = vpop.xlane.xlu0 %2036
    %v2038 = vsel %vm354, %v1867, 0.0
    %2039 = vadd.xlane.f32.xlu0 %v2038
    %v2040 = vpop.xlane.xlu0 %2039
    %v2041 = vsel %vm354, %v1869, 0.0
    %2042 = vadd.xlane.f32.xlu0 %v2041
    %v2043 = vpop.xlane.xlu0 %2042
    %v2044 = vsel %vm354, %v1871, 0.0
    %2045 = vadd.xlane.f32.xlu0 %v2044
    %v2046 = vpop.xlane.xlu0 %2045
    %v2047 = vsel %vm354, %v1873, 0.0
    %2048 = vadd.xlane.f32.xlu0 %v2047
    %v2049 = vpop.xlane.xlu0 %2048
    %v2050 = vsel %vm354, %v1875, 0.0
    %2051 = vadd.xlane.f32.xlu0 %v2050
    %v2052 = vpop.xlane.xlu0 %2051
    %v2053 = vsel %vm354, %v1877, 0.0
    %2054 = vadd.xlane.f32.xlu0 %v2053
    %v2055 = vpop.xlane.xlu0 %2054
    %v2056 = vsel %vm354, %v1879, 0.0
    %2057 = vadd.xlane.f32.xlu0 %v2056
    %v2058 = vpop.xlane.xlu0 %2057
    %v2059 = vsel %vm354, %v1881, 0.0
    %2060 = vadd.xlane.f32.xlu0 %v2059
    %v2061 = vpop.xlane.xlu0 %2060
    %v2062 = vsel %vm354, %v1883, 0.0
    %2063 = vadd.xlane.f32.xlu0 %v2062
    %v2064 = vpop.xlane.xlu0 %2063
    %v2065 = vsel %vm354, %v1885, 0.0
    %2066 = vadd.xlane.f32.xlu0 %v2065
    %v2067 = vpop.xlane.xlu0 %2066
    %v2068 = vsel %vm354, %v1887, 0.0
    %2069 = vadd.xlane.f32.xlu0 %v2068
    %v2070 = vpop.xlane.xlu0 %2069
    %v2071 = vsel %vm354, %v1889, 0.0
    %2072 = vadd.xlane.f32.xlu0 %v2071
    %v2073 = vpop.xlane.xlu0 %2072
    %v2074 = vsel %vm354, %v1891, 0.0
    %2075 = vadd.xlane.f32.xlu0 %v2074
    %v2076 = vpop.xlane.xlu0 %2075
    %v2077 = vsel %vm354, %v1893, 0.0
    %2078 = vadd.xlane.f32.xlu0 %v2077
    %v2079 = vpop.xlane.xlu0 %2078
    %v2080 = vsel %vm354, %v1895, 0.0
    %2081 = vadd.xlane.f32.xlu0 %v2080
    %v2082 = vpop.xlane.xlu0 %2081
    %v2083 = vsel %vm354, %v1897, 0.0
    %2084 = vadd.xlane.f32.xlu0 %v2083
    %v2085 = vpop.xlane.xlu0 %2084
    %v2086 = vsel %vm354, %v1899, 0.0
    %2087 = vadd.xlane.f32.xlu0 %v2086
    %v2088 = vpop.xlane.xlu0 %2087
    %v2089 = vsel %vm354, %v1901, 0.0
    %2090 = vadd.xlane.f32.xlu0 %v2089
    %v2091 = vpop.xlane.xlu0 %2090
    %v2092 = vsel %vm354, %v1903, 0.0
    %2093 = vadd.xlane.f32.xlu0 %v2092
    %v2094 = vpop.xlane.xlu0 %2093
    %v2095 = vsel %vm354, %v1905, 0.0
    %2096 = vadd.xlane.f32.xlu0 %v2095
    %v2097 = vpop.xlane.xlu0 %2096
    %v2098 = vlog2.pop %v1908
    %v2099 = vmul.f32 %v2098, 0.6931472
    %v2100 = vlog2.pop %v1911
    %v2101 = vmul.f32 %v2100, 0.6931472
    %v2102 = vlog2.pop %v1914
    %v2103 = vmul.f32 %v2102, 0.6931472
    %v2104 = vlog2.pop %v1917
    %v2105 = vmul.f32 %v2104, 0.6931472
    %v2106 = vlog2.pop %v1920
    %v2107 = vmul.f32 %v2106, 0.6931472
    %v2108 = vlog2.pop %v1923
    %v2109 = vmul.f32 %v2108, 0.6931472
    %v2110 = vlog2.pop %v1926
    %v2111 = vmul.f32 %v2110, 0.6931472
    %v2112 = vlog2.pop %v1929
    %v2113 = vmul.f32 %v2112, 0.6931472
    %v2114 = vlog2.pop %v1932
    %v2115 = vmul.f32 %v2114, 0.6931472
    %v2116 = vlog2.pop %v1935
    %v2117 = vmul.f32 %v2116, 0.6931472
    %v2118 = vlog2.pop %v1938
    %v2119 = vmul.f32 %v2118, 0.6931472
    %v2120 = vlog2.pop %v1941
    %v2121 = vmul.f32 %v2120, 0.6931472
    %v2122 = vlog2.pop %v1944
    %v2123 = vmul.f32 %v2122, 0.6931472
    %v2124 = vlog2.pop %v1947
    %v2125 = vmul.f32 %v2124, 0.6931472
    %v2126 = vlog2.pop %v1950
    %v2127 = vmul.f32 %v2126, 0.6931472
    %v2128 = vlog2.pop %v1953
    %v2129 = vmul.f32 %v2128, 0.6931472
    %v2130 = vlog2.pop %v1956
    %v2131 = vmul.f32 %v2130, 0.6931472
    %v2132 = vlog2.pop %v1959
    %v2133 = vmul.f32 %v2132, 0.6931472
    %v2134 = vlog2.pop %v1962
    %v2135 = vmul.f32 %v2134, 0.6931472
    %v2136 = vlog2.pop %v1965
    %v2137 = vmul.f32 %v2136, 0.6931472
    %v2138 = vlog2.pop %v1968
    %v2139 = vmul.f32 %v2138, 0.6931472
    %v2140 = vlog2.pop %v1971
    %v2141 = vmul.f32 %v2140, 0.6931472
    %v2142 = vlog2.pop %v1974
    %v2143 = vmul.f32 %v2142, 0.6931472
    %v2144 = vlog2.pop %v1977
    %v2145 = vmul.f32 %v2144, 0.6931472
    %v2146 = vlog2.pop %v1980
    %v2147 = vmul.f32 %v2146, 0.6931472
    %v2148 = vlog2.pop %v1983
    %v2149 = vmul.f32 %v2148, 0.6931472
    %v2150 = vlog2.pop %v1986
    %v2151 = vmul.f32 %v2150, 0.6931472
    %v2152 = vlog2.pop %v1989
    %v2153 = vmul.f32 %v2152, 0.6931472
    %v2154 = vlog2.pop %v1992
    %v2155 = vmul.f32 %v2154, 0.6931472
    %v2156 = vlog2.pop %v1995
    %v2157 = vmul.f32 %v2156, 0.6931472
    %v2158 = vlog2.pop %v1998
    %v2159 = vmul.f32 %v2158, 0.6931472
    %v2160 = vlog2.pop %v2001
    %v2161 = vmul.f32 %v2160, 0.6931472
    %v2162 = vlog2.pop %v2004
    %v2163 = vmul.f32 %v2162, 0.6931472
    %v2164 = vlog2.pop %v2007
    %v2165 = vmul.f32 %v2164, 0.6931472
    %v2166 = vlog2.pop %v2010
    %v2167 = vmul.f32 %v2166, 0.6931472
    %v2168 = vlog2.pop %v2013
    %v2169 = vmul.f32 %v2168, 0.6931472
    %v2170 = vlog2.pop %v2016
    %v2171 = vmul.f32 %v2170, 0.6931472
    %v2172 = vlog2.pop %v2019
    %v2173 = vmul.f32 %v2172, 0.6931472
    %v2174 = vlog2.pop %v2022
    %v2175 = vmul.f32 %v2174, 0.6931472
    %v2176 = vlog2.pop %v2025
    %v2177 = vmul.f32 %v2176, 0.6931472
    %v2178 = vlog2.pop %v2028
    %v2179 = vmul.f32 %v2178, 0.6931472
    %v2180 = vlog2.pop %v2031
    %v2181 = vmul.f32 %v2180, 0.6931472
    %v2182 = vlog2.pop %v2034
    %v2183 = vmul.f32 %v2182, 0.6931472
    %v2184 = vlog2.pop %v2037
    %v2185 = vmul.f32 %v2184, 0.6931472
    %v2186 = vlog2.pop %v2040
    %v2187 = vmul.f32 %v2186, 0.6931472
    %v2188 = vlog2.pop %v2043
    %v2189 = vmul.f32 %v2188, 0.6931472
    %v2190 = vlog2.pop %v2046
    %v2191 = vmul.f32 %v2190, 0.6931472
    %v2192 = vlog2.pop %v2049
    %v2193 = vmul.f32 %v2192, 0.6931472
    %v2194 = vlog2.pop %v2052
    %v2195 = vmul.f32 %v2194, 0.6931472
    %v2196 = vlog2.pop %v2055
    %v2197 = vmul.f32 %v2196, 0.6931472
    %v2198 = vlog2.pop %v2058
    %v2199 = vmul.f32 %v2198, 0.6931472
    %v2200 = vlog2.pop %v2061
    %v2201 = vmul.f32 %v2200, 0.6931472
    %v2202 = vlog2.pop %v2064
    %v2203 = vmul.f32 %v2202, 0.6931472
    %v2204 = vlog2.pop %v2067
    %v2205 = vmul.f32 %v2204, 0.6931472
    %v2206 = vlog2.pop %v2070
    %v2207 = vmul.f32 %v2206, 0.6931472
    %v2208 = vlog2.pop %v2073
    %v2209 = vmul.f32 %v2208, 0.6931472
    %v2210 = vlog2.pop %v2076
    %v2211 = vmul.f32 %v2210, 0.6931472
    %v2212 = vlog2.pop %v2079
    %v2213 = vmul.f32 %v2212, 0.6931472
    %v2214 = vlog2.pop %v2082
    %v2215 = vmul.f32 %v2214, 0.6931472
    %v2216 = vlog2.pop %v2085
    %v2217 = vmul.f32 %v2216, 0.6931472
    %v2218 = vlog2.pop %v2088
    %v2219 = vmul.f32 %v2218, 0.6931472
    %v2220 = vlog2.pop %v2091
    %v2221 = vmul.f32 %v2220, 0.6931472
    %v2222 = vlog2.pop %v2094
    %v2223 = vmul.f32 %v2222, 0.6931472
    %v2224 = vlog2.pop %v2097
    %v2225 = vmul.f32 %v2224, 0.6931472
    %v2226 = vadd.f32 %v1524, %v2099
    %v2227 = vadd.f32 %v1527, %v2101
    %v2228 = vadd.f32 %v1530, %v2103
    %v2229 = vadd.f32 %v1533, %v2105
    %v2230 = vadd.f32 %v1536, %v2107
    %v2231 = vadd.f32 %v1539, %v2109
    %v2232 = vadd.f32 %v1542, %v2111
    %v2233 = vadd.f32 %v1545, %v2113
    %v2234 = vadd.f32 %v1548, %v2115
    %v2235 = vadd.f32 %v1551, %v2117
    %v2236 = vadd.f32 %v1554, %v2119
    %v2237 = vadd.f32 %v1557, %v2121
    %v2238 = vadd.f32 %v1560, %v2123
    %v2239 = vadd.f32 %v1563, %v2125
    %v2240 = vadd.f32 %v1566, %v2127
    %v2241 = vadd.f32 %v1569, %v2129
    %v2242 = vadd.f32 %v1572, %v2131
    %v2243 = vadd.f32 %v1575, %v2133
    %v2244 = vadd.f32 %v1578, %v2135
    %v2245 = vadd.f32 %v1581, %v2137
    %v2246 = vadd.f32 %v1584, %v2139
    %v2247 = vadd.f32 %v1587, %v2141
    %v2248 = vadd.f32 %v1590, %v2143
    %v2249 = vadd.f32 %v1593, %v2145
    %v2250 = vadd.f32 %v1596, %v2147
    %v2251 = vadd.f32 %v1599, %v2149
    %v2252 = vadd.f32 %v1602, %v2151
    %v2253 = vadd.f32 %v1605, %v2153
    %v2254 = vadd.f32 %v1608, %v2155
    %v2255 = vadd.f32 %v1611, %v2157
    %v2256 = vadd.f32 %v1614, %v2159
    %v2257 = vadd.f32 %v1617, %v2161
    %v2258 = vadd.f32 %v1620, %v2163
    %v2259 = vadd.f32 %v1623, %v2165
    %v2260 = vadd.f32 %v1626, %v2167
    %v2261 = vadd.f32 %v1629, %v2169
    %v2262 = vadd.f32 %v1632, %v2171
    %v2263 = vadd.f32 %v1635, %v2173
    %v2264 = vadd.f32 %v1638, %v2175
    %v2265 = vadd.f32 %v1641, %v2177
    %v2266 = vadd.f32 %v1644, %v2179
    %v2267 = vadd.f32 %v1647, %v2181
    %v2268 = vadd.f32 %v1650, %v2183
    %v2269 = vadd.f32 %v1653, %v2185
    %v2270 = vadd.f32 %v1656, %v2187
    %v2271 = vadd.f32 %v1659, %v2189
    %v2272 = vadd.f32 %v1662, %v2191
    %v2273 = vadd.f32 %v1665, %v2193
    %v2274 = vadd.f32 %v1668, %v2195
    %v2275 = vadd.f32 %v1671, %v2197
    %v2276 = vadd.f32 %v1674, %v2199
    %v2277 = vadd.f32 %v1677, %v2201
    %v2278 = vadd.f32 %v1680, %v2203
    %v2279 = vadd.f32 %v1683, %v2205
    %v2280 = vadd.f32 %v1686, %v2207
    %v2281 = vadd.f32 %v1689, %v2209
    %v2282 = vadd.f32 %v1692, %v2211
    %v2283 = vadd.f32 %v1695, %v2213
    %v2284 = vadd.f32 %v1698, %v2215
    %v2285 = vadd.f32 %v1701, %v2217
    %v2286 = vadd.f32 %v1704, %v2219
    %v2287 = vadd.f32 %v1707, %v2221
    %v2288 = vadd.f32 %v1710, %v2223
    %v2289 = vadd.f32 %v1713, %v2225
    %v2290 = vlaneseq
    %v2291 = vand.u32 %v2290, 127
    %2292 = vset.pattern.permute.xlu0 0
    %2293 = vperm.xlu0 %2292, %v1330
    %v2294 = vpop.permute.xlu0 %2293
    %2295 = vset.pattern.permute.xlu0 0
    %2296 = vperm.xlu0 %2295, %v1331
    %v2297 = vpop.permute.xlu0 %2296
    %2298 = vset.pattern.permute.xlu0 0
    %2299 = vperm.xlu0 %2298, %v1332
    %v2300 = vpop.permute.xlu0 %2299
    %2301 = vset.pattern.permute.xlu0 0
    %2302 = vperm.xlu0 %2301, %v1333
    %v2303 = vpop.permute.xlu0 %2302
    %2304 = vset.pattern.permute.xlu0 0
    %2305 = vperm.xlu0 %2304, %v1334
    %v2306 = vpop.permute.xlu0 %2305
    %2307 = vset.pattern.permute.xlu0 0
    %2308 = vperm.xlu0 %2307, %v1335
    %v2309 = vpop.permute.xlu0 %2308
    %2310 = vset.pattern.permute.xlu0 0
    %2311 = vperm.xlu0 %2310, %v1336
    %v2312 = vpop.permute.xlu0 %2311
    %2313 = vset.pattern.permute.xlu0 0
    %2314 = vperm.xlu0 %2313, %v1337
    %v2315 = vpop.permute.xlu0 %2314
    %2316 = vset.pattern.permute.xlu0 0
    %2317 = vperm.xlu0 %2316, %v1338
    %v2318 = vpop.permute.xlu0 %2317
    %2319 = vset.pattern.permute.xlu0 0
    %2320 = vperm.xlu0 %2319, %v1339
    %v2321 = vpop.permute.xlu0 %2320
    %2322 = vset.pattern.permute.xlu0 0
    %2323 = vperm.xlu0 %2322, %v1340
    %v2324 = vpop.permute.xlu0 %2323
    %2325 = vset.pattern.permute.xlu0 0
    %2326 = vperm.xlu0 %2325, %v1341
    %v2327 = vpop.permute.xlu0 %2326
    %2328 = vset.pattern.permute.xlu0 0
    %2329 = vperm.xlu0 %2328, %v1342
    %v2330 = vpop.permute.xlu0 %2329
    %2331 = vset.pattern.permute.xlu0 0
    %2332 = vperm.xlu0 %2331, %v1343
    %v2333 = vpop.permute.xlu0 %2332
    %2334 = vset.pattern.permute.xlu0 0
    %2335 = vperm.xlu0 %2334, %v1344
    %v2336 = vpop.permute.xlu0 %2335
    %2337 = vset.pattern.permute.xlu0 0
    %2338 = vperm.xlu0 %2337, %v1345
    %v2339 = vpop.permute.xlu0 %2338
    %2340 = vset.pattern.permute.xlu0 0
    %2341 = vperm.xlu0 %2340, %v1346
    %v2342 = vpop.permute.xlu0 %2341
    %2343 = vset.pattern.permute.xlu0 0
    %2344 = vperm.xlu0 %2343, %v1347
    %v2345 = vpop.permute.xlu0 %2344
    %2346 = vset.pattern.permute.xlu0 0
    %2347 = vperm.xlu0 %2346, %v1348
    %v2348 = vpop.permute.xlu0 %2347
    %2349 = vset.pattern.permute.xlu0 0
    %2350 = vperm.xlu0 %2349, %v1349
    %v2351 = vpop.permute.xlu0 %2350
    %2352 = vset.pattern.permute.xlu0 0
    %2353 = vperm.xlu0 %2352, %v1350
    %v2354 = vpop.permute.xlu0 %2353
    %2355 = vset.pattern.permute.xlu0 0
    %2356 = vperm.xlu0 %2355, %v1351
    %v2357 = vpop.permute.xlu0 %2356
    %2358 = vset.pattern.permute.xlu0 0
    %2359 = vperm.xlu0 %2358, %v1352
    %v2360 = vpop.permute.xlu0 %2359
    %2361 = vset.pattern.permute.xlu0 0
    %2362 = vperm.xlu0 %2361, %v1353
    %v2363 = vpop.permute.xlu0 %2362
    %2364 = vset.pattern.permute.xlu0 0
    %2365 = vperm.xlu0 %2364, %v1354
    %v2366 = vpop.permute.xlu0 %2365
    %2367 = vset.pattern.permute.xlu0 0
    %2368 = vperm.xlu0 %2367, %v1355
    %v2369 = vpop.permute.xlu0 %2368
    %2370 = vset.pattern.permute.xlu0 0
    %2371 = vperm.xlu0 %2370, %v1356
    %v2372 = vpop.permute.xlu0 %2371
    %2373 = vset.pattern.permute.xlu0 0
    %2374 = vperm.xlu0 %2373, %v1357
    %v2375 = vpop.permute.xlu0 %2374
    %2376 = vset.pattern.permute.xlu0 0
    %2377 = vperm.xlu0 %2376, %v1358
    %v2378 = vpop.permute.xlu0 %2377
    %2379 = vset.pattern.permute.xlu0 0
    %2380 = vperm.xlu0 %2379, %v1359
    %v2381 = vpop.permute.xlu0 %2380
    %2382 = vset.pattern.permute.xlu0 0
    %2383 = vperm.xlu0 %2382, %v1360
    %v2384 = vpop.permute.xlu0 %2383
    %2385 = vset.pattern.permute.xlu0 0
    %2386 = vperm.xlu0 %2385, %v1361
    %v2387 = vpop.permute.xlu0 %2386
    %2388 = vset.pattern.permute.xlu0 0
    %2389 = vperm.xlu0 %2388, %v1362
    %v2390 = vpop.permute.xlu0 %2389
    %2391 = vset.pattern.permute.xlu0 0
    %2392 = vperm.xlu0 %2391, %v1363
    %v2393 = vpop.permute.xlu0 %2392
    %2394 = vset.pattern.permute.xlu0 0
    %2395 = vperm.xlu0 %2394, %v1364
    %v2396 = vpop.permute.xlu0 %2395
    %2397 = vset.pattern.permute.xlu0 0
    %2398 = vperm.xlu0 %2397, %v1365
    %v2399 = vpop.permute.xlu0 %2398
    %2400 = vset.pattern.permute.xlu0 0
    %2401 = vperm.xlu0 %2400, %v1366
    %v2402 = vpop.permute.xlu0 %2401
    %2403 = vset.pattern.permute.xlu0 0
    %2404 = vperm.xlu0 %2403, %v1367
    %v2405 = vpop.permute.xlu0 %2404
    %2406 = vset.pattern.permute.xlu0 0
    %2407 = vperm.xlu0 %2406, %v1368
    %v2408 = vpop.permute.xlu0 %2407
    %2409 = vset.pattern.permute.xlu0 0
    %2410 = vperm.xlu0 %2409, %v1369
    %v2411 = vpop.permute.xlu0 %2410
    %2412 = vset.pattern.permute.xlu0 0
    %2413 = vperm.xlu0 %2412, %v1370
    %v2414 = vpop.permute.xlu0 %2413
    %2415 = vset.pattern.permute.xlu0 0
    %2416 = vperm.xlu0 %2415, %v1371
    %v2417 = vpop.permute.xlu0 %2416
    %2418 = vset.pattern.permute.xlu0 0
    %2419 = vperm.xlu0 %2418, %v1372
    %v2420 = vpop.permute.xlu0 %2419
    %2421 = vset.pattern.permute.xlu0 0
    %2422 = vperm.xlu0 %2421, %v1373
    %v2423 = vpop.permute.xlu0 %2422
    %2424 = vset.pattern.permute.xlu0 0
    %2425 = vperm.xlu0 %2424, %v1374
    %v2426 = vpop.permute.xlu0 %2425
    %2427 = vset.pattern.permute.xlu0 0
    %2428 = vperm.xlu0 %2427, %v1375
    %v2429 = vpop.permute.xlu0 %2428
    %2430 = vset.pattern.permute.xlu0 0
    %2431 = vperm.xlu0 %2430, %v1376
    %v2432 = vpop.permute.xlu0 %2431
    %2433 = vset.pattern.permute.xlu0 0
    %2434 = vperm.xlu0 %2433, %v1377
    %v2435 = vpop.permute.xlu0 %2434
    %2436 = vset.pattern.permute.xlu0 0
    %2437 = vperm.xlu0 %2436, %v1378
    %v2438 = vpop.permute.xlu0 %2437
    %2439 = vset.pattern.permute.xlu0 0
    %2440 = vperm.xlu0 %2439, %v1379
    %v2441 = vpop.permute.xlu0 %2440
    %2442 = vset.pattern.permute.xlu0 0
    %2443 = vperm.xlu0 %2442, %v1380
    %v2444 = vpop.permute.xlu0 %2443
    %2445 = vset.pattern.permute.xlu0 0
    %2446 = vperm.xlu0 %2445, %v1381
    %v2447 = vpop.permute.xlu0 %2446
    %2448 = vset.pattern.permute.xlu0 0
    %2449 = vperm.xlu0 %2448, %v1382
    %v2450 = vpop.permute.xlu0 %2449
    %2451 = vset.pattern.permute.xlu0 0
    %2452 = vperm.xlu0 %2451, %v1383
    %v2453 = vpop.permute.xlu0 %2452
    %2454 = vset.pattern.permute.xlu0 0
    %2455 = vperm.xlu0 %2454, %v1384
    %v2456 = vpop.permute.xlu0 %2455
    %2457 = vset.pattern.permute.xlu0 0
    %2458 = vperm.xlu0 %2457, %v1385
    %v2459 = vpop.permute.xlu0 %2458
    %2460 = vset.pattern.permute.xlu0 0
    %2461 = vperm.xlu0 %2460, %v1386
    %v2462 = vpop.permute.xlu0 %2461
    %2463 = vset.pattern.permute.xlu0 0
    %2464 = vperm.xlu0 %2463, %v1387
    %v2465 = vpop.permute.xlu0 %2464
    %2466 = vset.pattern.permute.xlu0 0
    %2467 = vperm.xlu0 %2466, %v1388
    %v2468 = vpop.permute.xlu0 %2467
    %2469 = vset.pattern.permute.xlu0 0
    %2470 = vperm.xlu0 %2469, %v1389
    %v2471 = vpop.permute.xlu0 %2470
    %2472 = vset.pattern.permute.xlu0 0
    %2473 = vperm.xlu0 %2472, %v1390
    %v2474 = vpop.permute.xlu0 %2473
    %2475 = vset.pattern.permute.xlu0 0
    %2476 = vperm.xlu0 %2475, %v1391
    %v2477 = vpop.permute.xlu0 %2476
    %2478 = vset.pattern.permute.xlu0 0
    %2479 = vperm.xlu0 %2478, %v1392
    %v2480 = vpop.permute.xlu0 %2479
    %2481 = vset.pattern.permute.xlu0 0
    %2482 = vperm.xlu0 %2481, %v1393
    %v2483 = vpop.permute.xlu0 %2482
    %vm2484 = vcmp.eq.s32.totalorder %v2291, %v2294
    %vm2485 = vcmp.eq.s32.totalorder %v2291, %v2297
    %vm2486 = vcmp.eq.s32.totalorder %v2291, %v2300
    %vm2487 = vcmp.eq.s32.totalorder %v2291, %v2303
    %vm2488 = vcmp.eq.s32.totalorder %v2291, %v2306
    %vm2489 = vcmp.eq.s32.totalorder %v2291, %v2309
    %vm2490 = vcmp.eq.s32.totalorder %v2291, %v2312
    %vm2491 = vcmp.eq.s32.totalorder %v2291, %v2315
    %vm2492 = vcmp.eq.s32.totalorder %v2291, %v2318
    %vm2493 = vcmp.eq.s32.totalorder %v2291, %v2321
    %vm2494 = vcmp.eq.s32.totalorder %v2291, %v2324
    %vm2495 = vcmp.eq.s32.totalorder %v2291, %v2327
    %vm2496 = vcmp.eq.s32.totalorder %v2291, %v2330
    %vm2497 = vcmp.eq.s32.totalorder %v2291, %v2333
    %vm2498 = vcmp.eq.s32.totalorder %v2291, %v2336
    %vm2499 = vcmp.eq.s32.totalorder %v2291, %v2339
    %vm2500 = vcmp.eq.s32.totalorder %v2291, %v2342
    %vm2501 = vcmp.eq.s32.totalorder %v2291, %v2345
    %vm2502 = vcmp.eq.s32.totalorder %v2291, %v2348
    %vm2503 = vcmp.eq.s32.totalorder %v2291, %v2351
    %vm2504 = vcmp.eq.s32.totalorder %v2291, %v2354
    %vm2505 = vcmp.eq.s32.totalorder %v2291, %v2357
    %vm2506 = vcmp.eq.s32.totalorder %v2291, %v2360
    %vm2507 = vcmp.eq.s32.totalorder %v2291, %v2363
    %vm2508 = vcmp.eq.s32.totalorder %v2291, %v2366
    %vm2509 = vcmp.eq.s32.totalorder %v2291, %v2369
    %vm2510 = vcmp.eq.s32.totalorder %v2291, %v2372
    %vm2511 = vcmp.eq.s32.totalorder %v2291, %v2375
    %vm2512 = vcmp.eq.s32.totalorder %v2291, %v2378
    %vm2513 = vcmp.eq.s32.totalorder %v2291, %v2381
    %vm2514 = vcmp.eq.s32.totalorder %v2291, %v2384
    %vm2515 = vcmp.eq.s32.totalorder %v2291, %v2387
    %vm2516 = vcmp.eq.s32.totalorder %v2291, %v2390
    %vm2517 = vcmp.eq.s32.totalorder %v2291, %v2393
    %vm2518 = vcmp.eq.s32.totalorder %v2291, %v2396
    %vm2519 = vcmp.eq.s32.totalorder %v2291, %v2399
    %vm2520 = vcmp.eq.s32.totalorder %v2291, %v2402
    %vm2521 = vcmp.eq.s32.totalorder %v2291, %v2405
    %vm2522 = vcmp.eq.s32.totalorder %v2291, %v2408
    %vm2523 = vcmp.eq.s32.totalorder %v2291, %v2411
    %vm2524 = vcmp.eq.s32.totalorder %v2291, %v2414
    %vm2525 = vcmp.eq.s32.totalorder %v2291, %v2417
    %vm2526 = vcmp.eq.s32.totalorder %v2291, %v2420
    %vm2527 = vcmp.eq.s32.totalorder %v2291, %v2423
    %vm2528 = vcmp.eq.s32.totalorder %v2291, %v2426
    %vm2529 = vcmp.eq.s32.totalorder %v2291, %v2429
    %vm2530 = vcmp.eq.s32.totalorder %v2291, %v2432
    %vm2531 = vcmp.eq.s32.totalorder %v2291, %v2435
    %vm2532 = vcmp.eq.s32.totalorder %v2291, %v2438
    %vm2533 = vcmp.eq.s32.totalorder %v2291, %v2441
    %vm2534 = vcmp.eq.s32.totalorder %v2291, %v2444
    %vm2535 = vcmp.eq.s32.totalorder %v2291, %v2447
    %vm2536 = vcmp.eq.s32.totalorder %v2291, %v2450
    %vm2537 = vcmp.eq.s32.totalorder %v2291, %v2453
    %vm2538 = vcmp.eq.s32.totalorder %v2291, %v2456
    %vm2539 = vcmp.eq.s32.totalorder %v2291, %v2459
    %vm2540 = vcmp.eq.s32.totalorder %v2291, %v2462
    %vm2541 = vcmp.eq.s32.totalorder %v2291, %v2465
    %vm2542 = vcmp.eq.s32.totalorder %v2291, %v2468
    %vm2543 = vcmp.eq.s32.totalorder %v2291, %v2471
    %vm2544 = vcmp.eq.s32.totalorder %v2291, %v2474
    %vm2545 = vcmp.eq.s32.totalorder %v2291, %v2477
    %vm2546 = vcmp.eq.s32.totalorder %v2291, %v2480
    %vm2547 = vcmp.eq.s32.totalorder %v2291, %v2483
    %v2548 = vsel %vm2484, %v1266, 0.0
    %v2549 = vsel %vm2485, %v1267, 0.0
    %v2550 = vsel %vm2486, %v1268, 0.0
    %v2551 = vsel %vm2487, %v1269, 0.0
    %v2552 = vsel %vm2488, %v1270, 0.0
    %v2553 = vsel %vm2489, %v1271, 0.0
    %v2554 = vsel %vm2490, %v1272, 0.0
    %v2555 = vsel %vm2491, %v1273, 0.0
    %v2556 = vsel %vm2492, %v1274, 0.0
    %v2557 = vsel %vm2493, %v1275, 0.0
    %v2558 = vsel %vm2494, %v1276, 0.0
    %v2559 = vsel %vm2495, %v1277, 0.0
    %v2560 = vsel %vm2496, %v1278, 0.0
    %v2561 = vsel %vm2497, %v1279, 0.0
    %v2562 = vsel %vm2498, %v1280, 0.0
    %v2563 = vsel %vm2499, %v1281, 0.0
    %v2564 = vsel %vm2500, %v1282, 0.0
    %v2565 = vsel %vm2501, %v1283, 0.0
    %v2566 = vsel %vm2502, %v1284, 0.0
    %v2567 = vsel %vm2503, %v1285, 0.0
    %v2568 = vsel %vm2504, %v1286, 0.0
    %v2569 = vsel %vm2505, %v1287, 0.0
    %v2570 = vsel %vm2506, %v1288, 0.0
    %v2571 = vsel %vm2507, %v1289, 0.0
    %v2572 = vsel %vm2508, %v1290, 0.0
    %v2573 = vsel %vm2509, %v1291, 0.0
    %v2574 = vsel %vm2510, %v1292, 0.0
    %v2575 = vsel %vm2511, %v1293, 0.0
    %v2576 = vsel %vm2512, %v1294, 0.0
    %v2577 = vsel %vm2513, %v1295, 0.0
    %v2578 = vsel %vm2514, %v1296, 0.0
    %v2579 = vsel %vm2515, %v1297, 0.0
    %v2580 = vsel %vm2516, %v1298, 0.0
    %v2581 = vsel %vm2517, %v1299, 0.0
    %v2582 = vsel %vm2518, %v1300, 0.0
    %v2583 = vsel %vm2519, %v1301, 0.0
    %v2584 = vsel %vm2520, %v1302, 0.0
    %v2585 = vsel %vm2521, %v1303, 0.0
    %v2586 = vsel %vm2522, %v1304, 0.0
    %v2587 = vsel %vm2523, %v1305, 0.0
    %v2588 = vsel %vm2524, %v1306, 0.0
    %v2589 = vsel %vm2525, %v1307, 0.0
    %v2590 = vsel %vm2526, %v1308, 0.0
    %v2591 = vsel %vm2527, %v1309, 0.0
    %v2592 = vsel %vm2528, %v1310, 0.0
    %v2593 = vsel %vm2529, %v1311, 0.0
    %v2594 = vsel %vm2530, %v1312, 0.0
    %v2595 = vsel %vm2531, %v1313, 0.0
    %v2596 = vsel %vm2532, %v1314, 0.0
    %v2597 = vsel %vm2533, %v1315, 0.0
    %v2598 = vsel %vm2534, %v1316, 0.0
    %v2599 = vsel %vm2535, %v1317, 0.0
    %v2600 = vsel %vm2536, %v1318, 0.0
    %v2601 = vsel %vm2537, %v1319, 0.0
    %v2602 = vsel %vm2538, %v1320, 0.0
    %v2603 = vsel %vm2539, %v1321, 0.0
    %v2604 = vsel %vm2540, %v1322, 0.0
    %v2605 = vsel %vm2541, %v1323, 0.0
    %v2606 = vsel %vm2542, %v1324, 0.0
    %v2607 = vsel %vm2543, %v1325, 0.0
    %v2608 = vsel %vm2544, %v1326, 0.0
    %v2609 = vsel %vm2545, %v1327, 0.0
    %v2610 = vsel %vm2546, %v1328, 0.0
    %v2611 = vsel %vm2547, %v1329, 0.0
    %v2612 = vsel %vm354, %v2548, 0.0
    %2613 = vadd.xlane.f32.xlu0 %v2612
    %v2614 = vpop.xlane.xlu0 %2613
    %v2615 = vsel %vm354, %v2549, 0.0
    %2616 = vadd.xlane.f32.xlu0 %v2615
    %v2617 = vpop.xlane.xlu0 %2616
    %v2618 = vsel %vm354, %v2550, 0.0
    %2619 = vadd.xlane.f32.xlu0 %v2618
    %v2620 = vpop.xlane.xlu0 %2619
    %v2621 = vsel %vm354, %v2551, 0.0
    %2622 = vadd.xlane.f32.xlu0 %v2621
    %v2623 = vpop.xlane.xlu0 %2622
    %v2624 = vsel %vm354, %v2552, 0.0
    %2625 = vadd.xlane.f32.xlu0 %v2624
    %v2626 = vpop.xlane.xlu0 %2625
    %v2627 = vsel %vm354, %v2553, 0.0
    %2628 = vadd.xlane.f32.xlu0 %v2627
    %v2629 = vpop.xlane.xlu0 %2628
    %v2630 = vsel %vm354, %v2554, 0.0
    %2631 = vadd.xlane.f32.xlu0 %v2630
    %v2632 = vpop.xlane.xlu0 %2631
    %v2633 = vsel %vm354, %v2555, 0.0
    %2634 = vadd.xlane.f32.xlu0 %v2633
    %v2635 = vpop.xlane.xlu0 %2634
    %v2636 = vsel %vm354, %v2556, 0.0
    %2637 = vadd.xlane.f32.xlu0 %v2636
    %v2638 = vpop.xlane.xlu0 %2637
    %v2639 = vsel %vm354, %v2557, 0.0
    %2640 = vadd.xlane.f32.xlu0 %v2639
    %v2641 = vpop.xlane.xlu0 %2640
    %v2642 = vsel %vm354, %v2558, 0.0
    %2643 = vadd.xlane.f32.xlu0 %v2642
    %v2644 = vpop.xlane.xlu0 %2643
    %v2645 = vsel %vm354, %v2559, 0.0
    %2646 = vadd.xlane.f32.xlu0 %v2645
    %v2647 = vpop.xlane.xlu0 %2646
    %v2648 = vsel %vm354, %v2560, 0.0
    %2649 = vadd.xlane.f32.xlu0 %v2648
    %v2650 = vpop.xlane.xlu0 %2649
    %v2651 = vsel %vm354, %v2561, 0.0
    %2652 = vadd.xlane.f32.xlu0 %v2651
    %v2653 = vpop.xlane.xlu0 %2652
    %v2654 = vsel %vm354, %v2562, 0.0
    %2655 = vadd.xlane.f32.xlu0 %v2654
    %v2656 = vpop.xlane.xlu0 %2655
    %v2657 = vsel %vm354, %v2563, 0.0
    %2658 = vadd.xlane.f32.xlu0 %v2657
    %v2659 = vpop.xlane.xlu0 %2658
    %v2660 = vsel %vm354, %v2564, 0.0
    %2661 = vadd.xlane.f32.xlu0 %v2660
    %v2662 = vpop.xlane.xlu0 %2661
    %v2663 = vsel %vm354, %v2565, 0.0
    %2664 = vadd.xlane.f32.xlu0 %v2663
    %v2665 = vpop.xlane.xlu0 %2664
    %v2666 = vsel %vm354, %v2566, 0.0
    %2667 = vadd.xlane.f32.xlu0 %v2666
    %v2668 = vpop.xlane.xlu0 %2667
    %v2669 = vsel %vm354, %v2567, 0.0
    %2670 = vadd.xlane.f32.xlu0 %v2669
    %v2671 = vpop.xlane.xlu0 %2670
    %v2672 = vsel %vm354, %v2568, 0.0
    %2673 = vadd.xlane.f32.xlu0 %v2672
    %v2674 = vpop.xlane.xlu0 %2673
    %v2675 = vsel %vm354, %v2569, 0.0
    %2676 = vadd.xlane.f32.xlu0 %v2675
    %v2677 = vpop.xlane.xlu0 %2676
    %v2678 = vsel %vm354, %v2570, 0.0
    %2679 = vadd.xlane.f32.xlu0 %v2678
    %v2680 = vpop.xlane.xlu0 %2679
    %v2681 = vsel %vm354, %v2571, 0.0
    %2682 = vadd.xlane.f32.xlu0 %v2681
    %v2683 = vpop.xlane.xlu0 %2682
    %v2684 = vsel %vm354, %v2572, 0.0
    %2685 = vadd.xlane.f32.xlu0 %v2684
    %v2686 = vpop.xlane.xlu0 %2685
    %v2687 = vsel %vm354, %v2573, 0.0
    %2688 = vadd.xlane.f32.xlu0 %v2687
    %v2689 = vpop.xlane.xlu0 %2688
    %v2690 = vsel %vm354, %v2574, 0.0
    %2691 = vadd.xlane.f32.xlu0 %v2690
    %v2692 = vpop.xlane.xlu0 %2691
    %v2693 = vsel %vm354, %v2575, 0.0
    %2694 = vadd.xlane.f32.xlu0 %v2693
    %v2695 = vpop.xlane.xlu0 %2694
    %v2696 = vsel %vm354, %v2576, 0.0
    %2697 = vadd.xlane.f32.xlu0 %v2696
    %v2698 = vpop.xlane.xlu0 %2697
    %v2699 = vsel %vm354, %v2577, 0.0
    %2700 = vadd.xlane.f32.xlu0 %v2699
    %v2701 = vpop.xlane.xlu0 %2700
    %v2702 = vsel %vm354, %v2578, 0.0
    %2703 = vadd.xlane.f32.xlu0 %v2702
    %v2704 = vpop.xlane.xlu0 %2703
    %v2705 = vsel %vm354, %v2579, 0.0
    %2706 = vadd.xlane.f32.xlu0 %v2705
    %v2707 = vpop.xlane.xlu0 %2706
    %v2708 = vsel %vm354, %v2580, 0.0
    %2709 = vadd.xlane.f32.xlu0 %v2708
    %v2710 = vpop.xlane.xlu0 %2709
    %v2711 = vsel %vm354, %v2581, 0.0
    %2712 = vadd.xlane.f32.xlu0 %v2711
    %v2713 = vpop.xlane.xlu0 %2712
    %v2714 = vsel %vm354, %v2582, 0.0
    %2715 = vadd.xlane.f32.xlu0 %v2714
    %v2716 = vpop.xlane.xlu0 %2715
    %v2717 = vsel %vm354, %v2583, 0.0
    %2718 = vadd.xlane.f32.xlu0 %v2717
    %v2719 = vpop.xlane.xlu0 %2718
    %v2720 = vsel %vm354, %v2584, 0.0
    %2721 = vadd.xlane.f32.xlu0 %v2720
    %v2722 = vpop.xlane.xlu0 %2721
    %v2723 = vsel %vm354, %v2585, 0.0
    %2724 = vadd.xlane.f32.xlu0 %v2723
    %v2725 = vpop.xlane.xlu0 %2724
    %v2726 = vsel %vm354, %v2586, 0.0
    %2727 = vadd.xlane.f32.xlu0 %v2726
    %v2728 = vpop.xlane.xlu0 %2727
    %v2729 = vsel %vm354, %v2587, 0.0
    %2730 = vadd.xlane.f32.xlu0 %v2729
    %v2731 = vpop.xlane.xlu0 %2730
    %v2732 = vsel %vm354, %v2588, 0.0
    %2733 = vadd.xlane.f32.xlu0 %v2732
    %v2734 = vpop.xlane.xlu0 %2733
    %v2735 = vsel %vm354, %v2589, 0.0
    %2736 = vadd.xlane.f32.xlu0 %v2735
    %v2737 = vpop.xlane.xlu0 %2736
    %v2738 = vsel %vm354, %v2590, 0.0
    %2739 = vadd.xlane.f32.xlu0 %v2738
    %v2740 = vpop.xlane.xlu0 %2739
    %v2741 = vsel %vm354, %v2591, 0.0
    %2742 = vadd.xlane.f32.xlu0 %v2741
    %v2743 = vpop.xlane.xlu0 %2742
    %v2744 = vsel %vm354, %v2592, 0.0
    %2745 = vadd.xlane.f32.xlu0 %v2744
    %v2746 = vpop.xlane.xlu0 %2745
    %v2747 = vsel %vm354, %v2593, 0.0
    %2748 = vadd.xlane.f32.xlu0 %v2747
    %v2749 = vpop.xlane.xlu0 %2748
    %v2750 = vsel %vm354, %v2594, 0.0
    %2751 = vadd.xlane.f32.xlu0 %v2750
    %v2752 = vpop.xlane.xlu0 %2751
    %v2753 = vsel %vm354, %v2595, 0.0
    %2754 = vadd.xlane.f32.xlu0 %v2753
    %v2755 = vpop.xlane.xlu0 %2754
    %v2756 = vsel %vm354, %v2596, 0.0
    %2757 = vadd.xlane.f32.xlu0 %v2756
    %v2758 = vpop.xlane.xlu0 %2757
    %v2759 = vsel %vm354, %v2597, 0.0
    %2760 = vadd.xlane.f32.xlu0 %v2759
    %v2761 = vpop.xlane.xlu0 %2760
    %v2762 = vsel %vm354, %v2598, 0.0
    %2763 = vadd.xlane.f32.xlu0 %v2762
    %v2764 = vpop.xlane.xlu0 %2763
    %v2765 = vsel %vm354, %v2599, 0.0
    %2766 = vadd.xlane.f32.xlu0 %v2765
    %v2767 = vpop.xlane.xlu0 %2766
    %v2768 = vsel %vm354, %v2600, 0.0
    %2769 = vadd.xlane.f32.xlu0 %v2768
    %v2770 = vpop.xlane.xlu0 %2769
    %v2771 = vsel %vm354, %v2601, 0.0
    %2772 = vadd.xlane.f32.xlu0 %v2771
    %v2773 = vpop.xlane.xlu0 %2772
    %v2774 = vsel %vm354, %v2602, 0.0
    %2775 = vadd.xlane.f32.xlu0 %v2774
    %v2776 = vpop.xlane.xlu0 %2775
    %v2777 = vsel %vm354, %v2603, 0.0
    %2778 = vadd.xlane.f32.xlu0 %v2777
    %v2779 = vpop.xlane.xlu0 %2778
    %v2780 = vsel %vm354, %v2604, 0.0
    %2781 = vadd.xlane.f32.xlu0 %v2780
    %v2782 = vpop.xlane.xlu0 %2781
    %v2783 = vsel %vm354, %v2605, 0.0
    %2784 = vadd.xlane.f32.xlu0 %v2783
    %v2785 = vpop.xlane.xlu0 %2784
    %v2786 = vsel %vm354, %v2606, 0.0
    %2787 = vadd.xlane.f32.xlu0 %v2786
    %v2788 = vpop.xlane.xlu0 %2787
    %v2789 = vsel %vm354, %v2607, 0.0
    %2790 = vadd.xlane.f32.xlu0 %v2789
    %v2791 = vpop.xlane.xlu0 %2790
    %v2792 = vsel %vm354, %v2608, 0.0
    %2793 = vadd.xlane.f32.xlu0 %v2792
    %v2794 = vpop.xlane.xlu0 %2793
    %v2795 = vsel %vm354, %v2609, 0.0
    %2796 = vadd.xlane.f32.xlu0 %v2795
    %v2797 = vpop.xlane.xlu0 %2796
    %v2798 = vsel %vm354, %v2610, 0.0
    %2799 = vadd.xlane.f32.xlu0 %v2798
    %v2800 = vpop.xlane.xlu0 %2799
    %v2801 = vsel %vm354, %v2611, 0.0
    %2802 = vadd.xlane.f32.xlu0 %v2801
    %v2803 = vpop.xlane.xlu0 %2802
    %v2804 = vsub.f32 %v2226, %v2614
    %v2805 = vsub.f32 %v2227, %v2617
    %v2806 = vsub.f32 %v2228, %v2620
    %v2807 = vsub.f32 %v2229, %v2623
    %v2808 = vsub.f32 %v2230, %v2626
    %v2809 = vsub.f32 %v2231, %v2629
    %v2810 = vsub.f32 %v2232, %v2632
    %v2811 = vsub.f32 %v2233, %v2635
    %v2812 = vsub.f32 %v2234, %v2638
    %v2813 = vsub.f32 %v2235, %v2641
    %v2814 = vsub.f32 %v2236, %v2644
    %v2815 = vsub.f32 %v2237, %v2647
    %v2816 = vsub.f32 %v2238, %v2650
    %v2817 = vsub.f32 %v2239, %v2653
    %v2818 = vsub.f32 %v2240, %v2656
    %v2819 = vsub.f32 %v2241, %v2659
    %v2820 = vsub.f32 %v2242, %v2662
    %v2821 = vsub.f32 %v2243, %v2665
    %v2822 = vsub.f32 %v2244, %v2668
    %v2823 = vsub.f32 %v2245, %v2671
    %v2824 = vsub.f32 %v2246, %v2674
    %v2825 = vsub.f32 %v2247, %v2677
    %v2826 = vsub.f32 %v2248, %v2680
    %v2827 = vsub.f32 %v2249, %v2683
    %v2828 = vsub.f32 %v2250, %v2686
    %v2829 = vsub.f32 %v2251, %v2689
    %v2830 = vsub.f32 %v2252, %v2692
    %v2831 = vsub.f32 %v2253, %v2695
    %v2832 = vsub.f32 %v2254, %v2698
    %v2833 = vsub.f32 %v2255, %v2701
    %v2834 = vsub.f32 %v2256, %v2704
    %v2835 = vsub.f32 %v2257, %v2707
    %v2836 = vsub.f32 %v2258, %v2710
    %v2837 = vsub.f32 %v2259, %v2713
    %v2838 = vsub.f32 %v2260, %v2716
    %v2839 = vsub.f32 %v2261, %v2719
    %v2840 = vsub.f32 %v2262, %v2722
    %v2841 = vsub.f32 %v2263, %v2725
    %v2842 = vsub.f32 %v2264, %v2728
    %v2843 = vsub.f32 %v2265, %v2731
    %v2844 = vsub.f32 %v2266, %v2734
    %v2845 = vsub.f32 %v2267, %v2737
    %v2846 = vsub.f32 %v2268, %v2740
    %v2847 = vsub.f32 %v2269, %v2743
    %v2848 = vsub.f32 %v2270, %v2746
    %v2849 = vsub.f32 %v2271, %v2749
    %v2850 = vsub.f32 %v2272, %v2752
    %v2851 = vsub.f32 %v2273, %v2755
    %v2852 = vsub.f32 %v2274, %v2758
    %v2853 = vsub.f32 %v2275, %v2761
    %v2854 = vsub.f32 %v2276, %v2764
    %v2855 = vsub.f32 %v2277, %v2767
    %v2856 = vsub.f32 %v2278, %v2770
    %v2857 = vsub.f32 %v2279, %v2773
    %v2858 = vsub.f32 %v2280, %v2776
    %v2859 = vsub.f32 %v2281, %v2779
    %v2860 = vsub.f32 %v2282, %v2782
    %v2861 = vsub.f32 %v2283, %v2785
    %v2862 = vsub.f32 %v2284, %v2788
    %v2863 = vsub.f32 %v2285, %v2791
    %v2864 = vsub.f32 %v2286, %v2794
    %v2865 = vsub.f32 %v2287, %v2797
    %v2866 = vsub.f32 %v2288, %v2800
    %v2867 = vsub.f32 %v2289, %v2803
    %v2868 = vsel %vm1458, %v2804, 0.0
    %v2869 = vsel %vm1459, %v2805, 0.0
    %v2870 = vsel %vm1460, %v2806, 0.0
    %v2871 = vsel %vm1461, %v2807, 0.0
    %v2872 = vsel %vm1462, %v2808, 0.0
    %v2873 = vsel %vm1463, %v2809, 0.0
    %v2874 = vsel %vm1464, %v2810, 0.0
    %v2875 = vsel %vm1465, %v2811, 0.0
    %v2876 = vsel %vm1466, %v2812, 0.0
    %v2877 = vsel %vm1467, %v2813, 0.0
    %v2878 = vsel %vm1468, %v2814, 0.0
    %v2879 = vsel %vm1469, %v2815, 0.0
    %v2880 = vsel %vm1470, %v2816, 0.0
    %v2881 = vsel %vm1471, %v2817, 0.0
    %v2882 = vsel %vm1472, %v2818, 0.0
    %v2883 = vsel %vm1473, %v2819, 0.0
    %v2884 = vsel %vm1474, %v2820, 0.0
    %v2885 = vsel %vm1475, %v2821, 0.0
    %v2886 = vsel %vm1476, %v2822, 0.0
    %v2887 = vsel %vm1477, %v2823, 0.0
    %v2888 = vsel %vm1478, %v2824, 0.0
    %v2889 = vsel %vm1479, %v2825, 0.0
    %v2890 = vsel %vm1480, %v2826, 0.0
    %v2891 = vsel %vm1481, %v2827, 0.0
    %v2892 = vsel %vm1482, %v2828, 0.0
    %v2893 = vsel %vm1483, %v2829, 0.0
    %v2894 = vsel %vm1484, %v2830, 0.0
    %v2895 = vsel %vm1485, %v2831, 0.0
    %v2896 = vsel %vm1486, %v2832, 0.0
    %v2897 = vsel %vm1487, %v2833, 0.0
    %v2898 = vsel %vm1488, %v2834, 0.0
    %v2899 = vsel %vm1489, %v2835, 0.0
    %v2900 = vsel %vm1490, %v2836, 0.0
    %v2901 = vsel %vm1491, %v2837, 0.0
    %v2902 = vsel %vm1492, %v2838, 0.0
    %v2903 = vsel %vm1493, %v2839, 0.0
    %v2904 = vsel %vm1494, %v2840, 0.0
    %v2905 = vsel %vm1495, %v2841, 0.0
    %v2906 = vsel %vm1496, %v2842, 0.0
    %v2907 = vsel %vm1497, %v2843, 0.0
    %v2908 = vsel %vm1498, %v2844, 0.0
    %v2909 = vsel %vm1499, %v2845, 0.0
    %v2910 = vsel %vm1500, %v2846, 0.0
    %v2911 = vsel %vm1501, %v2847, 0.0
    %v2912 = vsel %vm1502, %v2848, 0.0
    %v2913 = vsel %vm1503, %v2849, 0.0
    %v2914 = vsel %vm1504, %v2850, 0.0
    %v2915 = vsel %vm1505, %v2851, 0.0
    %v2916 = vsel %vm1506, %v2852, 0.0
    %v2917 = vsel %vm1507, %v2853, 0.0
    %v2918 = vsel %vm1508, %v2854, 0.0
    %v2919 = vsel %vm1509, %v2855, 0.0
    %v2920 = vsel %vm1510, %v2856, 0.0
    %v2921 = vsel %vm1511, %v2857, 0.0
    %v2922 = vsel %vm1512, %v2858, 0.0
    %v2923 = vsel %vm1513, %v2859, 0.0
    %v2924 = vsel %vm1514, %v2860, 0.0
    %v2925 = vsel %vm1515, %v2861, 0.0
    %v2926 = vsel %vm1516, %v2862, 0.0
    %v2927 = vsel %vm1517, %v2863, 0.0
    %v2928 = vsel %vm1518, %v2864, 0.0
    %v2929 = vsel %vm1519, %v2865, 0.0
    %v2930 = vsel %vm1520, %v2866, 0.0
    %v2931 = vsel %vm1521, %v2867, 0.0
    %v2932 = vld [vmem:[#allocation2] sm:$0xff]
    %vm2933 = vcmask 7168
    %v2934 = vsel %vm2933, %v2868, 0.0
    %v2935 = vsel %vm2933, %v2869, 0.0
    %v2936 = vadd.f32 %v2934, %v2935
    %v2937 = vsel %vm2933, %v2870, 0.0
    %v2938 = vadd.f32 %v2936, %v2937
    %v2939 = vsel %vm2933, %v2871, 0.0
    %v2940 = vadd.f32 %v2938, %v2939
    %v2941 = vsel %vm2933, %v2872, 0.0
    %v2942 = vadd.f32 %v2940, %v2941
    %v2943 = vsel %vm2933, %v2873, 0.0
    %v2944 = vadd.f32 %v2942, %v2943
    %v2945 = vsel %vm2933, %v2874, 0.0
    %v2946 = vadd.f32 %v2944, %v2945
    %v2947 = vsel %vm2933, %v2875, 0.0
    %v2948 = vadd.f32 %v2946, %v2947
    %v2949 = vsel %vm2933, %v2876, 0.0
    %v2950 = vadd.f32 %v2948, %v2949
    %v2951 = vsel %vm2933, %v2877, 0.0
    %v2952 = vadd.f32 %v2950, %v2951
    %v2953 = vsel %vm2933, %v2878, 0.0
    %v2954 = vadd.f32 %v2952, %v2953
    %v2955 = vsel %vm2933, %v2879, 0.0
    %v2956 = vadd.f32 %v2954, %v2955
    %v2957 = vsel %vm2933, %v2880, 0.0
    %v2958 = vadd.f32 %v2956, %v2957
    %v2959 = vsel %vm2933, %v2881, 0.0
    %v2960 = vadd.f32 %v2958, %v2959
    %v2961 = vsel %vm2933, %v2882, 0.0
    %v2962 = vadd.f32 %v2960, %v2961
    %v2963 = vsel %vm2933, %v2883, 0.0
    %v2964 = vadd.f32 %v2962, %v2963
    %v2965 = vsel %vm2933, %v2884, 0.0
    %v2966 = vadd.f32 %v2964, %v2965
    %v2967 = vsel %vm2933, %v2885, 0.0
    %v2968 = vadd.f32 %v2966, %v2967
    %v2969 = vsel %vm2933, %v2886, 0.0
    %v2970 = vadd.f32 %v2968, %v2969
    %v2971 = vsel %vm2933, %v2887, 0.0
    %v2972 = vadd.f32 %v2970, %v2971
    %v2973 = vsel %vm2933, %v2888, 0.0
    %v2974 = vadd.f32 %v2972, %v2973
    %v2975 = vsel %vm2933, %v2889, 0.0
    %v2976 = vadd.f32 %v2974, %v2975
    %v2977 = vsel %vm2933, %v2890, 0.0
    %v2978 = vadd.f32 %v2976, %v2977
    %v2979 = vsel %vm2933, %v2891, 0.0
    %v2980 = vadd.f32 %v2978, %v2979
    %v2981 = vsel %vm2933, %v2892, 0.0
    %v2982 = vadd.f32 %v2980, %v2981
    %v2983 = vsel %vm2933, %v2893, 0.0
    %v2984 = vadd.f32 %v2982, %v2983
    %v2985 = vsel %vm2933, %v2894, 0.0
    %v2986 = vadd.f32 %v2984, %v2985
    %v2987 = vsel %vm2933, %v2895, 0.0
    %v2988 = vadd.f32 %v2986, %v2987
    %v2989 = vsel %vm2933, %v2896, 0.0
    %v2990 = vadd.f32 %v2988, %v2989
    %v2991 = vsel %vm2933, %v2897, 0.0
    %v2992 = vadd.f32 %v2990, %v2991
    %v2993 = vsel %vm2933, %v2898, 0.0
    %v2994 = vadd.f32 %v2992, %v2993
    %v2995 = vsel %vm2933, %v2899, 0.0
    %v2996 = vadd.f32 %v2994, %v2995
    %v2997 = vsel %vm2933, %v2900, 0.0
    %v2998 = vadd.f32 %v2996, %v2997
    %v2999 = vsel %vm2933, %v2901, 0.0
    %v3000 = vadd.f32 %v2998, %v2999
    %v3001 = vsel %vm2933, %v2902, 0.0
    %v3002 = vadd.f32 %v3000, %v3001
    %v3003 = vsel %vm2933, %v2903, 0.0
    %v3004 = vadd.f32 %v3002, %v3003
    %v3005 = vsel %vm2933, %v2904, 0.0
    %v3006 = vadd.f32 %v3004, %v3005
    %v3007 = vsel %vm2933, %v2905, 0.0
    %v3008 = vadd.f32 %v3006, %v3007
    %v3009 = vsel %vm2933, %v2906, 0.0
    %v3010 = vadd.f32 %v3008, %v3009
    %v3011 = vsel %vm2933, %v2907, 0.0
    %v3012 = vadd.f32 %v3010, %v3011
    %v3013 = vsel %vm2933, %v2908, 0.0
    %v3014 = vadd.f32 %v3012, %v3013
    %v3015 = vsel %vm2933, %v2909, 0.0
    %v3016 = vadd.f32 %v3014, %v3015
    %v3017 = vsel %vm2933, %v2910, 0.0
    %v3018 = vadd.f32 %v3016, %v3017
    %v3019 = vsel %vm2933, %v2911, 0.0
    %v3020 = vadd.f32 %v3018, %v3019
    %v3021 = vsel %vm2933, %v2912, 0.0
    %v3022 = vadd.f32 %v3020, %v3021
    %v3023 = vsel %vm2933, %v2913, 0.0
    %v3024 = vadd.f32 %v3022, %v3023
    %v3025 = vsel %vm2933, %v2914, 0.0
    %v3026 = vadd.f32 %v3024, %v3025
    %v3027 = vsel %vm2933, %v2915, 0.0
    %v3028 = vadd.f32 %v3026, %v3027
    %v3029 = vsel %vm2933, %v2916, 0.0
    %v3030 = vadd.f32 %v3028, %v3029
    %v3031 = vsel %vm2933, %v2917, 0.0
    %v3032 = vadd.f32 %v3030, %v3031
    %v3033 = vsel %vm2933, %v2918, 0.0
    %v3034 = vadd.f32 %v3032, %v3033
    %v3035 = vsel %vm2933, %v2919, 0.0
    %v3036 = vadd.f32 %v3034, %v3035
    %v3037 = vsel %vm2933, %v2920, 0.0
    %v3038 = vadd.f32 %v3036, %v3037
    %v3039 = vsel %vm2933, %v2921, 0.0
    %v3040 = vadd.f32 %v3038, %v3039
    %v3041 = vsel %vm2933, %v2922, 0.0
    %v3042 = vadd.f32 %v3040, %v3041
    %v3043 = vsel %vm2933, %v2923, 0.0
    %v3044 = vadd.f32 %v3042, %v3043
    %v3045 = vsel %vm2933, %v2924, 0.0
    %v3046 = vadd.f32 %v3044, %v3045
    %v3047 = vsel %vm2933, %v2925, 0.0
    %v3048 = vadd.f32 %v3046, %v3047
    %v3049 = vsel %vm2933, %v2926, 0.0
    %v3050 = vadd.f32 %v3048, %v3049
    %v3051 = vsel %vm2933, %v2927, 0.0
    %v3052 = vadd.f32 %v3050, %v3051
    %v3053 = vsel %vm2933, %v2928, 0.0
    %v3054 = vadd.f32 %v3052, %v3053
    %v3055 = vsel %vm2933, %v2929, 0.0
    %v3056 = vadd.f32 %v3054, %v3055
    %v3057 = vsel %vm2933, %v2930, 0.0
    %v3058 = vadd.f32 %v3056, %v3057
    %v3059 = vsel %vm2933, %v2931, 0.0
    %v3060 = vadd.f32 %v3058, %v3059
    %3061 = vadd.xlane.f32.xlu0 %v3060
    %v3062 = vpop.xlane.xlu0 %3061
    %v3063 = vrot.slane %v3062, 4
    %v3064 = vadd.f32 %v3062, %v3063
    %v3065 = vrot.slane %v3064, 2
    %v3066 = vadd.f32 %v3064, %v3065
    %v3067 = vrot.slane %v3066, 1
    %v3068 = vadd.f32 %v3066, %v3067
    %s3069 = vtos %v3068
    %v3070 = vstv %s3069
    %v3071 = vadd.f32 %v2932, %v3070
    %3072 = vst [vmem:[#allocation2] sm:$0xff] %v3071
    %v3073 = vld [vmem:[#allocation4] sm:$0xff]
    %v3074 = vsel %vm1458, 1, 0
    %v3075 = vsel %vm1459, 1, 0
    %v3076 = vsel %vm1460, 1, 0
    %v3077 = vsel %vm1461, 1, 0
    %v3078 = vsel %vm1462, 1, 0
    %v3079 = vsel %vm1463, 1, 0
    %v3080 = vsel %vm1464, 1, 0
    %v3081 = vsel %vm1465, 1, 0
    %v3082 = vsel %vm1466, 1, 0
    %v3083 = vsel %vm1467, 1, 0
    %v3084 = vsel %vm1468, 1, 0
    %v3085 = vsel %vm1469, 1, 0
    %v3086 = vsel %vm1470, 1, 0
    %v3087 = vsel %vm1471, 1, 0
    %v3088 = vsel %vm1472, 1, 0
    %v3089 = vsel %vm1473, 1, 0
    %v3090 = vsel %vm1474, 1, 0
    %v3091 = vsel %vm1475, 1, 0
    %v3092 = vsel %vm1476, 1, 0
    %v3093 = vsel %vm1477, 1, 0
    %v3094 = vsel %vm1478, 1, 0
    %v3095 = vsel %vm1479, 1, 0
    %v3096 = vsel %vm1480, 1, 0
    %v3097 = vsel %vm1481, 1, 0
    %v3098 = vsel %vm1482, 1, 0
    %v3099 = vsel %vm1483, 1, 0
    %v3100 = vsel %vm1484, 1, 0
    %v3101 = vsel %vm1485, 1, 0
    %v3102 = vsel %vm1486, 1, 0
    %v3103 = vsel %vm1487, 1, 0
    %v3104 = vsel %vm1488, 1, 0
    %v3105 = vsel %vm1489, 1, 0
    %v3106 = vsel %vm1490, 1, 0
    %v3107 = vsel %vm1491, 1, 0
    %v3108 = vsel %vm1492, 1, 0
    %v3109 = vsel %vm1493, 1, 0
    %v3110 = vsel %vm1494, 1, 0
    %v3111 = vsel %vm1495, 1, 0
    %v3112 = vsel %vm1496, 1, 0
    %v3113 = vsel %vm1497, 1, 0
    %v3114 = vsel %vm1498, 1, 0
    %v3115 = vsel %vm1499, 1, 0
    %v3116 = vsel %vm1500, 1, 0
    %v3117 = vsel %vm1501, 1, 0
    %v3118 = vsel %vm1502, 1, 0
    %v3119 = vsel %vm1503, 1, 0
    %v3120 = vsel %vm1504, 1, 0
    %v3121 = vsel %vm1505, 1, 0
    %v3122 = vsel %vm1506, 1, 0
    %v3123 = vsel %vm1507, 1, 0
    %v3124 = vsel %vm1508, 1, 0
    %v3125 = vsel %vm1509, 1, 0
    %v3126 = vsel %vm1510, 1, 0
    %v3127 = vsel %vm1511, 1, 0
    %v3128 = vsel %vm1512, 1, 0
    %v3129 = vsel %vm1513, 1, 0
    %v3130 = vsel %vm1514, 1, 0
    %v3131 = vsel %vm1515, 1, 0
    %v3132 = vsel %vm1516, 1, 0
    %v3133 = vsel %vm1517, 1, 0
    %v3134 = vsel %vm1518, 1, 0
    %v3135 = vsel %vm1519, 1, 0
    %v3136 = vsel %vm1520, 1, 0
    %v3137 = vsel %vm1521, 1, 0
    %v3138 = vcvt.s32.f32 %v3074
    %v3139 = vcvt.s32.f32 %v3075
    %v3140 = vcvt.s32.f32 %v3076
    %v3141 = vcvt.s32.f32 %v3077
    %v3142 = vcvt.s32.f32 %v3078
    %v3143 = vcvt.s32.f32 %v3079
    %v3144 = vcvt.s32.f32 %v3080
    %v3145 = vcvt.s32.f32 %v3081
    %v3146 = vcvt.s32.f32 %v3082
    %v3147 = vcvt.s32.f32 %v3083
    %v3148 = vcvt.s32.f32 %v3084
    %v3149 = vcvt.s32.f32 %v3085
    %v3150 = vcvt.s32.f32 %v3086
    %v3151 = vcvt.s32.f32 %v3087
    %v3152 = vcvt.s32.f32 %v3088
    %v3153 = vcvt.s32.f32 %v3089
    %v3154 = vcvt.s32.f32 %v3090
    %v3155 = vcvt.s32.f32 %v3091
    %v3156 = vcvt.s32.f32 %v3092
    %v3157 = vcvt.s32.f32 %v3093
    %v3158 = vcvt.s32.f32 %v3094
    %v3159 = vcvt.s32.f32 %v3095
    %v3160 = vcvt.s32.f32 %v3096
    %v3161 = vcvt.s32.f32 %v3097
    %v3162 = vcvt.s32.f32 %v3098
    %v3163 = vcvt.s32.f32 %v3099
    %v3164 = vcvt.s32.f32 %v3100
    %v3165 = vcvt.s32.f32 %v3101
    %v3166 = vcvt.s32.f32 %v3102
    %v3167 = vcvt.s32.f32 %v3103
    %v3168 = vcvt.s32.f32 %v3104
    %v3169 = vcvt.s32.f32 %v3105
    %v3170 = vcvt.s32.f32 %v3106
    %v3171 = vcvt.s32.f32 %v3107
    %v3172 = vcvt.s32.f32 %v3108
    %v3173 = vcvt.s32.f32 %v3109
    %v3174 = vcvt.s32.f32 %v3110
    %v3175 = vcvt.s32.f32 %v3111
    %v3176 = vcvt.s32.f32 %v3112
    %v3177 = vcvt.s32.f32 %v3113
    %v3178 = vcvt.s32.f32 %v3114
    %v3179 = vcvt.s32.f32 %v3115
    %v3180 = vcvt.s32.f32 %v3116
    %v3181 = vcvt.s32.f32 %v3117
    %v3182 = vcvt.s32.f32 %v3118
    %v3183 = vcvt.s32.f32 %v3119
    %v3184 = vcvt.s32.f32 %v3120
    %v3185 = vcvt.s32.f32 %v3121
    %v3186 = vcvt.s32.f32 %v3122
    %v3187 = vcvt.s32.f32 %v3123
    %v3188 = vcvt.s32.f32 %v3124
    %v3189 = vcvt.s32.f32 %v3125
    %v3190 = vcvt.s32.f32 %v3126
    %v3191 = vcvt.s32.f32 %v3127
    %v3192 = vcvt.s32.f32 %v3128
    %v3193 = vcvt.s32.f32 %v3129
    %v3194 = vcvt.s32.f32 %v3130
    %v3195 = vcvt.s32.f32 %v3131
    %v3196 = vcvt.s32.f32 %v3132
    %v3197 = vcvt.s32.f32 %v3133
    %v3198 = vcvt.s32.f32 %v3134
    %v3199 = vcvt.s32.f32 %v3135
    %v3200 = vcvt.s32.f32 %v3136
    %v3201 = vcvt.s32.f32 %v3137
    %v3202 = vsel %vm2933, %v3138, 0.0
    %v3203 = vsel %vm2933, %v3139, 0.0
    %v3204 = vadd.f32 %v3202, %v3203
    %v3205 = vsel %vm2933, %v3140, 0.0
    %v3206 = vadd.f32 %v3204, %v3205
    %v3207 = vsel %vm2933, %v3141, 0.0
    %v3208 = vadd.f32 %v3206, %v3207
    %v3209 = vsel %vm2933, %v3142, 0.0
    %v3210 = vadd.f32 %v3208, %v3209
    %v3211 = vsel %vm2933, %v3143, 0.0
    %v3212 = vadd.f32 %v3210, %v3211
    %v3213 = vsel %vm2933, %v3144, 0.0
    %v3214 = vadd.f32 %v3212, %v3213
    %v3215 = vsel %vm2933, %v3145, 0.0
    %v3216 = vadd.f32 %v3214, %v3215
    %v3217 = vsel %vm2933, %v3146, 0.0
    %v3218 = vadd.f32 %v3216, %v3217
    %v3219 = vsel %vm2933, %v3147, 0.0
    %v3220 = vadd.f32 %v3218, %v3219
    %v3221 = vsel %vm2933, %v3148, 0.0
    %v3222 = vadd.f32 %v3220, %v3221
    %v3223 = vsel %vm2933, %v3149, 0.0
    %v3224 = vadd.f32 %v3222, %v3223
    %v3225 = vsel %vm2933, %v3150, 0.0
    %v3226 = vadd.f32 %v3224, %v3225
    %v3227 = vsel %vm2933, %v3151, 0.0
    %v3228 = vadd.f32 %v3226, %v3227
    %v3229 = vsel %vm2933, %v3152, 0.0
    %v3230 = vadd.f32 %v3228, %v3229
    %v3231 = vsel %vm2933, %v3153, 0.0
    %v3232 = vadd.f32 %v3230, %v3231
    %v3233 = vsel %vm2933, %v3154, 0.0
    %v3234 = vadd.f32 %v3232, %v3233
    %v3235 = vsel %vm2933, %v3155, 0.0
    %v3236 = vadd.f32 %v3234, %v3235
    %v3237 = vsel %vm2933, %v3156, 0.0
    %v3238 = vadd.f32 %v3236, %v3237
    %v3239 = vsel %vm2933, %v3157, 0.0
    %v3240 = vadd.f32 %v3238, %v3239
    %v3241 = vsel %vm2933, %v3158, 0.0
    %v3242 = vadd.f32 %v3240, %v3241
    %v3243 = vsel %vm2933, %v3159, 0.0
    %v3244 = vadd.f32 %v3242, %v3243
    %v3245 = vsel %vm2933, %v3160, 0.0
    %v3246 = vadd.f32 %v3244, %v3245
    %v3247 = vsel %vm2933, %v3161, 0.0
    %v3248 = vadd.f32 %v3246, %v3247
    %v3249 = vsel %vm2933, %v3162, 0.0
    %v3250 = vadd.f32 %v3248, %v3249
    %v3251 = vsel %vm2933, %v3163, 0.0
    %v3252 = vadd.f32 %v3250, %v3251
    %v3253 = vsel %vm2933, %v3164, 0.0
    %v3254 = vadd.f32 %v3252, %v3253
    %v3255 = vsel %vm2933, %v3165, 0.0
    %v3256 = vadd.f32 %v3254, %v3255
    %v3257 = vsel %vm2933, %v3166, 0.0
    %v3258 = vadd.f32 %v3256, %v3257
    %v3259 = vsel %vm2933, %v3167, 0.0
    %v3260 = vadd.f32 %v3258, %v3259
    %v3261 = vsel %vm2933, %v3168, 0.0
    %v3262 = vadd.f32 %v3260, %v3261
    %v3263 = vsel %vm2933, %v3169, 0.0
    %v3264 = vadd.f32 %v3262, %v3263
    %v3265 = vsel %vm2933, %v3170, 0.0
    %v3266 = vadd.f32 %v3264, %v3265
    %v3267 = vsel %vm2933, %v3171, 0.0
    %v3268 = vadd.f32 %v3266, %v3267
    %v3269 = vsel %vm2933, %v3172, 0.0
    %v3270 = vadd.f32 %v3268, %v3269
    %v3271 = vsel %vm2933, %v3173, 0.0
    %v3272 = vadd.f32 %v3270, %v3271
    %v3273 = vsel %vm2933, %v3174, 0.0
    %v3274 = vadd.f32 %v3272, %v3273
    %v3275 = vsel %vm2933, %v3175, 0.0
    %v3276 = vadd.f32 %v3274, %v3275
    %v3277 = vsel %vm2933, %v3176, 0.0
    %v3278 = vadd.f32 %v3276, %v3277
    %v3279 = vsel %vm2933, %v3177, 0.0
    %v3280 = vadd.f32 %v3278, %v3279
    %v3281 = vsel %vm2933, %v3178, 0.0
    %v3282 = vadd.f32 %v3280, %v3281
    %v3283 = vsel %vm2933, %v3179, 0.0
    %v3284 = vadd.f32 %v3282, %v3283
    %v3285 = vsel %vm2933, %v3180, 0.0
    %v3286 = vadd.f32 %v3284, %v3285
    %v3287 = vsel %vm2933, %v3181, 0.0
    %v3288 = vadd.f32 %v3286, %v3287
    %v3289 = vsel %vm2933, %v3182, 0.0
    %v3290 = vadd.f32 %v3288, %v3289
    %v3291 = vsel %vm2933, %v3183, 0.0
    %v3292 = vadd.f32 %v3290, %v3291
    %v3293 = vsel %vm2933, %v3184, 0.0
    %v3294 = vadd.f32 %v3292, %v3293
    %v3295 = vsel %vm2933, %v3185, 0.0
    %v3296 = vadd.f32 %v3294, %v3295
    %v3297 = vsel %vm2933, %v3186, 0.0
    %v3298 = vadd.f32 %v3296, %v3297
    %v3299 = vsel %vm2933, %v3187, 0.0
    %v3300 = vadd.f32 %v3298, %v3299
    %v3301 = vsel %vm2933, %v3188, 0.0
    %v3302 = vadd.f32 %v3300, %v3301
    %v3303 = vsel %vm2933, %v3189, 0.0
    %v3304 = vadd.f32 %v3302, %v3303
    %v3305 = vsel %vm2933, %v3190, 0.0
    %v3306 = vadd.f32 %v3304, %v3305
    %v3307 = vsel %vm2933, %v3191, 0.0
    %v3308 = vadd.f32 %v3306, %v3307
    %v3309 = vsel %vm2933, %v3192, 0.0
    %v3310 = vadd.f32 %v3308, %v3309
    %v3311 = vsel %vm2933, %v3193, 0.0
    %v3312 = vadd.f32 %v3310, %v3311
    %v3313 = vsel %vm2933, %v3194, 0.0
    %v3314 = vadd.f32 %v3312, %v3313
    %v3315 = vsel %vm2933, %v3195, 0.0
    %v3316 = vadd.f32 %v3314, %v3315
    %v3317 = vsel %vm2933, %v3196, 0.0
    %v3318 = vadd.f32 %v3316, %v3317
    %v3319 = vsel %vm2933, %v3197, 0.0
    %v3320 = vadd.f32 %v3318, %v3319
    %v3321 = vsel %vm2933, %v3198, 0.0
    %v3322 = vadd.f32 %v3320, %v3321
    %v3323 = vsel %vm2933, %v3199, 0.0
    %v3324 = vadd.f32 %v3322, %v3323
    %v3325 = vsel %vm2933, %v3200, 0.0
    %v3326 = vadd.f32 %v3324, %v3325
    %v3327 = vsel %vm2933, %v3201, 0.0
    %v3328 = vadd.f32 %v3326, %v3327
    %3329 = vadd.xlane.f32.xlu0 %v3328
    %v3330 = vpop.xlane.xlu0 %3329
    %v3331 = vrot.slane %v3330, 4
    %v3332 = vadd.f32 %v3330, %v3331
    %v3333 = vrot.slane %v3332, 2
    %v3334 = vadd.f32 %v3332, %v3333
    %v3335 = vrot.slane %v3334, 1
    %v3336 = vadd.f32 %v3334, %v3335
    %s3337 = vtos %v3336
    %v3338 = vstv %s3337
    %v3339 = vadd.f32 %v3073, %v3338
    %3340 = vst [vmem:[#allocation4] sm:$0xff] %v3339
    // Predicated region
    $region26: #{_ppc_partials.1} parent=1 // pred_check
      _
    $region27: #{_ppc_partials.1} parent=1 // pred_check_branch
      %3342 = sbr.rel (0) target = $region29
    $region28: #{_ppc_partials.1} parent=1 // pred_region
      %s3344 = ssub.s32 128, 128
      %3345 = vsyncadd [#allocation3], %s3344
      %s3347 = sshll.u32 [#allocation2], 4
      %s3348 = int_to_ptr.vmem [resolvable:$true] %s3347
      %3350 = dma.vmem_to_hbm [thread:$0]  %s3348, 128, %s5, [#allocation3]
    $region29: #{_ppc_partials.1} parent=1 // pred_fallthru
      _
    // Predicated region
    $region30: #{_ppc_partials.1} parent=1 // pred_check
      _
    $region31: #{_ppc_partials.1} parent=1 // pred_check_branch
      %3352 = sbr.rel (0) target = $region33
    $region32: #{_ppc_partials.1} parent=1 // pred_region
      %s3354 = ssub.s32 128, 128
      %3355 = vsyncadd [#allocation5], %s3354
      %s3357 = sshll.u32 [#allocation4], 4
      %s3358 = int_to_ptr.vmem [resolvable:$true] %s3357
      %3360 = dma.vmem_to_hbm [thread:$0]  %s3358, 128, %s6, [#allocation5]
    $region33: #{_ppc_partials.1} parent=1 // pred_fallthru
      _
    // Predicated region
    $region34: #{_ppc_partials.1} parent=1 // pred_check
      _
    $region35: #{_ppc_partials.1} parent=1 // pred_check_branch
      %3362 = sbr.rel (0) target = $region37
    $region36: #{_ppc_partials.1} parent=1 // pred_region
      %3363 = dma.done [#allocation3], 128
    $region37: #{_ppc_partials.1} parent=1 // pred_fallthru
      _
    // Predicated region
    $region38: #{_ppc_partials.1} parent=1 // pred_check
      _
    $region39: #{_ppc_partials.1} parent=1 // pred_check_branch
      %3365 = sbr.rel (0) target = $region41
    $region40: #{_ppc_partials.1} parent=1 // pred_region
      %3366 = dma.done [#allocation5], 128
    $region41: #{_ppc_partials.1} parent=1 // pred_fallthru
      _
    %3367 = vsyncpa [#allocation3], 1
    %3368 = vsyncpa [#allocation5], 1

</llo_original>
